<compile_context>
chip_gen: v7x
topology: tpu7x:2x2x1
jax: 0.10.0
libtpu: 0.0.40
codegen_flags: <defaults>
</compile_context>

<pallas_src>
import jax
import jax.numpy as jnp
from jax import lax
from jax.experimental import pallas as pl
from jax.experimental.pallas import tpu as pltpu


def _round_up(x, m):
    return ((x + m - 1) // m) * m


# ----------------------------------------------------------------------------
# Fully fused forward: 3x (conv3x3 + bias + ReLU + maxpool2) + fc1+ReLU + fc2
# ----------------------------------------------------------------------------
def cnn3_forward(x_nchw, params):
    B, Cin, H, W = x_nchw.shape
    (w1c, b1c), (w2c, b2c), (w3c, b3c) = params["convs"]
    C1, C2, C3 = w1c.shape[-1], w2c.shape[-1], w3c.shape[-1]
    assert w1c.shape[0] == 3  # 3x3 kernels

    # ---------------- static geometry (Python ints, closed over by kernel) --
    Ho1, Wo1 = H - 2, W - 2            # conv1 output (dense, width Wo1)
    Hp1, Wp1 = Ho1 // 2, Wo1 // 2      # pool1 output
    P1 = _round_up(Wp1, 8)             # row pitch of the pooled-1 scratch
    Ho2, Wo2 = Hp1 - 2, Wp1 - 2
    Hp2, Wp2 = Ho2 // 2, Wo2 // 2
    P2 = _round_up(Wp2, 8)             # row pitch of the pooled-2 scratch
    Ho3 = Hp2 - 2
    Hp3, Wp3 = Ho3 // 2, (Wp2 - 2) // 2
    S3 = Hp3 * Wp3                     # final spatial positions (1 for 26x26)

    N1 = Ho1 * Wo1                     # conv1 rows
    N2 = Ho2 * P1                      # conv2 rows (pitch P1, junk cols >= Wo2)
    N3 = Ho3 * P2                      # conv3 rows (pitch P2)
    V1, V2 = N1 - Wo1, N2 - P1         # rows after the vertical pair-max
    S1_ROWS = _round_up(2 * P1 + 2 + N2, 8)   # pooled-1 scratch (covers shifts)
    S2_ROWS = _round_up(2 * P2 + 2 + N3, 8)   # pooled-2 scratch

    # ---------------- wrapper-side layout prep (tiny, fused by XLA) ---------
    # layer-1 im2col: (B, Ho1*Wo1, 9*Cin), last dim ordered (dh, dw, cin) so a
    # single deep-K matmul replaces nine K=Cin matmuls on the MXU.
    cols = [x_nchw[:, :, dh:dh + Ho1, dw:dw + Wo1]
            for dh in range(3) for dw in range(3)]
    patches = jnp.stack(cols, axis=1)                    # (B, 9, Cin, Ho1, Wo1)
    patches = patches.transpose(0, 3, 4, 1, 2).reshape(B, N1, 9 * Cin)
    w1m = w1c.reshape(9 * Cin, C1)                       # (dh, dw, cin) rows

    # fold the PyTorch NCHW-flatten permutation into fc1's rows; the kernel
    # visits spatial positions in (h, w) order, one (1, C3)@(C3, 512) each.
    Dh = params["w1"].shape[-1]
    wf1 = params["w1"].reshape(C3, Hp3, Wp3, Dh).transpose(1, 2, 0, 3)
    wf1 = wf1.reshape(S3, C3, Dh)

    # lane-dense final store: pad fc2 output 10 -> 128 lanes.
    n_cls = params["w2"].shape[-1]
    OUT_PAD = _round_up(max(n_cls, 128), 128)
    wf2 = jnp.pad(params["w2"], ((0, 0), (0, OUT_PAD - n_cls)))
    bf2 = jnp.pad(params["b2"], ((0, 0), (0, OUT_PAD - n_cls)))

    def kernel(p_ref, w1_ref, b1_ref, w2_ref, b2_ref, w3_ref, b3_ref,
               wf1_ref, bf1_ref, wf2_ref, bf2_ref, o_ref, s1, s2, u1, u2):
        # defensive zero of the pitch/pad slack in the pooled-activation scratch
        s1[...] = jnp.zeros_like(s1)
        s2[...] = jnp.zeros_like(s2)

        # ---- layer 1: conv3x3 (single K=9*Cin matmul) + bias + ReLU + pool --
        y = jnp.dot(p_ref[0], w1_ref[...], preferred_element_type=jnp.float32)
        y = jnp.maximum(y + b1_ref[...], 0.0)                       # (N1, C1)
        z = jnp.maximum(y, pltpu.roll(y, N1 - 1, axis=0))           # horiz pair
        u1[...] = jnp.maximum(z[:V1, :], z[Wo1:, :])                # vert pair
        for hp in range(Hp1):                                       # 2x2 select
            s1[pl.ds(hp * P1, Wp1), :] = u1[pl.ds(2 * hp * Wo1, Wp1, stride=2), :]

        # ---- layer 2: shift-trick conv, 9 taps accumulated in registers -----
        acc = jnp.dot(s1[pl.ds(0, N2), :], w2_ref[0, 0],
                      preferred_element_type=jnp.float32)
        for dh in range(3):
            for dw in range(3):
                if dh == 0 and dw == 0:
                    continue
                acc += jnp.dot(s1[pl.ds(dh * P1 + dw, N2), :], w2_ref[dh, dw],
                               preferred_element_type=jnp.float32)
        y = jnp.maximum(acc + b2_ref[...], 0.0)                     # (N2, C2)
        z = jnp.maximum(y, pltpu.roll(y, N2 - 1, axis=0))
        u2[...] = jnp.maximum(z[:V2, :], z[P1:, :])
        for hp in range(Hp2):
            s2[pl.ds(hp * P2, Wp2), :] = u2[pl.ds(2 * hp * P1, Wp2, stride=2), :]

        # ---- layer 3: shift-trick conv + pool, stays entirely in registers --
        acc = jnp.dot(s2[pl.ds(0, N3), :], w3_ref[0, 0],
                      preferred_element_type=jnp.float32)
        for dh in range(3):
            for dw in range(3):
                if dh == 0 and dw == 0:
                    continue
                acc += jnp.dot(s2[pl.ds(dh * P2 + dw, N3), :], w3_ref[dh, dw],
                               preferred_element_type=jnp.float32)
        y = jnp.maximum(acc + b3_ref[...], 0.0)                     # (N3, C3)
        z = jnp.maximum(y, pltpu.roll(y, N3 - 1, axis=0))
        v = jnp.maximum(z[:N3 - P2, :], z[P2:, :])

        # ---- flatten (NCHW order folded into wf1) + fc1 + ReLU + fc2 --------
        h = None
        s = 0
        for hp in range(Hp3):
            for wp in range(Wp3):
                r = 2 * hp * P2 + 2 * wp
                t = jnp.dot(v[r:r + 1, :], wf1_ref[s],
                            preferred_element_type=jnp.float32)
                h = t if h is None else h + t
                s += 1
        h = jnp.maximum(h + bf1_ref[...], 0.0)                      # (1, Dh)
        o_ref[0] = (jnp.dot(h, wf2_ref[...], preferred_element_type=jnp.float32)
                    + bf2_ref[...])

    out = pl.pallas_call(
        kernel,
        out_shape=jax.ShapeDtypeStruct((B, 1, OUT_PAD), jnp.float32),
        grid_spec=pltpu.PrefetchScalarGridSpec(
            num_scalar_prefetch=0,
            grid=(B,),
            in_specs=[
                pl.BlockSpec((1, N1, 9 * Cin), lambda b: (b, 0, 0)),   # patches
                pl.BlockSpec((9 * Cin, C1), lambda b: (0, 0)),         # conv1 w
                pl.BlockSpec((1, C1), lambda b: (0, 0)),               # conv1 b
                pl.BlockSpec((3, 3, C1, C2), lambda b: (0, 0, 0, 0)),  # conv2 w
                pl.BlockSpec((1, C2), lambda b: (0, 0)),               # conv2 b
                pl.BlockSpec((3, 3, C2, C3), lambda b: (0, 0, 0, 0)),  # conv3 w
                pl.BlockSpec((1, C3), lambda b: (0, 0)),               # conv3 b
                pl.BlockSpec((S3, C3, Dh), lambda b: (0, 0, 0)),       # fc1 w
                pl.BlockSpec((1, Dh), lambda b: (0, 0)),               # fc1 b
                pl.BlockSpec((Dh, OUT_PAD), lambda b: (0, 0)),         # fc2 w
                pl.BlockSpec((1, OUT_PAD), lambda b: (0, 0)),          # fc2 b
            ],
            out_specs=pl.BlockSpec((1, 1, OUT_PAD), lambda b: (b, 0, 0)),
            scratch_shapes=[
                pltpu.VMEM((S1_ROWS, C1), jnp.float32),  # pooled layer-1 acts
                pltpu.VMEM((S2_ROWS, C2), jnp.float32),  # pooled layer-2 acts
                pltpu.VMEM((V1, C1), jnp.float32),       # pool staging L1
                pltpu.VMEM((V2, C2), jnp.float32),       # pool staging L2
            ],
        ),
        compiler_params=pltpu.CompilerParams(
            dimension_semantics=("parallel",)),          # 2 TCs on v7x
    )(patches, w1m, b1c, w2c, b2c, w3c, b3c, wf1, params["b1"], wf2, bf2)

    return out.reshape(B, OUT_PAD)[:, :n_cls]


# ----------------------------------------------------------------------------
# Deterministic synthetic parameters (shapes dictated by the module __init__).
# ----------------------------------------------------------------------------
def init_params(key, c0, h, w):
    keys = jax.random.split(key, 10)
    convs = []
    cin, k = c0, 3
    for i, cout in enumerate((32, 64, 128)):
        fan_in = float(k * k * cin)
        wgt = jax.random.normal(keys[2 * i], (k, k, cin, cout), jnp.float32) / jnp.sqrt(fan_in)
        bia = 0.1 * jax.random.normal(keys[2 * i + 1], (1, cout), jnp.float32)
        convs.append((wgt, bia))
        cin = cout
        h = (h - k + 1) // 2
        w = (w - k + 1) // 2
    flat = cin * h * w
    w1 = jax.random.normal(keys[6], (flat, 512), jnp.float32) / jnp.sqrt(float(flat))
    b1 = 0.1 * jax.random.normal(keys[7], (1, 512), jnp.float32)
    w2 = jax.random.normal(keys[8], (512, 10), jnp.float32) / jnp.sqrt(512.0)
    b2 = 0.1 * jax.random.normal(keys[9], (1, 10), jnp.float32)
    return {"convs": convs, "w1": w1, "b1": b1, "w2": w2, "b2": b2}


# Pure-JAX reference mirroring the PyTorch forward (for correctness check).
def reference_forward(x_nchw, params):
    y = x_nchw
    for wgt, bia in params["convs"]:
        y = lax.conv_general_dilated(
            y, wgt, window_strides=(1, 1), padding="VALID",
            dimension_numbers=("NCHW", "HWIO", "NCHW"))
        y = jnp.maximum(y + bia.reshape(1, -1, 1, 1), 0.0)
        y = lax.reduce_window(y, -jnp.inf, lax.max,
                              window_dimensions=(1, 1, 2, 2),
                              window_strides=(1, 1, 2, 2), padding="VALID")
    f = y.reshape(y.shape[0], -1)
    h1 = jnp.maximum(f @ params["w1"] + params["b1"], 0.0)
    return h1 @ params["w2"] + params["b2"]


if __name__ == "__main__":
    B, C, H, W = 2, 3, 26, 26     # conv stack output (128, 1, 1) -> flat 128
    key = jax.random.PRNGKey(0)
    kx, kp = jax.random.split(key)
    x = jax.random.normal(kx, (B, C, H, W), jnp.float32)
    params = init_params(kp, C, H, W)

    out = jax.block_until_ready(jax.jit(cnn3_forward)(x, params))
    ref = jax.block_until_ready(reference_forward(x, params))

    assert out.shape == (B, 10), out.shape
    if not jnp.allclose(out, ref, rtol=2e-4, atol=2e-4):
        raise AssertionError(
            f"mismatch vs reference: max abs err {float(jnp.max(jnp.abs(out - ref)))}")
    print("KERNEL_OK")
</pallas_src>

<mosaic_0001>
module attributes {stable_mosaic.version = 11 : i64} {
  func.func @kernel(%arg0: i32, %arg1: memref<1x576x27xf32, #tpu.memory_space<vmem>>, %arg2: memref<27x32xf32, #tpu.memory_space<vmem>>, %arg3: memref<1x32xf32, #tpu.memory_space<vmem>>, %arg4: memref<3x3x32x64xf32, #tpu.memory_space<vmem>>, %arg5: memref<1x64xf32, #tpu.memory_space<vmem>>, %arg6: memref<3x3x64x128xf32, #tpu.memory_space<vmem>>, %arg7: memref<1x128xf32, #tpu.memory_space<vmem>>, %arg8: memref<1x128x512xf32, #tpu.memory_space<vmem>>, %arg9: memref<1x512xf32, #tpu.memory_space<vmem>>, %arg10: memref<512x128xf32, #tpu.memory_space<vmem>>, %arg11: memref<1x128xf32, #tpu.memory_space<vmem>>, %arg12: memref<1x1x128xf32, #tpu.memory_space<vmem>>, %arg13: memref<200x32xf32, #tpu.memory_space<vmem>>, %arg14: memref<48x64xf32, #tpu.memory_space<vmem>>, %arg15: memref<552x32xf32, #tpu.memory_space<vmem>>, %arg16: memref<144x64xf32, #tpu.memory_space<vmem>>) attributes {dimension_semantics = [#tpu.dimension_semantics<parallel>], iteration_bounds = array<i64: 2>, scalar_prefetch = 0 : i64, scratch_operands = 4 : i64, tpu.core_type = #tpu.core_type<tc>, window_params = [{transform_indices = @transform_0, window_bounds = array<i64: 1, 576, 27>}, {pipeline_mode = #tpu.pipeline_mode<synchronous>, transform_indices = @transform_1, window_bounds = array<i64: 27, 32>}, {pipeline_mode = #tpu.pipeline_mode<synchronous>, transform_indices = @transform_2, window_bounds = array<i64: 1, 32>}, {pipeline_mode = #tpu.pipeline_mode<synchronous>, transform_indices = @transform_3, window_bounds = array<i64: 3, 3, 32, 64>}, {pipeline_mode = #tpu.pipeline_mode<synchronous>, transform_indices = @transform_4, window_bounds = array<i64: 1, 64>}, {pipeline_mode = #tpu.pipeline_mode<synchronous>, transform_indices = @transform_5, window_bounds = array<i64: 3, 3, 64, 128>}, {pipeline_mode = #tpu.pipeline_mode<synchronous>, transform_indices = @transform_6, window_bounds = array<i64: 1, 128>}, {pipeline_mode = #tpu.pipeline_mode<synchronous>, transform_indices = @transform_7, window_bounds = array<i64: 1, 128, 512>}, {pipeline_mode = #tpu.pipeline_mode<synchronous>, transform_indices = @transform_8, window_bounds = array<i64: 1, 512>}, {pipeline_mode = #tpu.pipeline_mode<synchronous>, transform_indices = @transform_9, window_bounds = array<i64: 512, 128>}, {pipeline_mode = #tpu.pipeline_mode<synchronous>, transform_indices = @transform_10, window_bounds = array<i64: 1, 128>}, {transform_indices = @transform_11, window_bounds = array<i64: 1, 1, 128>}]} {
    %cst = arith.constant 0.000000e+00 : f32
    %0 = vector.broadcast %cst : f32 to vector<200x32xf32>
    %c0 = arith.constant 0 : index
    %c0_0 = arith.constant 0 : index
    %1 = vector.load %arg13[%c0, %c0_0] : memref<200x32xf32, #tpu.memory_space<vmem>>, vector<200x32xf32>
    tpu.vector_store %arg13[%c0, %c0_0], %0 {strides = array<i32>} : memref<200x32xf32, #tpu.memory_space<vmem>>, vector<200x32xf32>,
    %cst_1 = arith.constant 0.000000e+00 : f32
    %2 = vector.broadcast %cst_1 : f32 to vector<48x64xf32>
    %c0_2 = arith.constant 0 : index
    %c0_3 = arith.constant 0 : index
    %3 = vector.load %arg14[%c0_2, %c0_3] : memref<48x64xf32, #tpu.memory_space<vmem>>, vector<48x64xf32>
    tpu.vector_store %arg14[%c0_2, %c0_3], %2 {strides = array<i32>} : memref<48x64xf32, #tpu.memory_space<vmem>>, vector<48x64xf32>,
    %c0_4 = arith.constant 0 : index
    %c0_5 = arith.constant 0 : index
    %c0_6 = arith.constant 0 : index
    %4 = vector.load %arg1[%c0_4, %c0_5, %c0_6] : memref<1x576x27xf32, #tpu.memory_space<vmem>>, vector<1x576x27xf32>
    %5 = vector.shape_cast %4 : vector<1x576x27xf32> to vector<576x27xf32>
    %c0_7 = arith.constant 0 : index
    %c0_8 = arith.constant 0 : index
    %6 = vector.load %arg2[%c0_7, %c0_8] : memref<27x32xf32, #tpu.memory_space<vmem>>, vector<27x32xf32>
    %cst_9 = arith.constant dense<0.000000e+00> : vector<576x32xf32>
    %7 = tpu.matmul %5, %6, %cst_9 {dimension_numbers = #tpu.dot_dimension_numbers<[1], [0], [0], [1], [0, 0, 1, 1], [], []>} : vector<576x27xf32>, vector<27x32xf32>, vector<576x32xf32> -> vector<576x32xf32>
    %c0_10 = arith.constant 0 : index
    %c0_11 = arith.constant 0 : index
    %8 = vector.load %arg3[%c0_10, %c0_11] : memref<1x32xf32, #tpu.memory_space<vmem>>, vector<1x32xf32>
    %9 = vector.broadcast %8 : vector<1x32xf32> to vector<576x32xf32>
    %10 = arith.addf %7, %9 : vector<576x32xf32>
    %cst_12 = arith.constant 0.000000e+00 : f32
    %11 = vector.broadcast %cst_12 : f32 to vector<576x32xf32>
    %12 = arith.maximumf %10, %11 : vector<576x32xf32>
    %c575_i32 = arith.constant 575 : i32
    %13 = tpu.dynamic_rotate %12 by %c575_i32 dim 0 : vector<576x32xf32>, i32 -> vector<576x32xf32>
    %14 = arith.maximumf %12, %13 : vector<576x32xf32>
    %15 = vector.extract_strided_slice %14 {offsets = [0, 0], sizes = [552, 32], strides = [1, 1]} : vector<576x32xf32> to vector<552x32xf32>
    %16 = vector.extract_strided_slice %14 {offsets = [24, 0], sizes = [552, 32], strides = [1, 1]} : vector<576x32xf32> to vector<552x32xf32>
    %17 = arith.maximumf %15, %16 : vector<552x32xf32>
    %c0_13 = arith.constant 0 : index
    %c0_14 = arith.constant 0 : index
    %18 = vector.load %arg15[%c0_13, %c0_14] : memref<552x32xf32, #tpu.memory_space<vmem>>, vector<552x32xf32>
    tpu.vector_store %arg15[%c0_13, %c0_14], %17 {strides = array<i32>} : memref<552x32xf32, #tpu.memory_space<vmem>>, vector<552x32xf32>,
    %c0_15 = arith.constant 0 : index
    %c0_16 = arith.constant 0 : index
    %19 = tpu.strided_load %arg15[%c0_15, %c0_16] {strides = array<i32: 2, 1>} : memref<552x32xf32, #tpu.memory_space<vmem>>, vector<12x32xf32>
    %c0_17 = arith.constant 0 : index
    %c0_18 = arith.constant 0 : index
    %20 = vector.load %arg13[%c0_17, %c0_18] : memref<200x32xf32, #tpu.memory_space<vmem>>, vector<12x32xf32>
    tpu.vector_store %arg13[%c0_17, %c0_18], %19 {strides = array<i32>} : memref<200x32xf32, #tpu.memory_space<vmem>>, vector<12x32xf32>,
    %c48 = arith.constant 48 : index
    %c0_19 = arith.constant 0 : index
    %21 = tpu.strided_load %arg15[%c48, %c0_19] {strides = array<i32: 2, 1>} : memref<552x32xf32, #tpu.memory_space<vmem>>, vector<12x32xf32>
    %c16 = arith.constant 16 : index
    %c0_20 = arith.constant 0 : index
    %22 = vector.load %arg13[%c16, %c0_20] : memref<200x32xf32, #tpu.memory_space<vmem>>, vector<12x32xf32>
    tpu.vector_store %arg13[%c16, %c0_20], %21 {strides = array<i32>} : memref<200x32xf32, #tpu.memory_space<vmem>>, vector<12x32xf32>,
    %c96 = arith.constant 96 : index
    %c0_21 = arith.constant 0 : index
    %23 = tpu.strided_load %arg15[%c96, %c0_21] {strides = array<i32: 2, 1>} : memref<552x32xf32, #tpu.memory_space<vmem>>, vector<12x32xf32>
    %c32 = arith.constant 32 : index
    %c0_22 = arith.constant 0 : index
    %24 = vector.load %arg13[%c32, %c0_22] : memref<200x32xf32, #tpu.memory_space<vmem>>, vector<12x32xf32>
    tpu.vector_store %arg13[%c32, %c0_22], %23 {strides = array<i32>} : memref<200x32xf32, #tpu.memory_space<vmem>>, vector<12x32xf32>,
    %c144 = arith.constant 144 : index
    %c0_23 = arith.constant 0 : index
    %25 = tpu.strided_load %arg15[%c144, %c0_23] {strides = array<i32: 2, 1>} : memref<552x32xf32, #tpu.memory_space<vmem>>, vector<12x32xf32>
    %c48_24 = arith.constant 48 : index
    %c0_25 = arith.constant 0 : index
    %26 = vector.load %arg13[%c48_24, %c0_25] : memref<200x32xf32, #tpu.memory_space<vmem>>, vector<12x32xf32>
    tpu.vector_store %arg13[%c48_24, %c0_25], %25 {strides = array<i32>} : memref<200x32xf32, #tpu.memory_space<vmem>>, vector<12x32xf32>,
    %c192 = arith.constant 192 : index
    %c0_26 = arith.constant 0 : index
    %27 = tpu.strided_load %arg15[%c192, %c0_26] {strides = array<i32: 2, 1>} : memref<552x32xf32, #tpu.memory_space<vmem>>, vector<12x32xf32>
    %c64 = arith.constant 64 : index
    %c0_27 = arith.constant 0 : index
    %28 = vector.load %arg13[%c64, %c0_27] : memref<200x32xf32, #tpu.memory_space<vmem>>, vector<12x32xf32>
    tpu.vector_store %arg13[%c64, %c0_27], %27 {strides = array<i32>} : memref<200x32xf32, #tpu.memory_space<vmem>>, vector<12x32xf32>,
    %c240 = arith.constant 240 : index
    %c0_28 = arith.constant 0 : index
    %29 = tpu.strided_load %arg15[%c240, %c0_28] {strides = array<i32: 2, 1>} : memref<552x32xf32, #tpu.memory_space<vmem>>, vector<12x32xf32>
    %c80 = arith.constant 80 : index
    %c0_29 = arith.constant 0 : index
    %30 = vector.load %arg13[%c80, %c0_29] : memref<200x32xf32, #tpu.memory_space<vmem>>, vector<12x32xf32>
    tpu.vector_store %arg13[%c80, %c0_29], %29 {strides = array<i32>} : memref<200x32xf32, #tpu.memory_space<vmem>>, vector<12x32xf32>,
    %c288 = arith.constant 288 : index
    %c0_30 = arith.constant 0 : index
    %31 = tpu.strided_load %arg15[%c288, %c0_30] {strides = array<i32: 2, 1>} : memref<552x32xf32, #tpu.memory_space<vmem>>, vector<12x32xf32>
    %c96_31 = arith.constant 96 : index
    %c0_32 = arith.constant 0 : index
    %32 = vector.load %arg13[%c96_31, %c0_32] : memref<200x32xf32, #tpu.memory_space<vmem>>, vector<12x32xf32>
    tpu.vector_store %arg13[%c96_31, %c0_32], %31 {strides = array<i32>} : memref<200x32xf32, #tpu.memory_space<vmem>>, vector<12x32xf32>,
    %c336 = arith.constant 336 : index
    %c0_33 = arith.constant 0 : index
    %33 = tpu.strided_load %arg15[%c336, %c0_33] {strides = array<i32: 2, 1>} : memref<552x32xf32, #tpu.memory_space<vmem>>, vector<12x32xf32>
    %c112 = arith.constant 112 : index
    %c0_34 = arith.constant 0 : index
    %34 = vector.load %arg13[%c112, %c0_34] : memref<200x32xf32, #tpu.memory_space<vmem>>, vector<12x32xf32>
    tpu.vector_store %arg13[%c112, %c0_34], %33 {strides = array<i32>} : memref<200x32xf32, #tpu.memory_space<vmem>>, vector<12x32xf32>,
    %c384 = arith.constant 384 : index
    %c0_35 = arith.constant 0 : index
    %35 = tpu.strided_load %arg15[%c384, %c0_35] {strides = array<i32: 2, 1>} : memref<552x32xf32, #tpu.memory_space<vmem>>, vector<12x32xf32>
    %c128 = arith.constant 128 : index
    %c0_36 = arith.constant 0 : index
    %36 = vector.load %arg13[%c128, %c0_36] : memref<200x32xf32, #tpu.memory_space<vmem>>, vector<12x32xf32>
    tpu.vector_store %arg13[%c128, %c0_36], %35 {strides = array<i32>} : memref<200x32xf32, #tpu.memory_space<vmem>>, vector<12x32xf32>,
    %c432 = arith.constant 432 : index
    %c0_37 = arith.constant 0 : index
    %37 = tpu.strided_load %arg15[%c432, %c0_37] {strides = array<i32: 2, 1>} : memref<552x32xf32, #tpu.memory_space<vmem>>, vector<12x32xf32>
    %c144_38 = arith.constant 144 : index
    %c0_39 = arith.constant 0 : index
    %38 = vector.load %arg13[%c144_38, %c0_39] : memref<200x32xf32, #tpu.memory_space<vmem>>, vector<12x32xf32>
    tpu.vector_store %arg13[%c144_38, %c0_39], %37 {strides = array<i32>} : memref<200x32xf32, #tpu.memory_space<vmem>>, vector<12x32xf32>,
    %c480 = arith.constant 480 : index
    %c0_40 = arith.constant 0 : index
    %39 = tpu.strided_load %arg15[%c480, %c0_40] {strides = array<i32: 2, 1>} : memref<552x32xf32, #tpu.memory_space<vmem>>, vector<12x32xf32>
    %c160 = arith.constant 160 : index
    %c0_41 = arith.constant 0 : index
    %40 = vector.load %arg13[%c160, %c0_41] : memref<200x32xf32, #tpu.memory_space<vmem>>, vector<12x32xf32>
    tpu.vector_store %arg13[%c160, %c0_41], %39 {strides = array<i32>} : memref<200x32xf32, #tpu.memory_space<vmem>>, vector<12x32xf32>,
    %c528 = arith.constant 528 : index
    %c0_42 = arith.constant 0 : index
    %41 = tpu.strided_load %arg15[%c528, %c0_42] {strides = array<i32: 2, 1>} : memref<552x32xf32, #tpu.memory_space<vmem>>, vector<12x32xf32>
    %c176 = arith.constant 176 : index
    %c0_43 = arith.constant 0 : index
    %42 = vector.load %arg13[%c176, %c0_43] : memref<200x32xf32, #tpu.memory_space<vmem>>, vector<12x32xf32>
    tpu.vector_store %arg13[%c176, %c0_43], %41 {strides = array<i32>} : memref<200x32xf32, #tpu.memory_space<vmem>>, vector<12x32xf32>,
    %c0_44 = arith.constant 0 : index
    %c0_45 = arith.constant 0 : index
    %43 = vector.load %arg13[%c0_44, %c0_45] : memref<200x32xf32, #tpu.memory_space<vmem>>, vector<160x32xf32>
    %c0_46 = arith.constant 0 : index
    %c0_47 = arith.constant 0 : index
    %c0_48 = arith.constant 0 : index
    %c0_49 = arith.constant 0 : index
    %44 = vector.load %arg4[%c0_46, %c0_47, %c0_48, %c0_49] : memref<3x3x32x64xf32, #tpu.memory_space<vmem>>, vector<1x1x32x64xf32>
    %45 = vector.shape_cast %44 : vector<1x1x32x64xf32> to vector<32x64xf32>
    %cst_50 = arith.constant dense<0.000000e+00> : vector<160x64xf32>
    %46 = tpu.matmul %43, %45, %cst_50 {dimension_numbers = #tpu.dot_dimension_numbers<[1], [0], [0], [1], [0, 0, 1, 1], [], []>} : vector<160x32xf32>, vector<32x64xf32>, vector<160x64xf32> -> vector<160x64xf32>
    %c1 = arith.constant 1 : index
    %c0_51 = arith.constant 0 : index
    %47 = vector.load %arg13[%c1, %c0_51] : memref<200x32xf32, #tpu.memory_space<vmem>>, vector<160x32xf32>
    %c0_52 = arith.constant 0 : index
    %c1_53 = arith.constant 1 : index
    %c0_54 = arith.constant 0 : index
    %c0_55 = arith.constant 0 : index
    %48 = vector.load %arg4[%c0_52, %c1_53, %c0_54, %c0_55] : memref<3x3x32x64xf32, #tpu.memory_space<vmem>>, vector<1x1x32x64xf32>
    %49 = vector.shape_cast %48 : vector<1x1x32x64xf32> to vector<32x64xf32>
    %cst_56 = arith.constant dense<0.000000e+00> : vector<160x64xf32>
    %50 = tpu.matmul %47, %49, %cst_56 {dimension_numbers = #tpu.dot_dimension_numbers<[1], [0], [0], [1], [0, 0, 1, 1], [], []>} : vector<160x32xf32>, vector<32x64xf32>, vector<160x64xf32> -> vector<160x64xf32>
    %51 = arith.addf %46, %50 : vector<160x64xf32>
    %c2 = arith.constant 2 : index
    %c0_57 = arith.constant 0 : index
    %52 = vector.load %arg13[%c2, %c0_57] : memref<200x32xf32, #tpu.memory_space<vmem>>, vector<160x32xf32>
    %c0_58 = arith.constant 0 : index
    %c2_59 = arith.constant 2 : index
    %c0_60 = arith.constant 0 : index
    %c0_61 = arith.constant 0 : index
    %53 = vector.load %arg4[%c0_58, %c2_59, %c0_60, %c0_61] : memref<3x3x32x64xf32, #tpu.memory_space<vmem>>, vector<1x1x32x64xf32>
    %54 = vector.shape_cast %53 : vector<1x1x32x64xf32> to vector<32x64xf32>
    %cst_62 = arith.constant dense<0.000000e+00> : vector<160x64xf32>
    %55 = tpu.matmul %52, %54, %cst_62 {dimension_numbers = #tpu.dot_dimension_numbers<[1], [0], [0], [1], [0, 0, 1, 1], [], []>} : vector<160x32xf32>, vector<32x64xf32>, vector<160x64xf32> -> vector<160x64xf32>
    %56 = arith.addf %51, %55 : vector<160x64xf32>
    %c16_63 = arith.constant 16 : index
    %c0_64 = arith.constant 0 : index
    %57 = vector.load %arg13[%c16_63, %c0_64] : memref<200x32xf32, #tpu.memory_space<vmem>>, vector<160x32xf32>
    %c1_65 = arith.constant 1 : index
    %c0_66 = arith.constant 0 : index
    %c0_67 = arith.constant 0 : index
    %c0_68 = arith.constant 0 : index
    %58 = vector.load %arg4[%c1_65, %c0_66, %c0_67, %c0_68] : memref<3x3x32x64xf32, #tpu.memory_space<vmem>>, vector<1x1x32x64xf32>
    %59 = vector.shape_cast %58 : vector<1x1x32x64xf32> to vector<32x64xf32>
    %cst_69 = arith.constant dense<0.000000e+00> : vector<160x64xf32>
    %60 = tpu.matmul %57, %59, %cst_69 {dimension_numbers = #tpu.dot_dimension_numbers<[1], [0], [0], [1], [0, 0, 1, 1], [], []>} : vector<160x32xf32>, vector<32x64xf32>, vector<160x64xf32> -> vector<160x64xf32>
    %61 = arith.addf %56, %60 : vector<160x64xf32>
    %c17 = arith.constant 17 : index
    %c0_70 = arith.constant 0 : index
    %62 = vector.load %arg13[%c17, %c0_70] : memref<200x32xf32, #tpu.memory_space<vmem>>, vector<160x32xf32>
    %c1_71 = arith.constant 1 : index
    %c1_72 = arith.constant 1 : index
    %c0_73 = arith.constant 0 : index
    %c0_74 = arith.constant 0 : index
    %63 = vector.load %arg4[%c1_71, %c1_72, %c0_73, %c0_74] : memref<3x3x32x64xf32, #tpu.memory_space<vmem>>, vector<1x1x32x64xf32>
    %64 = vector.shape_cast %63 : vector<1x1x32x64xf32> to vector<32x64xf32>
    %cst_75 = arith.constant dense<0.000000e+00> : vector<160x64xf32>
    %65 = tpu.matmul %62, %64, %cst_75 {dimension_numbers = #tpu.dot_dimension_numbers<[1], [0], [0], [1], [0, 0, 1, 1], [], []>} : vector<160x32xf32>, vector<32x64xf32>, vector<160x64xf32> -> vector<160x64xf32>
    %66 = arith.addf %61, %65 : vector<160x64xf32>
    %c18 = arith.constant 18 : index
    %c0_76 = arith.constant 0 : index
    %67 = vector.load %arg13[%c18, %c0_76] : memref<200x32xf32, #tpu.memory_space<vmem>>, vector<160x32xf32>
    %c1_77 = arith.constant 1 : index
    %c2_78 = arith.constant 2 : index
    %c0_79 = arith.constant 0 : index
    %c0_80 = arith.constant 0 : index
    %68 = vector.load %arg4[%c1_77, %c2_78, %c0_79, %c0_80] : memref<3x3x32x64xf32, #tpu.memory_space<vmem>>, vector<1x1x32x64xf32>
    %69 = vector.shape_cast %68 : vector<1x1x32x64xf32> to vector<32x64xf32>
    %cst_81 = arith.constant dense<0.000000e+00> : vector<160x64xf32>
    %70 = tpu.matmul %67, %69, %cst_81 {dimension_numbers = #tpu.dot_dimension_numbers<[1], [0], [0], [1], [0, 0, 1, 1], [], []>} : vector<160x32xf32>, vector<32x64xf32>, vector<160x64xf32> -> vector<160x64xf32>
    %71 = arith.addf %66, %70 : vector<160x64xf32>
    %c32_82 = arith.constant 32 : index
    %c0_83 = arith.constant 0 : index
    %72 = vector.load %arg13[%c32_82, %c0_83] : memref<200x32xf32, #tpu.memory_space<vmem>>, vector<160x32xf32>
    %c2_84 = arith.constant 2 : index
    %c0_85 = arith.constant 0 : index
    %c0_86 = arith.constant 0 : index
    %c0_87 = arith.constant 0 : index
    %73 = vector.load %arg4[%c2_84, %c0_85, %c0_86, %c0_87] : memref<3x3x32x64xf32, #tpu.memory_space<vmem>>, vector<1x1x32x64xf32>
    %74 = vector.shape_cast %73 : vector<1x1x32x64xf32> to vector<32x64xf32>
    %cst_88 = arith.constant dense<0.000000e+00> : vector<160x64xf32>
    %75 = tpu.matmul %72, %74, %cst_88 {dimension_numbers = #tpu.dot_dimension_numbers<[1], [0], [0], [1], [0, 0, 1, 1], [], []>} : vector<160x32xf32>, vector<32x64xf32>, vector<160x64xf32> -> vector<160x64xf32>
    %76 = arith.addf %71, %75 : vector<160x64xf32>
    %c33 = arith.constant 33 : index
    %c0_89 = arith.constant 0 : index
    %77 = vector.load %arg13[%c33, %c0_89] : memref<200x32xf32, #tpu.memory_space<vmem>>, vector<160x32xf32>
    %c2_90 = arith.constant 2 : index
    %c1_91 = arith.constant 1 : index
    %c0_92 = arith.constant 0 : index
    %c0_93 = arith.constant 0 : index
    %78 = vector.load %arg4[%c2_90, %c1_91, %c0_92, %c0_93] : memref<3x3x32x64xf32, #tpu.memory_space<vmem>>, vector<1x1x32x64xf32>
    %79 = vector.shape_cast %78 : vector<1x1x32x64xf32> to vector<32x64xf32>
    %cst_94 = arith.constant dense<0.000000e+00> : vector<160x64xf32>
    %80 = tpu.matmul %77, %79, %cst_94 {dimension_numbers = #tpu.dot_dimension_numbers<[1], [0], [0], [1], [0, 0, 1, 1], [], []>} : vector<160x32xf32>, vector<32x64xf32>, vector<160x64xf32> -> vector<160x64xf32>
    %81 = arith.addf %76, %80 : vector<160x64xf32>
    %c34 = arith.constant 34 : index
    %c0_95 = arith.constant 0 : index
    %82 = vector.load %arg13[%c34, %c0_95] : memref<200x32xf32, #tpu.memory_space<vmem>>, vector<160x32xf32>
    %c2_96 = arith.constant 2 : index
    %c2_97 = arith.constant 2 : index
    %c0_98 = arith.constant 0 : index
    %c0_99 = arith.constant 0 : index
    %83 = vector.load %arg4[%c2_96, %c2_97, %c0_98, %c0_99] : memref<3x3x32x64xf32, #tpu.memory_space<vmem>>, vector<1x1x32x64xf32>
    %84 = vector.shape_cast %83 : vector<1x1x32x64xf32> to vector<32x64xf32>
    %cst_100 = arith.constant dense<0.000000e+00> : vector<160x64xf32>
    %85 = tpu.matmul %82, %84, %cst_100 {dimension_numbers = #tpu.dot_dimension_numbers<[1], [0], [0], [1], [0, 0, 1, 1], [], []>} : vector<160x32xf32>, vector<32x64xf32>, vector<160x64xf32> -> vector<160x64xf32>
    %86 = arith.addf %81, %85 : vector<160x64xf32>
    %c0_101 = arith.constant 0 : index
    %c0_102 = arith.constant 0 : index
    %87 = vector.load %arg5[%c0_101, %c0_102] : memref<1x64xf32, #tpu.memory_space<vmem>>, vector<1x64xf32>
    %88 = vector.broadcast %87 : vector<1x64xf32> to vector<160x64xf32>
    %89 = arith.addf %86, %88 : vector<160x64xf32>
    %cst_103 = arith.constant 0.000000e+00 : f32
    %90 = vector.broadcast %cst_103 : f32 to vector<160x64xf32>
    %91 = arith.maximumf %89, %90 : vector<160x64xf32>
    %c159_i32 = arith.constant 159 : i32
    %92 = tpu.dynamic_rotate %91 by %c159_i32 dim 0 : vector<160x64xf32>, i32 -> vector<160x64xf32>
    %93 = arith.maximumf %91, %92 : vector<160x64xf32>
    %94 = vector.extract_strided_slice %93 {offsets = [0, 0], sizes = [144, 64], strides = [1, 1]} : vector<160x64xf32> to vector<144x64xf32>
    %95 = vector.extract_strided_slice %93 {offsets = [16, 0], sizes = [144, 64], strides = [1, 1]} : vector<160x64xf32> to vector<144x64xf32>
    %96 = arith.maximumf %94, %95 : vector<144x64xf32>
    %c0_104 = arith.constant 0 : index
    %c0_105 = arith.constant 0 : index
    %97 = vector.load %arg16[%c0_104, %c0_105] : memref<144x64xf32, #tpu.memory_space<vmem>>, vector<144x64xf32>
    tpu.vector_store %arg16[%c0_104, %c0_105], %96 {strides = array<i32>} : memref<144x64xf32, #tpu.memory_space<vmem>>, vector<144x64xf32>,
    %c0_106 = arith.constant 0 : index
    %c0_107 = arith.constant 0 : index
    %98 = tpu.strided_load %arg16[%c0_106, %c0_107] {strides = array<i32: 2, 1>} : memref<144x64xf32, #tpu.memory_space<vmem>>, vector<5x64xf32>
    %c0_108 = arith.constant 0 : index
    %c0_109 = arith.constant 0 : index
    %99 = vector.load %arg14[%c0_108, %c0_109] : memref<48x64xf32, #tpu.memory_space<vmem>>, vector<5x64xf32>
    tpu.vector_store %arg14[%c0_108, %c0_109], %98 {strides = array<i32>} : memref<48x64xf32, #tpu.memory_space<vmem>>, vector<5x64xf32>,
    %c32_110 = arith.constant 32 : index
    %c0_111 = arith.constant 0 : index
    %100 = tpu.strided_load %arg16[%c32_110, %c0_111] {strides = array<i32: 2, 1>} : memref<144x64xf32, #tpu.memory_space<vmem>>, vector<5x64xf32>
    %c8 = arith.constant 8 : index
    %c0_112 = arith.constant 0 : index
    %101 = vector.load %arg14[%c8, %c0_112] : memref<48x64xf32, #tpu.memory_space<vmem>>, vector<5x64xf32>
    tpu.vector_store %arg14[%c8, %c0_112], %100 {strides = array<i32>} : memref<48x64xf32, #tpu.memory_space<vmem>>, vector<5x64xf32>,
    %c64_113 = arith.constant 64 : index
    %c0_114 = arith.constant 0 : index
    %102 = tpu.strided_load %arg16[%c64_113, %c0_114] {strides = array<i32: 2, 1>} : memref<144x64xf32, #tpu.memory_space<vmem>>, vector<5x64xf32>
    %c16_115 = arith.constant 16 : index
    %c0_116 = arith.constant 0 : index
    %103 = vector.load %arg14[%c16_115, %c0_116] : memref<48x64xf32, #tpu.memory_space<vmem>>, vector<5x64xf32>
    tpu.vector_store %arg14[%c16_115, %c0_116], %102 {strides = array<i32>} : memref<48x64xf32, #tpu.memory_space<vmem>>, vector<5x64xf32>,
    %c96_117 = arith.constant 96 : index
    %c0_118 = arith.constant 0 : index
    %104 = tpu.strided_load %arg16[%c96_117, %c0_118] {strides = array<i32: 2, 1>} : memref<144x64xf32, #tpu.memory_space<vmem>>, vector<5x64xf32>
    %c24 = arith.constant 24 : index
    %c0_119 = arith.constant 0 : index
    %105 = vector.load %arg14[%c24, %c0_119] : memref<48x64xf32, #tpu.memory_space<vmem>>, vector<5x64xf32>
    tpu.vector_store %arg14[%c24, %c0_119], %104 {strides = array<i32>} : memref<48x64xf32, #tpu.memory_space<vmem>>, vector<5x64xf32>,
    %c128_120 = arith.constant 128 : index
    %c0_121 = arith.constant 0 : index
    %106 = tpu.strided_load %arg16[%c128_120, %c0_121] {strides = array<i32: 2, 1>} : memref<144x64xf32, #tpu.memory_space<vmem>>, vector<5x64xf32>
    %c32_122 = arith.constant 32 : index
    %c0_123 = arith.constant 0 : index
    %107 = vector.load %arg14[%c32_122, %c0_123] : memref<48x64xf32, #tpu.memory_space<vmem>>, vector<5x64xf32>
    tpu.vector_store %arg14[%c32_122, %c0_123], %106 {strides = array<i32>} : memref<48x64xf32, #tpu.memory_space<vmem>>, vector<5x64xf32>,
    %c0_124 = arith.constant 0 : index
    %c0_125 = arith.constant 0 : index
    %108 = vector.load %arg14[%c0_124, %c0_125] : memref<48x64xf32, #tpu.memory_space<vmem>>, vector<24x64xf32>
    %c0_126 = arith.constant 0 : index
    %c0_127 = arith.constant 0 : index
    %c0_128 = arith.constant 0 : index
    %c0_129 = arith.constant 0 : index
    %109 = vector.load %arg6[%c0_126, %c0_127, %c0_128, %c0_129] : memref<3x3x64x128xf32, #tpu.memory_space<vmem>>, vector<1x1x64x128xf32>
    %110 = vector.shape_cast %109 : vector<1x1x64x128xf32> to vector<64x128xf32>
    %cst_130 = arith.constant dense<0.000000e+00> : vector<24x128xf32>
    %111 = tpu.matmul %108, %110, %cst_130 {dimension_numbers = #tpu.dot_dimension_numbers<[1], [0], [0], [1], [0, 0, 1, 1], [], []>} : vector<24x64xf32>, vector<64x128xf32>, vector<24x128xf32> -> vector<24x128xf32>
    %c1_131 = arith.constant 1 : index
    %c0_132 = arith.constant 0 : index
    %112 = vector.load %arg14[%c1_131, %c0_132] : memref<48x64xf32, #tpu.memory_space<vmem>>, vector<24x64xf32>
    %c0_133 = arith.constant 0 : index
    %c1_134 = arith.constant 1 : index
    %c0_135 = arith.constant 0 : index
    %c0_136 = arith.constant 0 : index
    %113 = vector.load %arg6[%c0_133, %c1_134, %c0_135, %c0_136] : memref<3x3x64x128xf32, #tpu.memory_space<vmem>>, vector<1x1x64x128xf32>
    %114 = vector.shape_cast %113 : vector<1x1x64x128xf32> to vector<64x128xf32>
    %cst_137 = arith.constant dense<0.000000e+00> : vector<24x128xf32>
    %115 = tpu.matmul %112, %114, %cst_137 {dimension_numbers = #tpu.dot_dimension_numbers<[1], [0], [0], [1], [0, 0, 1, 1], [], []>} : vector<24x64xf32>, vector<64x128xf32>, vector<24x128xf32> -> vector<24x128xf32>
    %116 = arith.addf %111, %115 : vector<24x128xf32>
    %c2_138 = arith.constant 2 : index
    %c0_139 = arith.constant 0 : index
    %117 = vector.load %arg14[%c2_138, %c0_139] : memref<48x64xf32, #tpu.memory_space<vmem>>, vector<24x64xf32>
    %c0_140 = arith.constant 0 : index
    %c2_141 = arith.constant 2 : index
    %c0_142 = arith.constant 0 : index
    %c0_143 = arith.constant 0 : index
    %118 = vector.load %arg6[%c0_140, %c2_141, %c0_142, %c0_143] : memref<3x3x64x128xf32, #tpu.memory_space<vmem>>, vector<1x1x64x128xf32>
    %119 = vector.shape_cast %118 : vector<1x1x64x128xf32> to vector<64x128xf32>
    %cst_144 = arith.constant dense<0.000000e+00> : vector<24x128xf32>
    %120 = tpu.matmul %117, %119, %cst_144 {dimension_numbers = #tpu.dot_dimension_numbers<[1], [0], [0], [1], [0, 0, 1, 1], [], []>} : vector<24x64xf32>, vector<64x128xf32>, vector<24x128xf32> -> vector<24x128xf32>
    %121 = arith.addf %116, %120 : vector<24x128xf32>
    %c8_145 = arith.constant 8 : index
    %c0_146 = arith.constant 0 : index
    %122 = vector.load %arg14[%c8_145, %c0_146] : memref<48x64xf32, #tpu.memory_space<vmem>>, vector<24x64xf32>
    %c1_147 = arith.constant 1 : index
    %c0_148 = arith.constant 0 : index
    %c0_149 = arith.constant 0 : index
    %c0_150 = arith.constant 0 : index
    %123 = vector.load %arg6[%c1_147, %c0_148, %c0_149, %c0_150] : memref<3x3x64x128xf32, #tpu.memory_space<vmem>>, vector<1x1x64x128xf32>
    %124 = vector.shape_cast %123 : vector<1x1x64x128xf32> to vector<64x128xf32>
    %cst_151 = arith.constant dense<0.000000e+00> : vector<24x128xf32>
    %125 = tpu.matmul %122, %124, %cst_151 {dimension_numbers = #tpu.dot_dimension_numbers<[1], [0], [0], [1], [0, 0, 1, 1], [], []>} : vector<24x64xf32>, vector<64x128xf32>, vector<24x128xf32> -> vector<24x128xf32>
    %126 = arith.addf %121, %125 : vector<24x128xf32>
    %c9 = arith.constant 9 : index
    %c0_152 = arith.constant 0 : index
    %127 = vector.load %arg14[%c9, %c0_152] : memref<48x64xf32, #tpu.memory_space<vmem>>, vector<24x64xf32>
    %c1_153 = arith.constant 1 : index
    %c1_154 = arith.constant 1 : index
    %c0_155 = arith.constant 0 : index
    %c0_156 = arith.constant 0 : index
    %128 = vector.load %arg6[%c1_153, %c1_154, %c0_155, %c0_156] : memref<3x3x64x128xf32, #tpu.memory_space<vmem>>, vector<1x1x64x128xf32>
    %129 = vector.shape_cast %128 : vector<1x1x64x128xf32> to vector<64x128xf32>
    %cst_157 = arith.constant dense<0.000000e+00> : vector<24x128xf32>
    %130 = tpu.matmul %127, %129, %cst_157 {dimension_numbers = #tpu.dot_dimension_numbers<[1], [0], [0], [1], [0, 0, 1, 1], [], []>} : vector<24x64xf32>, vector<64x128xf32>, vector<24x128xf32> -> vector<24x128xf32>
    %131 = arith.addf %126, %130 : vector<24x128xf32>
    %c10 = arith.constant 10 : index
    %c0_158 = arith.constant 0 : index
    %132 = vector.load %arg14[%c10, %c0_158] : memref<48x64xf32, #tpu.memory_space<vmem>>, vector<24x64xf32>
    %c1_159 = arith.constant 1 : index
    %c2_160 = arith.constant 2 : index
    %c0_161 = arith.constant 0 : index
    %c0_162 = arith.constant 0 : index
    %133 = vector.load %arg6[%c1_159, %c2_160, %c0_161, %c0_162] : memref<3x3x64x128xf32, #tpu.memory_space<vmem>>, vector<1x1x64x128xf32>
    %134 = vector.shape_cast %133 : vector<1x1x64x128xf32> to vector<64x128xf32>
    %cst_163 = arith.constant dense<0.000000e+00> : vector<24x128xf32>
    %135 = tpu.matmul %132, %134, %cst_163 {dimension_numbers = #tpu.dot_dimension_numbers<[1], [0], [0], [1], [0, 0, 1, 1], [], []>} : vector<24x64xf32>, vector<64x128xf32>, vector<24x128xf32> -> vector<24x128xf32>
    %136 = arith.addf %131, %135 : vector<24x128xf32>
    %c16_164 = arith.constant 16 : index
    %c0_165 = arith.constant 0 : index
    %137 = vector.load %arg14[%c16_164, %c0_165] : memref<48x64xf32, #tpu.memory_space<vmem>>, vector<24x64xf32>
    %c2_166 = arith.constant 2 : index
    %c0_167 = arith.constant 0 : index
    %c0_168 = arith.constant 0 : index
    %c0_169 = arith.constant 0 : index
    %138 = vector.load %arg6[%c2_166, %c0_167, %c0_168, %c0_169] : memref<3x3x64x128xf32, #tpu.memory_space<vmem>>, vector<1x1x64x128xf32>
    %139 = vector.shape_cast %138 : vector<1x1x64x128xf32> to vector<64x128xf32>
    %cst_170 = arith.constant dense<0.000000e+00> : vector<24x128xf32>
    %140 = tpu.matmul %137, %139, %cst_170 {dimension_numbers = #tpu.dot_dimension_numbers<[1], [0], [0], [1], [0, 0, 1, 1], [], []>} : vector<24x64xf32>, vector<64x128xf32>, vector<24x128xf32> -> vector<24x128xf32>
    %141 = arith.addf %136, %140 : vector<24x128xf32>
    %c17_171 = arith.constant 17 : index
    %c0_172 = arith.constant 0 : index
    %142 = vector.load %arg14[%c17_171, %c0_172] : memref<48x64xf32, #tpu.memory_space<vmem>>, vector<24x64xf32>
    %c2_173 = arith.constant 2 : index
    %c1_174 = arith.constant 1 : index
    %c0_175 = arith.constant 0 : index
    %c0_176 = arith.constant 0 : index
    %143 = vector.load %arg6[%c2_173, %c1_174, %c0_175, %c0_176] : memref<3x3x64x128xf32, #tpu.memory_space<vmem>>, vector<1x1x64x128xf32>
    %144 = vector.shape_cast %143 : vector<1x1x64x128xf32> to vector<64x128xf32>
    %cst_177 = arith.constant dense<0.000000e+00> : vector<24x128xf32>
    %145 = tpu.matmul %142, %144, %cst_177 {dimension_numbers = #tpu.dot_dimension_numbers<[1], [0], [0], [1], [0, 0, 1, 1], [], []>} : vector<24x64xf32>, vector<64x128xf32>, vector<24x128xf32> -> vector<24x128xf32>
    %146 = arith.addf %141, %145 : vector<24x128xf32>
    %c18_178 = arith.constant 18 : index
    %c0_179 = arith.constant 0 : index
    %147 = vector.load %arg14[%c18_178, %c0_179] : memref<48x64xf32, #tpu.memory_space<vmem>>, vector<24x64xf32>
    %c2_180 = arith.constant 2 : index
    %c2_181 = arith.constant 2 : index
    %c0_182 = arith.constant 0 : index
    %c0_183 = arith.constant 0 : index
    %148 = vector.load %arg6[%c2_180, %c2_181, %c0_182, %c0_183] : memref<3x3x64x128xf32, #tpu.memory_space<vmem>>, vector<1x1x64x128xf32>
    %149 = vector.shape_cast %148 : vector<1x1x64x128xf32> to vector<64x128xf32>
    %cst_184 = arith.constant dense<0.000000e+00> : vector<24x128xf32>
    %150 = tpu.matmul %147, %149, %cst_184 {dimension_numbers = #tpu.dot_dimension_numbers<[1], [0], [0], [1], [0, 0, 1, 1], [], []>} : vector<24x64xf32>, vector<64x128xf32>, vector<24x128xf32> -> vector<24x128xf32>
    %151 = arith.addf %146, %150 : vector<24x128xf32>
    %c0_185 = arith.constant 0 : index
    %c0_186 = arith.constant 0 : index
    %152 = vector.load %arg7[%c0_185, %c0_186] : memref<1x128xf32, #tpu.memory_space<vmem>>, vector<1x128xf32>
    %153 = vector.broadcast %152 : vector<1x128xf32> to vector<24x128xf32>
    %154 = arith.addf %151, %153 : vector<24x128xf32>
    %cst_187 = arith.constant 0.000000e+00 : f32
    %155 = vector.broadcast %cst_187 : f32 to vector<24x128xf32>
    %156 = arith.maximumf %154, %155 : vector<24x128xf32>
    %c23_i32 = arith.constant 23 : i32
    %157 = tpu.dynamic_rotate %156 by %c23_i32 dim 0 : vector<24x128xf32>, i32 -> vector<24x128xf32>
    %158 = arith.maximumf %156, %157 : vector<24x128xf32>
    %159 = vector.extract_strided_slice %158 {offsets = [0, 0], sizes = [16, 128], strides = [1, 1]} : vector<24x128xf32> to vector<16x128xf32>
    %160 = vector.extract_strided_slice %158 {offsets = [8, 0], sizes = [16, 128], strides = [1, 1]} : vector<24x128xf32> to vector<16x128xf32>
    %161 = arith.maximumf %159, %160 : vector<16x128xf32>
    %162 = vector.extract_strided_slice %161 {offsets = [0, 0], sizes = [1, 128], strides = [1, 1]} : vector<16x128xf32> to vector<1x128xf32>
    %c0_188 = arith.constant 0 : index
    %c0_189 = arith.constant 0 : index
    %c0_190 = arith.constant 0 : index
    %163 = vector.load %arg8[%c0_188, %c0_189, %c0_190] : memref<1x128x512xf32, #tpu.memory_space<vmem>>, vector<1x128x512xf32>
    %164 = vector.shape_cast %163 : vector<1x128x512xf32> to vector<128x512xf32>
    %cst_191 = arith.constant dense<0.000000e+00> : vector<1x512xf32>
    %165 = tpu.matmul %162, %164, %cst_191 {dimension_numbers = #tpu.dot_dimension_numbers<[1], [0], [0], [1], [0, 0, 1, 1], [], []>} : vector<1x128xf32>, vector<128x512xf32>, vector<1x512xf32> -> vector<1x512xf32>
    %c0_192 = arith.constant 0 : index
    %c0_193 = arith.constant 0 : index
    %166 = vector.load %arg9[%c0_192, %c0_193] : memref<1x512xf32, #tpu.memory_space<vmem>>, vector<1x512xf32>
    %167 = arith.addf %165, %166 : vector<1x512xf32>
    %cst_194 = arith.constant 0.000000e+00 : f32
    %168 = vector.broadcast %cst_194 : f32 to vector<1x512xf32>
    %169 = arith.maximumf %167, %168 : vector<1x512xf32>
    %c0_195 = arith.constant 0 : index
    %c0_196 = arith.constant 0 : index
    %170 = vector.load %arg10[%c0_195, %c0_196] : memref<512x128xf32, #tpu.memory_space<vmem>>, vector<512x128xf32>
    %cst_197 = arith.constant dense<0.000000e+00> : vector<1x128xf32>
    %171 = tpu.matmul %169, %170, %cst_197 {dimension_numbers = #tpu.dot_dimension_numbers<[1], [0], [0], [1], [0, 0, 1, 1], [], []>} : vector<1x512xf32>, vector<512x128xf32>, vector<1x128xf32> -> vector<1x128xf32>
    %c0_198 = arith.constant 0 : index
    %c0_199 = arith.constant 0 : index
    %172 = vector.load %arg11[%c0_198, %c0_199] : memref<1x128xf32, #tpu.memory_space<vmem>>, vector<1x128xf32>
    %173 = arith.addf %171, %172 : vector<1x128xf32>
    %c0_200 = arith.constant 0 : index
    %c0_201 = arith.constant 0 : index
    %c0_202 = arith.constant 0 : index
    %174 = vector.load %arg12[%c0_200, %c0_201, %c0_202] : memref<1x1x128xf32, #tpu.memory_space<vmem>>, vector<1x1x128xf32>
    %175 = vector.shape_cast %174 : vector<1x1x128xf32> to vector<1x128xf32>
    %176 = vector.shape_cast %173 : vector<1x128xf32> to vector<1x1x128xf32>
    tpu.vector_store %arg12[%c0_200, %c0_201, %c0_202], %176 {strides = array<i32>} : memref<1x1x128xf32, #tpu.memory_space<vmem>>, vector<1x1x128xf32>,
    return
  }
  func.func @transform_0(%arg0: i32) -> (i32, i32, i32) {
    %c0_i32 = arith.constant 0 : i32
    %c0_i32_0 = arith.constant 0 : i32
    %c0_i32_1 = arith.constant 0 : i32
    return %arg0, %c0_i32, %c0_i32_0 : i32, i32, i32
  }
  func.func @transform_1(%arg0: i32) -> (i32, i32) {
    %c0_i32 = arith.constant 0 : i32
    %c0_i32_0 = arith.constant 0 : i32
    %c0_i32_1 = arith.constant 0 : i32
    return %c0_i32, %c0_i32_0 : i32, i32
  }
  func.func @transform_2(%arg0: i32) -> (i32, i32) {
    %c0_i32 = arith.constant 0 : i32
    %c0_i32_0 = arith.constant 0 : i32
    %c0_i32_1 = arith.constant 0 : i32
    return %c0_i32, %c0_i32_0 : i32, i32
  }
  func.func @transform_3(%arg0: i32) -> (i32, i32, i32, i32) {
    %c0_i32 = arith.constant 0 : i32
    %c0_i32_0 = arith.constant 0 : i32
    %c0_i32_1 = arith.constant 0 : i32
    %c0_i32_2 = arith.constant 0 : i32
    %c0_i32_3 = arith.constant 0 : i32
    return %c0_i32, %c0_i32_0, %c0_i32_1, %c0_i32_2 : i32, i32, i32, i32
  }
  func.func @transform_4(%arg0: i32) -> (i32, i32) {
    %c0_i32 = arith.constant 0 : i32
    %c0_i32_0 = arith.constant 0 : i32
    %c0_i32_1 = arith.constant 0 : i32
    return %c0_i32, %c0_i32_0 : i32, i32
  }
  func.func @transform_5(%arg0: i32) -> (i32, i32, i32, i32) {
    %c0_i32 = arith.constant 0 : i32
    %c0_i32_0 = arith.constant 0 : i32
    %c0_i32_1 = arith.constant 0 : i32
    %c0_i32_2 = arith.constant 0 : i32
    %c0_i32_3 = arith.constant 0 : i32
    return %c0_i32, %c0_i32_0, %c0_i32_1, %c0_i32_2 : i32, i32, i32, i32
  }
  func.func @transform_6(%arg0: i32) -> (i32, i32) {
    %c0_i32 = arith.constant 0 : i32
    %c0_i32_0 = arith.constant 0 : i32
    %c0_i32_1 = arith.constant 0 : i32
    return %c0_i32, %c0_i32_0 : i32, i32
  }
  func.func @transform_7(%arg0: i32) -> (i32, i32, i32) {
    %c0_i32 = arith.constant 0 : i32
    %c0_i32_0 = arith.constant 0 : i32
    %c0_i32_1 = arith.constant 0 : i32
    %c0_i32_2 = arith.constant 0 : i32
    return %c0_i32, %c0_i32_0, %c0_i32_1 : i32, i32, i32
  }
  func.func @transform_8(%arg0: i32) -> (i32, i32) {
    %c0_i32 = arith.constant 0 : i32
    %c0_i32_0 = arith.constant 0 : i32
    %c0_i32_1 = arith.constant 0 : i32
    return %c0_i32, %c0_i32_0 : i32, i32
  }
  func.func @transform_9(%arg0: i32) -> (i32, i32) {
    %c0_i32 = arith.constant 0 : i32
    %c0_i32_0 = arith.constant 0 : i32
    %c0_i32_1 = arith.constant 0 : i32
    return %c0_i32, %c0_i32_0 : i32, i32
  }
  func.func @transform_10(%arg0: i32) -> (i32, i32) {
    %c0_i32 = arith.constant 0 : i32
    %c0_i32_0 = arith.constant 0 : i32
    %c0_i32_1 = arith.constant 0 : i32
    return %c0_i32, %c0_i32_0 : i32, i32
  }
  func.func @transform_11(%arg0: i32) -> (i32, i32, i32) {
    %c0_i32 = arith.constant 0 : i32
    %c0_i32_0 = arith.constant 0 : i32
    %c0_i32_1 = arith.constant 0 : i32
    return %arg0, %c0_i32, %c0_i32_0 : i32, i32, i32
  }
}

</mosaic_0001>

<llo_original>
// kernel: cnn3_forward.1
$region0: #{cnn3_forward.1}
  #allocation0 [shape = 'u32[]', space=smem, size = 0x4, offset = 0x4, fixed_abs, tag = 'smem constant byte address 0x4 - core index']
  #allocation1 [shape = 'u32[144,128]{1,0:T(1,128)}', space=vmem, size = 0x12000, scoped, tag = 'internal scratch']
  #allocation2 [shape = 'f32[200,32]{1,0:T(8,128)}', space=vmem, size = 0x19000, scoped, tag = 'scratch operand']
  #allocation3 [shape = 'f32[48,64]{1,0:T(8,128)}', space=vmem, size = 0x6000, scoped, tag = 'scratch operand']
  #allocation4 [shape = 'f32[552,32]{1,0:T(8,128)}', space=vmem, size = 0x45000, scoped, tag = 'scratch operand']
  #allocation5 [shape = 'f32[144,64]{1,0:T(8,128)}', space=vmem, size = 0x12000, scoped, tag = 'scratch operand']
  %s0 = inlined_call_operand.vmem [shape: f32[2,576,27], index: 0, kind: input, shape index: {}]
  %s1 = inlined_call_operand.vmem [shape: f32[27,32], index: 1, kind: input, shape index: {}]
  %s2 = inlined_call_operand.vmem [shape: f32[1,32], index: 2, kind: input, shape index: {}]
  %s3 = inlined_call_operand.vmem [shape: f32[3,3,32,64], index: 3, kind: input, shape index: {}]
  %s4 = inlined_call_operand.vmem [shape: f32[1,64], index: 4, kind: input, shape index: {}]
  %s5 = inlined_call_operand.vmem [shape: f32[3,3,64,128], index: 5, kind: input, shape index: {}]
  %s6 = inlined_call_operand.vmem [shape: f32[1,128], index: 6, kind: input, shape index: {}]
  %s7 = inlined_call_operand.vmem [shape: f32[1,128,512], index: 7, kind: input, shape index: {}]
  %s8 = inlined_call_operand.vmem [shape: f32[1,512], index: 8, kind: input, shape index: {}]
  %s9 = inlined_call_operand.vmem [shape: f32[512,128], index: 9, kind: input, shape index: {}]
  %s10 = inlined_call_operand.vmem [shape: f32[1,128], index: 10, kind: input, shape index: {}]
  %s11 = inlined_call_operand.hbm [shape: f32[2,1,128], index: 11, kind: output, shape index: {}]
  %s12 = sld [smem:[#allocation0]]
  $region77: #{cnn3_forward.1} parent=0
    _
  %s14 = ssub.s32 1, %s12
  %s15 = scalar_select 0, %s14, %s12
  $region1: #{cnn3_forward.1} parent=0
    #allocation6 [shape = 'u8[1024]{0}', space=vmem, size = 0x400, scoped, tag = 'output window, operand 0']
    #allocation7 [shape = 's32[2]{0}', space=sflag, size = 0x8, scoped, tag = 'scoped memory for cnn3_forward.1']
    %16 = vsyncpa [#allocation7], 0
    %s17 = scalar_lea.sflag [#allocation7], 1
    %18 = vsyncpa %s17, 0
    loop: start=0, step=1, limit=4
    $region2: #{cnn3_forward.1} parent=1 // loop_pre_header
      _
    $region3: #{cnn3_forward.1} parent=1 // loop_header
      %s20 = sphi 0, %s24
      %p21 = scmp.ge.s32.totalorder %s20, 4
      %s30 = sphi 0, %s32
      %s33 = sphi 0, %s30
      %s34 = sphi 0, %s33
      %s50 = sphi 0, %s34
      %s54 = sphi 0, %s54
      %s56 = sphi 0, %s54
      %s57 = sphi 0, %s56
      %s71 = sphi 0, %s57
      %s75 = sphi 0, %s75
      %s77 = sphi 0, %s75
      %s78 = sphi 0, %s77
      %s92 = sphi 0, %s78
      %s96 = sphi 0, %s96
      %s98 = sphi 0, %s96
      %s99 = sphi 0, %s98
      %s113 = sphi 0, %s99
      %s117 = sphi 0, %s117
      %s119 = sphi 0, %s117
      %s120 = sphi 0, %s119
      %s134 = sphi 0, %s120
      %s138 = sphi 0, %s138
      %s140 = sphi 0, %s138
      %s141 = sphi 0, %s140
      %s155 = sphi 0, %s141
      %s159 = sphi 0, %s159
      %s161 = sphi 0, %s159
      %s162 = sphi 0, %s161
      %s176 = sphi 0, %s162
      %s180 = sphi 0, %s180
      %s182 = sphi 0, %s180
      %s183 = sphi 0, %s182
      %s197 = sphi 0, %s183
      %s201 = sphi 0, %s201
      %s203 = sphi 0, %s201
      %s204 = sphi 0, %s203
      %s218 = sphi 0, %s204
      %s222 = sphi 0, %s222
      %s224 = sphi 0, %s222
      %s225 = sphi 0, %s224
      %s239 = sphi 0, %s225
      %s243 = sphi 0, %s243
      %s245 = sphi 0, %s243
      %s246 = sphi 0, %s245
      %s260 = sphi 0, %s246
      %s266 = sphi 0, %s268
      %s269 = sphi 0, %s266
      %s270 = sphi 0, %s269
      %s286 = sphi 0, %s270
    $region4: #{cnn3_forward.1} parent=1 // loop_header_branch
      %23 = sbr.rel (%p21) target = $region8
    $region5: #{cnn3_forward.1} parent=1 // loop_body
      %s25 = ssub.s32 %s20, 1
      %s26 = ssub.s32 %s20, 2
      %s27 = sadd.s32 %s20, 1
      %s28 = ssub.s32 %s20, %s27
      %p29 = scmp.eq.s32.totalorder %s28, 0
      %s31 = sadd.s32 %s30, 1
      %s32 = scalar_select %p29, %s30, %s31
      %p35 = pneg %p29
      %p36 = scmp.eq.s32.totalorder %s20, 1
      %p37 = por %p35, %p36
      %p38 = scmp.ne.s32.totalorder %s30, %s33
      %p39 = scmp.eq.s32.totalorder %s20, 0
      %p40 = por %p38, %p39
      %p41 = scmp.ne.s32.totalorder %s30, %s33
      %p42 = scmp.eq.s32.totalorder %s25, 1
      %p43 = por %p41, %p42
      %p44 = scmp.ne.s32.totalorder %s33, %s34
      %p45 = scmp.eq.s32.totalorder %s25, 0
      %p46 = por %p44, %p45
      %p47 = scmp.ne.s32.totalorder %s33, %s34
      %p48 = scmp.eq.s32.totalorder %s26, 1
      %p49 = por %p47, %p48
      %p51 = scmp.ne.s32.totalorder %s34, %s50
      %p52 = scmp.eq.s32.totalorder %s26, 0
      %p53 = por %p51, %p52
      %s55 = sadd.s32 %s54, 1
      %p58 = scmp.eq.s32.totalorder %s20, 1
      %p59 = scmp.ne.s32.totalorder %s54, %s56
      %p60 = scmp.eq.s32.totalorder %s20, 0
      %p61 = por %p59, %p60
      %p62 = scmp.ne.s32.totalorder %s54, %s56
      %p63 = scmp.eq.s32.totalorder %s25, 1
      %p64 = por %p62, %p63
      %p65 = scmp.ne.s32.totalorder %s56, %s57
      %p66 = scmp.eq.s32.totalorder %s25, 0
      %p67 = por %p65, %p66
      %p68 = scmp.ne.s32.totalorder %s56, %s57
      %p69 = scmp.eq.s32.totalorder %s26, 1
      %p70 = por %p68, %p69
      %p72 = scmp.ne.s32.totalorder %s57, %s71
      %p73 = scmp.eq.s32.totalorder %s26, 0
      %p74 = por %p72, %p73
      %s76 = sadd.s32 %s75, 1
      %p79 = scmp.eq.s32.totalorder %s20, 1
      %p80 = scmp.ne.s32.totalorder %s75, %s77
      %p81 = scmp.eq.s32.totalorder %s20, 0
      %p82 = por %p80, %p81
      %p83 = scmp.ne.s32.totalorder %s75, %s77
      %p84 = scmp.eq.s32.totalorder %s25, 1
      %p85 = por %p83, %p84
      %p86 = scmp.ne.s32.totalorder %s77, %s78
      %p87 = scmp.eq.s32.totalorder %s25, 0
      %p88 = por %p86, %p87
      %p89 = scmp.ne.s32.totalorder %s77, %s78
      %p90 = scmp.eq.s32.totalorder %s26, 1
      %p91 = por %p89, %p90
      %p93 = scmp.ne.s32.totalorder %s78, %s92
      %p94 = scmp.eq.s32.totalorder %s26, 0
      %p95 = por %p93, %p94
      %s97 = sadd.s32 %s96, 1
      %p100 = scmp.eq.s32.totalorder %s20, 1
      %p101 = scmp.ne.s32.totalorder %s96, %s98
      %p102 = scmp.eq.s32.totalorder %s20, 0
      %p103 = por %p101, %p102
      %p104 = scmp.ne.s32.totalorder %s96, %s98
      %p105 = scmp.eq.s32.totalorder %s25, 1
      %p106 = por %p104, %p105
      %p107 = scmp.ne.s32.totalorder %s98, %s99
      %p108 = scmp.eq.s32.totalorder %s25, 0
      %p109 = por %p107, %p108
      %p110 = scmp.ne.s32.totalorder %s98, %s99
      %p111 = scmp.eq.s32.totalorder %s26, 1
      %p112 = por %p110, %p111
      %p114 = scmp.ne.s32.totalorder %s99, %s113
      %p115 = scmp.eq.s32.totalorder %s26, 0
      %p116 = por %p114, %p115
      %s118 = sadd.s32 %s117, 1
      %p121 = scmp.eq.s32.totalorder %s20, 1
      %p122 = scmp.ne.s32.totalorder %s117, %s119
      %p123 = scmp.eq.s32.totalorder %s20, 0
      %p124 = por %p122, %p123
      %p125 = scmp.ne.s32.totalorder %s117, %s119
      %p126 = scmp.eq.s32.totalorder %s25, 1
      %p127 = por %p125, %p126
      %p128 = scmp.ne.s32.totalorder %s119, %s120
      %p129 = scmp.eq.s32.totalorder %s25, 0
      %p130 = por %p128, %p129
      %p131 = scmp.ne.s32.totalorder %s119, %s120
      %p132 = scmp.eq.s32.totalorder %s26, 1
      %p133 = por %p131, %p132
      %p135 = scmp.ne.s32.totalorder %s120, %s134
      %p136 = scmp.eq.s32.totalorder %s26, 0
      %p137 = por %p135, %p136
      %s139 = sadd.s32 %s138, 1
      %p142 = scmp.eq.s32.totalorder %s20, 1
      %p143 = scmp.ne.s32.totalorder %s138, %s140
      %p144 = scmp.eq.s32.totalorder %s20, 0
      %p145 = por %p143, %p144
      %p146 = scmp.ne.s32.totalorder %s138, %s140
      %p147 = scmp.eq.s32.totalorder %s25, 1
      %p148 = por %p146, %p147
      %p149 = scmp.ne.s32.totalorder %s140, %s141
      %p150 = scmp.eq.s32.totalorder %s25, 0
      %p151 = por %p149, %p150
      %p152 = scmp.ne.s32.totalorder %s140, %s141
      %p153 = scmp.eq.s32.totalorder %s26, 1
      %p154 = por %p152, %p153
      %p156 = scmp.ne.s32.totalorder %s141, %s155
      %p157 = scmp.eq.s32.totalorder %s26, 0
      %p158 = por %p156, %p157
      %s160 = sadd.s32 %s159, 1
      %p163 = scmp.eq.s32.totalorder %s20, 1
      %p164 = scmp.ne.s32.totalorder %s159, %s161
      %p165 = scmp.eq.s32.totalorder %s20, 0
      %p166 = por %p164, %p165
      %p167 = scmp.ne.s32.totalorder %s159, %s161
      %p168 = scmp.eq.s32.totalorder %s25, 1
      %p169 = por %p167, %p168
      %p170 = scmp.ne.s32.totalorder %s161, %s162
      %p171 = scmp.eq.s32.totalorder %s25, 0
      %p172 = por %p170, %p171
      %p173 = scmp.ne.s32.totalorder %s161, %s162
      %p174 = scmp.eq.s32.totalorder %s26, 1
      %p175 = por %p173, %p174
      %p177 = scmp.ne.s32.totalorder %s162, %s176
      %p178 = scmp.eq.s32.totalorder %s26, 0
      %p179 = por %p177, %p178
      %s181 = sadd.s32 %s180, 1
      %p184 = scmp.eq.s32.totalorder %s20, 1
      %p185 = scmp.ne.s32.totalorder %s180, %s182
      %p186 = scmp.eq.s32.totalorder %s20, 0
      %p187 = por %p185, %p186
      %p188 = scmp.ne.s32.totalorder %s180, %s182
      %p189 = scmp.eq.s32.totalorder %s25, 1
      %p190 = por %p188, %p189
      %p191 = scmp.ne.s32.totalorder %s182, %s183
      %p192 = scmp.eq.s32.totalorder %s25, 0
      %p193 = por %p191, %p192
      %p194 = scmp.ne.s32.totalorder %s182, %s183
      %p195 = scmp.eq.s32.totalorder %s26, 1
      %p196 = por %p194, %p195
      %p198 = scmp.ne.s32.totalorder %s183, %s197
      %p199 = scmp.eq.s32.totalorder %s26, 0
      %p200 = por %p198, %p199
      %s202 = sadd.s32 %s201, 1
      %p205 = scmp.eq.s32.totalorder %s20, 1
      %p206 = scmp.ne.s32.totalorder %s201, %s203
      %p207 = scmp.eq.s32.totalorder %s20, 0
      %p208 = por %p206, %p207
      %p209 = scmp.ne.s32.totalorder %s201, %s203
      %p210 = scmp.eq.s32.totalorder %s25, 1
      %p211 = por %p209, %p210
      %p212 = scmp.ne.s32.totalorder %s203, %s204
      %p213 = scmp.eq.s32.totalorder %s25, 0
      %p214 = por %p212, %p213
      %p215 = scmp.ne.s32.totalorder %s203, %s204
      %p216 = scmp.eq.s32.totalorder %s26, 1
      %p217 = por %p215, %p216
      %p219 = scmp.ne.s32.totalorder %s204, %s218
      %p220 = scmp.eq.s32.totalorder %s26, 0
      %p221 = por %p219, %p220
      %s223 = sadd.s32 %s222, 1
      %p226 = scmp.eq.s32.totalorder %s20, 1
      %p227 = scmp.ne.s32.totalorder %s222, %s224
      %p228 = scmp.eq.s32.totalorder %s20, 0
      %p229 = por %p227, %p228
      %p230 = scmp.ne.s32.totalorder %s222, %s224
      %p231 = scmp.eq.s32.totalorder %s25, 1
      %p232 = por %p230, %p231
      %p233 = scmp.ne.s32.totalorder %s224, %s225
      %p234 = scmp.eq.s32.totalorder %s25, 0
      %p235 = por %p233, %p234
      %p236 = scmp.ne.s32.totalorder %s224, %s225
      %p237 = scmp.eq.s32.totalorder %s26, 1
      %p238 = por %p236, %p237
      %p240 = scmp.ne.s32.totalorder %s225, %s239
      %p241 = scmp.eq.s32.totalorder %s26, 0
      %p242 = por %p240, %p241
      %s244 = sadd.s32 %s243, 1
      %p247 = scmp.eq.s32.totalorder %s20, 1
      %p248 = scmp.ne.s32.totalorder %s243, %s245
      %p249 = scmp.eq.s32.totalorder %s20, 0
      %p250 = por %p248, %p249
      %p251 = scmp.ne.s32.totalorder %s243, %s245
      %p252 = scmp.eq.s32.totalorder %s25, 1
      %p253 = por %p251, %p252
      %p254 = scmp.ne.s32.totalorder %s245, %s246
      %p255 = scmp.eq.s32.totalorder %s25, 0
      %p256 = por %p254, %p255
      %p257 = scmp.ne.s32.totalorder %s245, %s246
      %p258 = scmp.eq.s32.totalorder %s26, 1
      %p259 = por %p257, %p258
      %p261 = scmp.ne.s32.totalorder %s246, %s260
      %p262 = scmp.eq.s32.totalorder %s26, 0
      %p263 = por %p261, %p262
      %s264 = ssub.s32 %s20, %s27
      %p265 = scmp.eq.s32.totalorder %s264, 0
      %s267 = sadd.s32 %s266, 1
      %s268 = scalar_select %p265, %s266, %s267
      %p271 = pneg %p265
      %p272 = scmp.eq.s32.totalorder %s20, 1
      %p273 = por %p271, %p272
      %p274 = scmp.ne.s32.totalorder %s266, %s269
      %p275 = scmp.eq.s32.totalorder %s20, 0
      %p276 = por %p274, %p275
      %p277 = scmp.ne.s32.totalorder %s266, %s269
      %p278 = scmp.eq.s32.totalorder %s25, 1
      %p279 = por %p277, %p278
      %p280 = scmp.ne.s32.totalorder %s269, %s270
      %p281 = scmp.eq.s32.totalorder %s25, 0
      %p282 = por %p280, %p281
      %p283 = scmp.ne.s32.totalorder %s269, %s270
      %p284 = scmp.eq.s32.totalorder %s26, 1
      %p285 = por %p283, %p284
      %p287 = scmp.ne.s32.totalorder %s270, %s286
      %p288 = scmp.eq.s32.totalorder %s26, 0
      %p289 = por %p287, %p288
      %p290 = scmp.le.s32.totalorder 1, %s20
      %p291 = scmp.lt.s32.totalorder %s20, 3
      %p292 = pnand %p290, %p291
      %p293 = pneg %p292
      // Predicated region
      $region9: #{cnn3_forward.1} parent=5 // pred_check
        _
      $region10: #{cnn3_forward.1} parent=5 // pred_check_branch
        %295 = sbr.rel (%p292) target = $region12
      $region11: #{cnn3_forward.1} parent=5 // pred_region
        %s296 = ssub.s32 %s20, 1
        // Predicated region
        $region13: #{cnn3_forward.1} parent=11 // pred_check
          %p297 = pneg %p67
        $region14: #{cnn3_forward.1} parent=11 // pred_check_branch
          %299 = sbr.rel (%p297) target = $region16
        $region15: #{cnn3_forward.1} parent=11 // pred_region
          _
        $region16: #{cnn3_forward.1} parent=11 // pred_fallthru
          _
        // Predicated region
        $region17: #{cnn3_forward.1} parent=11 // pred_check
          %p300 = pneg %p88
        $region18: #{cnn3_forward.1} parent=11 // pred_check_branch
          %302 = sbr.rel (%p300) target = $region20
        $region19: #{cnn3_forward.1} parent=11 // pred_region
          _
        $region20: #{cnn3_forward.1} parent=11 // pred_fallthru
          _
        // Predicated region
        $region21: #{cnn3_forward.1} parent=11 // pred_check
          %p303 = pneg %p109
        $region22: #{cnn3_forward.1} parent=11 // pred_check_branch
          %305 = sbr.rel (%p303) target = $region24
        $region23: #{cnn3_forward.1} parent=11 // pred_region
          _
        $region24: #{cnn3_forward.1} parent=11 // pred_fallthru
          _
        // Predicated region
        $region25: #{cnn3_forward.1} parent=11 // pred_check
          %p306 = pneg %p130
        $region26: #{cnn3_forward.1} parent=11 // pred_check_branch
          %308 = sbr.rel (%p306) target = $region28
        $region27: #{cnn3_forward.1} parent=11 // pred_region
          _
        $region28: #{cnn3_forward.1} parent=11 // pred_fallthru
          _
        // Predicated region
        $region29: #{cnn3_forward.1} parent=11 // pred_check
          %p309 = pneg %p151
        $region30: #{cnn3_forward.1} parent=11 // pred_check_branch
          %311 = sbr.rel (%p309) target = $region32
        $region31: #{cnn3_forward.1} parent=11 // pred_region
          _
        $region32: #{cnn3_forward.1} parent=11 // pred_fallthru
          _
        // Predicated region
        $region33: #{cnn3_forward.1} parent=11 // pred_check
          %p312 = pneg %p172
        $region34: #{cnn3_forward.1} parent=11 // pred_check_branch
          %314 = sbr.rel (%p312) target = $region36
        $region35: #{cnn3_forward.1} parent=11 // pred_region
          _
        $region36: #{cnn3_forward.1} parent=11 // pred_fallthru
          _
        // Predicated region
        $region37: #{cnn3_forward.1} parent=11 // pred_check
          %p315 = pneg %p193
        $region38: #{cnn3_forward.1} parent=11 // pred_check_branch
          %317 = sbr.rel (%p315) target = $region40
        $region39: #{cnn3_forward.1} parent=11 // pred_region
          _
        $region40: #{cnn3_forward.1} parent=11 // pred_fallthru
          _
        // Predicated region
        $region41: #{cnn3_forward.1} parent=11 // pred_check
          %p318 = pneg %p214
        $region42: #{cnn3_forward.1} parent=11 // pred_check_branch
          %320 = sbr.rel (%p318) target = $region44
        $region43: #{cnn3_forward.1} parent=11 // pred_region
          _
        $region44: #{cnn3_forward.1} parent=11 // pred_fallthru
          _
        // Predicated region
        $region45: #{cnn3_forward.1} parent=11 // pred_check
          %p321 = pneg %p235
        $region46: #{cnn3_forward.1} parent=11 // pred_check_branch
          %323 = sbr.rel (%p321) target = $region48
        $region47: #{cnn3_forward.1} parent=11 // pred_region
          _
        $region48: #{cnn3_forward.1} parent=11 // pred_fallthru
          _
        // Predicated region
        $region49: #{cnn3_forward.1} parent=11 // pred_check
          %p324 = pneg %p256
        $region50: #{cnn3_forward.1} parent=11 // pred_check_branch
          %326 = sbr.rel (%p324) target = $region52
        $region51: #{cnn3_forward.1} parent=11 // pred_region
          _
        $region52: #{cnn3_forward.1} parent=11 // pred_fallthru
          _
      $region12: #{cnn3_forward.1} parent=5 // pred_fallthru
        _
      %p327 = scmp.lt.s32.totalorder %s20, 2
      // Predicated region
      $region53: #{cnn3_forward.1} parent=5 // pred_check
        %p328 = pneg %p327
      $region54: #{cnn3_forward.1} parent=5 // pred_check_branch
        %330 = sbr.rel (%p328) target = $region56
      $region55: #{cnn3_forward.1} parent=5 // pred_region
        // Predicated region
        $region57: #{cnn3_forward.1} parent=55 // pred_check
          %p331 = pneg %p40
        $region58: #{cnn3_forward.1} parent=55 // pred_check_branch
          %333 = sbr.rel (%p331) target = $region60
        $region59: #{cnn3_forward.1} parent=55 // pred_region
          %p334 = scmp.lt.s32.totalorder %s20, 1
          %s335 = scalar_select %p334, %s20, 1
          %s336 = smul.addr %s335, 72
          %s337 = smul.addr %s336, 8
          %s338 = scalar_lea.vmem %s0, %s337
        $region60: #{cnn3_forward.1} parent=55 // pred_fallthru
          _
      $region56: #{cnn3_forward.1} parent=5 // pred_fallthru
        _
      %p339 = scmp.le.s32.totalorder 1, %s20
      %p340 = scmp.lt.s32.totalorder %s20, 3
      %p341 = pnand %p339, %p340
      %p342 = pneg %p341
      // Predicated region
      $region61: #{cnn3_forward.1} parent=5 // pred_check
        _
      $region62: #{cnn3_forward.1} parent=5 // pred_check_branch
        %344 = sbr.rel (%p341) target = $region64
      $region63: #{cnn3_forward.1} parent=5 // pred_region
        %s345 = ssub.s32 %s20, 1
        %p346 = scmp.lt.s32.totalorder %s25, 1
        %s347 = scalar_select %p346, %s25, 1
        %s348 = smul.addr %s347, 72
        %s349 = smul.addr %s348, 8
        %s350 = scalar_lea.vmem %s0, %s349
        %p351 = pneg %p46
        %p352 = pneg %p43
        %p353 = pneg %p67
        %p354 = pneg %p64
        %p355 = pneg %p88
        %p356 = pneg %p85
        %p357 = pneg %p109
        %p358 = pneg %p106
        %p359 = pneg %p130
        %p360 = pneg %p127
        %p361 = pneg %p151
        %p362 = pneg %p148
        %p363 = pneg %p172
        %p364 = pneg %p169
        %p365 = pneg %p193
        %p366 = pneg %p190
        %p367 = pneg %p214
        %p368 = pneg %p211
        %p369 = pneg %p235
        %p370 = pneg %p232
        %p371 = pneg %p256
        %p372 = pneg %p253
        %p373 = pneg %p282
        %p374 = pneg %p279
        %s375 = sand.u32 %s269, 1
        %s376 = scalar_lea.sflag [#allocation7], %s375
        %s377 = sand.u32 %s269, 1
        %s378 = scalar_lea.vmem [#allocation6], %s377
        %p379 = scmp.lt.s32.totalorder %s25, 1
        %s380 = scalar_select %p379, %s25, 1
        %s381 = smul.addr %s380, 72
        %s382 = smul.addr %s381, 8
        %s383 = scalar_lea.vmem %s0, %s382
        %vm384 = vcmask 261120
        %385 = vst.msk [vmem:[#allocation2] sm:$0xff] %vm384, 0.0
        %386 = vst.msk [vmem:[#allocation2 + $0x8] sm:$0xff] %vm384, 0.0
        %387 = vst.msk [vmem:[#allocation2 + $0x10] sm:$0xff] %vm384, 0.0
        %388 = vst.msk [vmem:[#allocation2 + $0x18] sm:$0xff] %vm384, 0.0
        %389 = vst.msk [vmem:[#allocation2 + $0x20] sm:$0xff] %vm384, 0.0
        %390 = vst.msk [vmem:[#allocation2 + $0x28] sm:$0xff] %vm384, 0.0
        %391 = vst.msk [vmem:[#allocation2 + $0x30] sm:$0xff] %vm384, 0.0
        %392 = vst.msk [vmem:[#allocation2 + $0x38] sm:$0xff] %vm384, 0.0
        %393 = vst.msk [vmem:[#allocation2 + $0x40] sm:$0xff] %vm384, 0.0
        %394 = vst.msk [vmem:[#allocation2 + $0x48] sm:$0xff] %vm384, 0.0
        %395 = vst.msk [vmem:[#allocation2 + $0x50] sm:$0xff] %vm384, 0.0
        %396 = vst.msk [vmem:[#allocation2 + $0x58] sm:$0xff] %vm384, 0.0
        %397 = vst.msk [vmem:[#allocation2 + $0x60] sm:$0xff] %vm384, 0.0
        %398 = vst.msk [vmem:[#allocation2 + $0x68] sm:$0xff] %vm384, 0.0
        %399 = vst.msk [vmem:[#allocation2 + $0x70] sm:$0xff] %vm384, 0.0
        %400 = vst.msk [vmem:[#allocation2 + $0x78] sm:$0xff] %vm384, 0.0
        %401 = vst.msk [vmem:[#allocation2 + $0x80] sm:$0xff] %vm384, 0.0
        %402 = vst.msk [vmem:[#allocation2 + $0x88] sm:$0xff] %vm384, 0.0
        %403 = vst.msk [vmem:[#allocation2 + $0x90] sm:$0xff] %vm384, 0.0
        %404 = vst.msk [vmem:[#allocation2 + $0x98] sm:$0xff] %vm384, 0.0
        %405 = vst.msk [vmem:[#allocation2 + $0xa0] sm:$0xff] %vm384, 0.0
        %406 = vst.msk [vmem:[#allocation2 + $0xa8] sm:$0xff] %vm384, 0.0
        %407 = vst.msk [vmem:[#allocation2 + $0xb0] sm:$0xff] %vm384, 0.0
        %408 = vst.msk [vmem:[#allocation2 + $0xb8] sm:$0xff] %vm384, 0.0
        %409 = vst.msk [vmem:[#allocation2 + $0xc0] sm:$0xff] %vm384, 0.0
        %vm410 = vcmask 523264
        %411 = vst.msk [vmem:[#allocation3] sm:$0xff] %vm410, 0.0
        %412 = vst.msk [vmem:[#allocation3 + $0x8] sm:$0xff] %vm410, 0.0
        %413 = vst.msk [vmem:[#allocation3 + $0x10] sm:$0xff] %vm410, 0.0
        %414 = vst.msk [vmem:[#allocation3 + $0x18] sm:$0xff] %vm410, 0.0
        %415 = vst.msk [vmem:[#allocation3 + $0x20] sm:$0xff] %vm410, 0.0
        %416 = vst.msk [vmem:[#allocation3 + $0x28] sm:$0xff] %vm410, 0.0
        %v417 = vld [vmem:[%s383] sm:$0xff]
        %v418 = vld [vmem:[%s383 + $0x8] sm:$0xff]
        %v419 = vld [vmem:[%s383 + $0x10] sm:$0xff]
        %v420 = vld [vmem:[%s383 + $0x18] sm:$0xff]
        %v421 = vld [vmem:[%s383 + $0x20] sm:$0xff]
        %v422 = vld [vmem:[%s383 + $0x28] sm:$0xff]
        %v423 = vld [vmem:[%s383 + $0x30] sm:$0xff]
        %v424 = vld [vmem:[%s383 + $0x38] sm:$0xff]
        %v425 = vld [vmem:[%s383 + $0x40] sm:$0xff]
        %v426 = vld [vmem:[%s383 + $0x48] sm:$0xff]
        %v427 = vld [vmem:[%s383 + $0x50] sm:$0xff]
        %v428 = vld [vmem:[%s383 + $0x58] sm:$0xff]
        %v429 = vld [vmem:[%s383 + $0x60] sm:$0xff]
        %v430 = vld [vmem:[%s383 + $0x68] sm:$0xff]
        %v431 = vld [vmem:[%s383 + $0x70] sm:$0xff]
        %v432 = vld [vmem:[%s383 + $0x78] sm:$0xff]
        %v433 = vld [vmem:[%s383 + $0x80] sm:$0xff]
        %v434 = vld [vmem:[%s383 + $0x88] sm:$0xff]
        %v435 = vld [vmem:[%s383 + $0x90] sm:$0xff]
        %v436 = vld [vmem:[%s383 + $0x98] sm:$0xff]
        %v437 = vld [vmem:[%s383 + $0xa0] sm:$0xff]
        %v438 = vld [vmem:[%s383 + $0xa8] sm:$0xff]
        %v439 = vld [vmem:[%s383 + $0xb0] sm:$0xff]
        %v440 = vld [vmem:[%s383 + $0xb8] sm:$0xff]
        %v441 = vld [vmem:[%s383 + $0xc0] sm:$0xff]
        %v442 = vld [vmem:[%s383 + $0xc8] sm:$0xff]
        %v443 = vld [vmem:[%s383 + $0xd0] sm:$0xff]
        %v444 = vld [vmem:[%s383 + $0xd8] sm:$0xff]
        %v445 = vld [vmem:[%s383 + $0xe0] sm:$0xff]
        %v446 = vld [vmem:[%s383 + $0xe8] sm:$0xff]
        %v447 = vld [vmem:[%s383 + $0xf0] sm:$0xff]
        %v448 = vld [vmem:[%s383 + $0xf8] sm:$0xff]
        %v449 = vld [vmem:[%s383 + $0x100] sm:$0xff]
        %v450 = vld [vmem:[%s383 + $0x108] sm:$0xff]
        %v451 = vld [vmem:[%s383 + $0x110] sm:$0xff]
        %v452 = vld [vmem:[%s383 + $0x118] sm:$0xff]
        %v453 = vld [vmem:[%s383 + $0x120] sm:$0xff]
        %v454 = vld [vmem:[%s383 + $0x128] sm:$0xff]
        %v455 = vld [vmem:[%s383 + $0x130] sm:$0xff]
        %v456 = vld [vmem:[%s383 + $0x138] sm:$0xff]
        %v457 = vld [vmem:[%s383 + $0x140] sm:$0xff]
        %v458 = vld [vmem:[%s383 + $0x148] sm:$0xff]
        %v459 = vld [vmem:[%s383 + $0x150] sm:$0xff]
        %v460 = vld [vmem:[%s383 + $0x158] sm:$0xff]
        %v461 = vld [vmem:[%s383 + $0x160] sm:$0xff]
        %v462 = vld [vmem:[%s383 + $0x168] sm:$0xff]
        %v463 = vld [vmem:[%s383 + $0x170] sm:$0xff]
        %v464 = vld [vmem:[%s383 + $0x178] sm:$0xff]
        %v465 = vld [vmem:[%s383 + $0x180] sm:$0xff]
        %v466 = vld [vmem:[%s383 + $0x188] sm:$0xff]
        %v467 = vld [vmem:[%s383 + $0x190] sm:$0xff]
        %v468 = vld [vmem:[%s383 + $0x198] sm:$0xff]
        %v469 = vld [vmem:[%s383 + $0x1a0] sm:$0xff]
        %v470 = vld [vmem:[%s383 + $0x1a8] sm:$0xff]
        %v471 = vld [vmem:[%s383 + $0x1b0] sm:$0xff]
        %v472 = vld [vmem:[%s383 + $0x1b8] sm:$0xff]
        %v473 = vld [vmem:[%s383 + $0x1c0] sm:$0xff]
        %v474 = vld [vmem:[%s383 + $0x1c8] sm:$0xff]
        %v475 = vld [vmem:[%s383 + $0x1d0] sm:$0xff]
        %v476 = vld [vmem:[%s383 + $0x1d8] sm:$0xff]
        %v477 = vld [vmem:[%s383 + $0x1e0] sm:$0xff]
        %v478 = vld [vmem:[%s383 + $0x1e8] sm:$0xff]
        %v479 = vld [vmem:[%s383 + $0x1f0] sm:$0xff]
        %v480 = vld [vmem:[%s383 + $0x1f8] sm:$0xff]
        %v481 = vld [vmem:[%s383 + $0x200] sm:$0xff]
        %v482 = vld [vmem:[%s383 + $0x208] sm:$0xff]
        %v483 = vld [vmem:[%s383 + $0x210] sm:$0xff]
        %v484 = vld [vmem:[%s383 + $0x218] sm:$0xff]
        %v485 = vld [vmem:[%s383 + $0x220] sm:$0xff]
        %v486 = vld [vmem:[%s383 + $0x228] sm:$0xff]
        %v487 = vld [vmem:[%s383 + $0x230] sm:$0xff]
        %v488 = vld [vmem:[%s383 + $0x238] sm:$0xff]
        %v489 = vld [vmem:[%s1] sm:$0xff]
        %v490 = vld [vmem:[%s1 + $0x8] sm:$0xff]
        %v491 = vld [vmem:[%s1 + $0x10] sm:$0xff]
        %v492 = vld [vmem:[%s1 + $0x18] sm:$0x7]
        %v493 = vld [vmem:[%s2] sm:$0x1]
        %v495 = vlaneseq
        %v496 = vshrl.u32 %v495, 7
        %v497 = vsub.s32 0, %v496
        %v498 = vrot.slane %v493, %v497
        %vm500 = vcmask 220160
        %v502 = vsel %vm500, %v417, 0
        %v505 = vsel %vm500, %v418, 0
        %v508 = vsel %vm500, %v419, 0
        %v511 = vsel %vm500, %v420, 0
        %v514 = vsel %vm500, %v421, 0
        %v517 = vsel %vm500, %v422, 0
        %v520 = vsel %vm500, %v423, 0
        %v523 = vsel %vm500, %v424, 0
        %v526 = vsel %vm500, %v425, 0
        %v529 = vsel %vm500, %v426, 0
        %v532 = vsel %vm500, %v427, 0
        %v535 = vsel %vm500, %v428, 0
        %v538 = vsel %vm500, %v429, 0
        %v541 = vsel %vm500, %v430, 0
        %v544 = vsel %vm500, %v431, 0
        %v547 = vsel %vm500, %v432, 0
        %v550 = vsel %vm500, %v433, 0
        %v553 = vsel %vm500, %v434, 0
        %v556 = vsel %vm500, %v435, 0
        %v559 = vsel %vm500, %v436, 0
        %v562 = vsel %vm500, %v437, 0
        %v565 = vsel %vm500, %v438, 0
        %v568 = vsel %vm500, %v439, 0
        %v571 = vsel %vm500, %v440, 0
        %v574 = vsel %vm500, %v441, 0
        %v577 = vsel %vm500, %v442, 0
        %v580 = vsel %vm500, %v443, 0
        %v583 = vsel %vm500, %v444, 0
        %v586 = vsel %vm500, %v445, 0
        %v589 = vsel %vm500, %v446, 0
        %v592 = vsel %vm500, %v447, 0
        %v595 = vsel %vm500, %v448, 0
        %v598 = vsel %vm500, %v449, 0
        %v601 = vsel %vm500, %v450, 0
        %v604 = vsel %vm500, %v451, 0
        %v607 = vsel %vm500, %v452, 0
        %v610 = vsel %vm500, %v453, 0
        %v613 = vsel %vm500, %v454, 0
        %v616 = vsel %vm500, %v455, 0
        %v619 = vsel %vm500, %v456, 0
        %v622 = vsel %vm500, %v457, 0
        %v625 = vsel %vm500, %v458, 0
        %v628 = vsel %vm500, %v459, 0
        %v631 = vsel %vm500, %v460, 0
        %v634 = vsel %vm500, %v461, 0
        %v637 = vsel %vm500, %v462, 0
        %v640 = vsel %vm500, %v463, 0
        %v643 = vsel %vm500, %v464, 0
        %v646 = vsel %vm500, %v465, 0
        %v649 = vsel %vm500, %v466, 0
        %v652 = vsel %vm500, %v467, 0
        %v655 = vsel %vm500, %v468, 0
        %v658 = vsel %vm500, %v469, 0
        %v661 = vsel %vm500, %v470, 0
        %v664 = vsel %vm500, %v471, 0
        %v667 = vsel %vm500, %v472, 0
        %v670 = vsel %vm500, %v473, 0
        %v673 = vsel %vm500, %v474, 0
        %v676 = vsel %vm500, %v475, 0
        %v679 = vsel %vm500, %v476, 0
        %v682 = vsel %vm500, %v477, 0
        %v685 = vsel %vm500, %v478, 0
        %v688 = vsel %vm500, %v479, 0
        %v691 = vsel %vm500, %v480, 0
        %v694 = vsel %vm500, %v481, 0
        %v697 = vsel %vm500, %v482, 0
        %v700 = vsel %vm500, %v483, 0
        %v703 = vsel %vm500, %v484, 0
        %v706 = vsel %vm500, %v485, 0
        %v709 = vsel %vm500, %v486, 0
        %v712 = vsel %vm500, %v487, 0
        %v715 = vsel %vm500, %v488, 0
        %vm717 = vcmask 1042432
        %v719 = vsel %vm717, %v492, 0
        %721 = vmatprep.subr.mxu0 0.0
        %722 = vmatpush1.msra.mxu0 %v489
        %723 = vmatprep.subr.mxu0 0.0
        %724 = vmatpush1.msra.mxu0 %v490
        %725 = vmatprep.subr.mxu0 0.0
        %726 = vmatpush1.msra.mxu0 %v491
        %727 = vmatprep.subr.mxu0 0.0
        %728 = vmatpush1.msra.mxu0 %v719
        %729 = vmatprep.subr.mxu0 0.0
        %730 = vmatpush1.msra.mxu0 0.0
        %731 = vmatprep.subr.mxu0 0.0
        %732 = vmatpush1.msra.mxu0 0.0
        %733 = vmatprep.subr.mxu0 0.0
        %734 = vmatpush1.msra.mxu0 0.0
        %735 = vmatprep.subr.mxu0 0.0
        %736 = vmatpush1.msra.mxu0 0.0
        %737 = vmatprep.subr.mxu0 0.0
        %738 = vmatpush1.msra.mxu0 0.0
        %739 = vmatprep.subr.mxu0 0.0
        %740 = vmatpush1.msra.mxu0 0.0
        %741 = vmatprep.subr.mxu0 0.0
        %742 = vmatpush1.msra.mxu0 0.0
        %743 = vmatprep.subr.mxu0 0.0
        %744 = vmatpush1.msra.mxu0 0.0
        %745 = vmatprep.subr.mxu0 0.0
        %746 = vmatpush1.msra.mxu0 0.0
        %747 = vmatprep.subr.mxu0 0.0
        %748 = vmatpush1.msra.mxu0 0.0
        %749 = vmatprep.subr.mxu0 0.0
        %750 = vmatpush1.msra.mxu0 0.0
        %751 = vmatprep.subr.mxu0 0.0
        %752 = vmatpush1.msra.mxu0 0.0
        %753 = vmatprep.subr.mxu0 0.0
        %754 = vmatpush1.msra.mxu0 0.0
        %755 = vmatprep.subr.mxu0 0.0
        %756 = vmatpush1.msra.mxu0 0.0
        %757 = vmatprep.subr.mxu0 0.0
        %758 = vmatpush1.msra.mxu0 0.0
        %759 = vmatprep.subr.mxu0 0.0
        %760 = vmatpush1.msra.mxu0 0.0
        %761 = vmatprep.subr.mxu0 0.0
        %762 = vmatpush1.msra.mxu0 0.0
        %763 = vmatprep.subr.mxu0 0.0
        %764 = vmatpush1.msra.mxu0 0.0
        %765 = vmatprep.subr.mxu0 0.0
        %766 = vmatpush1.msra.mxu0 0.0
        %767 = vmatprep.subr.mxu0 0.0
        %768 = vmatpush1.msra.mxu0 0.0
        %769 = vmatprep.subr.mxu0 0.0
        %770 = vmatpush1.msra.mxu0 0.0
        %771 = vmatprep.subr.mxu0 0.0
        %772 = vmatpush1.msra.mxu0 0.0
        %773 = vmatprep.subr.mxu0 0.0
        %774 = vmatpush1.msra.mxu0 0.0
        %775 = vmatprep.subr.mxu0 0.0
        %776 = vmatpush1.msra.mxu0 0.0
        %777 = vmatprep.subr.mxu0 0.0
        %778 = vmatpush1.msra.mxu0 0.0
        %779 = vmatprep.subr.mxu0 0.0
        %780 = vmatpush1.msra.mxu0 0.0
        %781 = vmatprep.subr.mxu0 0.0
        %782 = vmatpush1.msra.mxu0 0.0
        %783 = vmatprep.subr.mxu0 0.0
        %784 = vmatpush1.msra.mxu0 0.0
        %785 = vmatprep.mubr.f32.mxu0 0.0
        %786 = vmatmul.mubr.f32.gmra.mrb[0].mxu0 %v502
        %v787 = vpop.f32.mrb[0].mxu0
        %v788 = vadd.f32 %v498, %v787
        %v789 = vpop.f32.mrb[0].mxu0
        %790 = vmatprep.mubr.f32.mxu0 0.0
        %791 = vmatmul.mubr.f32.gmra.mrb[0].mxu0 %v505
        %v792 = vpop.f32.mrb[0].mxu0
        %v793 = vadd.f32 %v498, %v792
        %v794 = vpop.f32.mrb[0].mxu0
        %795 = vmatprep.mubr.f32.mxu0 0.0
        %796 = vmatmul.mubr.f32.gmra.mrb[0].mxu0 %v508
        %v797 = vpop.f32.mrb[0].mxu0
        %v798 = vadd.f32 %v498, %v797
        %v799 = vpop.f32.mrb[0].mxu0
        %800 = vmatprep.mubr.f32.mxu0 0.0
        %801 = vmatmul.mubr.f32.gmra.mrb[0].mxu0 %v511
        %v802 = vpop.f32.mrb[0].mxu0
        %v803 = vadd.f32 %v498, %v802
        %v804 = vpop.f32.mrb[0].mxu0
        %805 = vmatprep.mubr.f32.mxu0 0.0
        %806 = vmatmul.mubr.f32.gmra.mrb[0].mxu0 %v514
        %v807 = vpop.f32.mrb[0].mxu0
        %v808 = vadd.f32 %v498, %v807
        %v809 = vpop.f32.mrb[0].mxu0
        %810 = vmatprep.mubr.f32.mxu0 0.0
        %811 = vmatmul.mubr.f32.gmra.mrb[0].mxu0 %v517
        %v812 = vpop.f32.mrb[0].mxu0
        %v813 = vadd.f32 %v498, %v812
        %v814 = vpop.f32.mrb[0].mxu0
        %815 = vmatprep.mubr.f32.mxu0 0.0
        %816 = vmatmul.mubr.f32.gmra.mrb[0].mxu0 %v520
        %v817 = vpop.f32.mrb[0].mxu0
        %v818 = vadd.f32 %v498, %v817
        %v819 = vpop.f32.mrb[0].mxu0
        %820 = vmatprep.mubr.f32.mxu0 0.0
        %821 = vmatmul.mubr.f32.gmra.mrb[0].mxu0 %v523
        %v822 = vpop.f32.mrb[0].mxu0
        %v823 = vadd.f32 %v498, %v822
        %v824 = vpop.f32.mrb[0].mxu0
        %825 = vmatprep.mubr.f32.mxu0 0.0
        %826 = vmatmul.mubr.f32.gmra.mrb[0].mxu0 %v526
        %v827 = vpop.f32.mrb[0].mxu0
        %v828 = vadd.f32 %v498, %v827
        %v829 = vpop.f32.mrb[0].mxu0
        %830 = vmatprep.mubr.f32.mxu0 0.0
        %831 = vmatmul.mubr.f32.gmra.mrb[0].mxu0 %v529
        %v832 = vpop.f32.mrb[0].mxu0
        %v833 = vadd.f32 %v498, %v832
        %v834 = vpop.f32.mrb[0].mxu0
        %835 = vmatprep.mubr.f32.mxu0 0.0
        %836 = vmatmul.mubr.f32.gmra.mrb[0].mxu0 %v532
        %v837 = vpop.f32.mrb[0].mxu0
        %v838 = vadd.f32 %v498, %v837
        %v839 = vpop.f32.mrb[0].mxu0
        %840 = vmatprep.mubr.f32.mxu0 0.0
        %841 = vmatmul.mubr.f32.gmra.mrb[0].mxu0 %v535
        %v842 = vpop.f32.mrb[0].mxu0
        %v843 = vadd.f32 %v498, %v842
        %v844 = vpop.f32.mrb[0].mxu0
        %845 = vmatprep.mubr.f32.mxu0 0.0
        %846 = vmatmul.mubr.f32.gmra.mrb[0].mxu0 %v538
        %v847 = vpop.f32.mrb[0].mxu0
        %v848 = vadd.f32 %v498, %v847
        %v849 = vpop.f32.mrb[0].mxu0
        %850 = vmatprep.mubr.f32.mxu0 0.0
        %851 = vmatmul.mubr.f32.gmra.mrb[0].mxu0 %v541
        %v852 = vpop.f32.mrb[0].mxu0
        %v853 = vadd.f32 %v498, %v852
        %v854 = vpop.f32.mrb[0].mxu0
        %855 = vmatprep.mubr.f32.mxu0 0.0
        %856 = vmatmul.mubr.f32.gmra.mrb[0].mxu0 %v544
        %v857 = vpop.f32.mrb[0].mxu0
        %v858 = vadd.f32 %v498, %v857
        %v859 = vpop.f32.mrb[0].mxu0
        %860 = vmatprep.mubr.f32.mxu0 0.0
        %861 = vmatmul.mubr.f32.gmra.mrb[0].mxu0 %v547
        %v862 = vpop.f32.mrb[0].mxu0
        %v863 = vadd.f32 %v498, %v862
        %v864 = vpop.f32.mrb[0].mxu0
        %865 = vmatprep.mubr.f32.mxu0 0.0
        %866 = vmatmul.mubr.f32.gmra.mrb[0].mxu0 %v550
        %v867 = vpop.f32.mrb[0].mxu0
        %v868 = vadd.f32 %v498, %v867
        %v869 = vpop.f32.mrb[0].mxu0
        %870 = vmatprep.mubr.f32.mxu0 0.0
        %871 = vmatmul.mubr.f32.gmra.mrb[0].mxu0 %v553
        %v872 = vpop.f32.mrb[0].mxu0
        %v873 = vadd.f32 %v498, %v872
        %v874 = vpop.f32.mrb[0].mxu0
        %875 = vmatprep.mubr.f32.mxu0 0.0
        %876 = vmatmul.mubr.f32.gmra.mrb[0].mxu0 %v556
        %v877 = vpop.f32.mrb[0].mxu0
        %v878 = vadd.f32 %v498, %v877
        %v879 = vpop.f32.mrb[0].mxu0
        %880 = vmatprep.mubr.f32.mxu0 0.0
        %881 = vmatmul.mubr.f32.gmra.mrb[0].mxu0 %v559
        %v882 = vpop.f32.mrb[0].mxu0
        %v883 = vadd.f32 %v498, %v882
        %v884 = vpop.f32.mrb[0].mxu0
        %885 = vmatprep.mubr.f32.mxu0 0.0
        %886 = vmatmul.mubr.f32.gmra.mrb[0].mxu0 %v562
        %v887 = vpop.f32.mrb[0].mxu0
        %v888 = vadd.f32 %v498, %v887
        %v889 = vpop.f32.mrb[0].mxu0
        %890 = vmatprep.mubr.f32.mxu0 0.0
        %891 = vmatmul.mubr.f32.gmra.mrb[0].mxu0 %v565
        %v892 = vpop.f32.mrb[0].mxu0
        %v893 = vadd.f32 %v498, %v892
        %v894 = vpop.f32.mrb[0].mxu0
        %895 = vmatprep.mubr.f32.mxu0 0.0
        %896 = vmatmul.mubr.f32.gmra.mrb[0].mxu0 %v568
        %v897 = vpop.f32.mrb[0].mxu0
        %v898 = vadd.f32 %v498, %v897
        %v899 = vpop.f32.mrb[0].mxu0
        %900 = vmatprep.mubr.f32.mxu0 0.0
        %901 = vmatmul.mubr.f32.gmra.mrb[0].mxu0 %v571
        %v902 = vpop.f32.mrb[0].mxu0
        %v903 = vadd.f32 %v498, %v902
        %v904 = vpop.f32.mrb[0].mxu0
        %905 = vmatprep.mubr.f32.mxu0 0.0
        %906 = vmatmul.mubr.f32.gmra.mrb[0].mxu0 %v574
        %v907 = vpop.f32.mrb[0].mxu0
        %v908 = vadd.f32 %v498, %v907
        %v909 = vpop.f32.mrb[0].mxu0
        %910 = vmatprep.mubr.f32.mxu0 0.0
        %911 = vmatmul.mubr.f32.gmra.mrb[0].mxu0 %v577
        %v912 = vpop.f32.mrb[0].mxu0
        %v913 = vadd.f32 %v498, %v912
        %v914 = vpop.f32.mrb[0].mxu0
        %915 = vmatprep.mubr.f32.mxu0 0.0
        %916 = vmatmul.mubr.f32.gmra.mrb[0].mxu0 %v580
        %v917 = vpop.f32.mrb[0].mxu0
        %v918 = vadd.f32 %v498, %v917
        %v919 = vpop.f32.mrb[0].mxu0
        %920 = vmatprep.mubr.f32.mxu0 0.0
        %921 = vmatmul.mubr.f32.gmra.mrb[0].mxu0 %v583
        %v922 = vpop.f32.mrb[0].mxu0
        %v923 = vadd.f32 %v498, %v922
        %v924 = vpop.f32.mrb[0].mxu0
        %925 = vmatprep.mubr.f32.mxu0 0.0
        %926 = vmatmul.mubr.f32.gmra.mrb[0].mxu0 %v586
        %v927 = vpop.f32.mrb[0].mxu0
        %v928 = vadd.f32 %v498, %v927
        %v929 = vpop.f32.mrb[0].mxu0
        %930 = vmatprep.mubr.f32.mxu0 0.0
        %931 = vmatmul.mubr.f32.gmra.mrb[0].mxu0 %v589
        %v932 = vpop.f32.mrb[0].mxu0
        %v933 = vadd.f32 %v498, %v932
        %v934 = vpop.f32.mrb[0].mxu0
        %935 = vmatprep.mubr.f32.mxu0 0.0
        %936 = vmatmul.mubr.f32.gmra.mrb[0].mxu0 %v592
        %v937 = vpop.f32.mrb[0].mxu0
        %v938 = vadd.f32 %v498, %v937
        %v939 = vpop.f32.mrb[0].mxu0
        %940 = vmatprep.mubr.f32.mxu0 0.0
        %941 = vmatmul.mubr.f32.gmra.mrb[0].mxu0 %v595
        %v942 = vpop.f32.mrb[0].mxu0
        %v943 = vadd.f32 %v498, %v942
        %v944 = vpop.f32.mrb[0].mxu0
        %945 = vmatprep.mubr.f32.mxu0 0.0
        %946 = vmatmul.mubr.f32.gmra.mrb[0].mxu0 %v598
        %v947 = vpop.f32.mrb[0].mxu0
        %v948 = vadd.f32 %v498, %v947
        %v949 = vpop.f32.mrb[0].mxu0
        %950 = vmatprep.mubr.f32.mxu0 0.0
        %951 = vmatmul.mubr.f32.gmra.mrb[0].mxu0 %v601
        %v952 = vpop.f32.mrb[0].mxu0
        %v953 = vadd.f32 %v498, %v952
        %v954 = vpop.f32.mrb[0].mxu0
        %955 = vmatprep.mubr.f32.mxu0 0.0
        %956 = vmatmul.mubr.f32.gmra.mrb[0].mxu0 %v604
        %v957 = vpop.f32.mrb[0].mxu0
        %v958 = vadd.f32 %v498, %v957
        %v959 = vpop.f32.mrb[0].mxu0
        %960 = vmatprep.mubr.f32.mxu0 0.0
        %961 = vmatmul.mubr.f32.gmra.mrb[0].mxu0 %v607
        %v962 = vpop.f32.mrb[0].mxu0
        %v963 = vadd.f32 %v498, %v962
        %v964 = vpop.f32.mrb[0].mxu0
        %965 = vmatprep.mubr.f32.mxu0 0.0
        %966 = vmatmul.mubr.f32.gmra.mrb[0].mxu0 %v610
        %v967 = vpop.f32.mrb[0].mxu0
        %v968 = vadd.f32 %v498, %v967
        %v969 = vpop.f32.mrb[0].mxu0
        %970 = vmatprep.mubr.f32.mxu0 0.0
        %971 = vmatmul.mubr.f32.gmra.mrb[0].mxu0 %v613
        %v972 = vpop.f32.mrb[0].mxu0
        %v973 = vadd.f32 %v498, %v972
        %v974 = vpop.f32.mrb[0].mxu0
        %975 = vmatprep.mubr.f32.mxu0 0.0
        %976 = vmatmul.mubr.f32.gmra.mrb[0].mxu0 %v616
        %v977 = vpop.f32.mrb[0].mxu0
        %v978 = vadd.f32 %v498, %v977
        %v979 = vpop.f32.mrb[0].mxu0
        %980 = vmatprep.mubr.f32.mxu0 0.0
        %981 = vmatmul.mubr.f32.gmra.mrb[0].mxu0 %v619
        %v982 = vpop.f32.mrb[0].mxu0
        %v983 = vadd.f32 %v498, %v982
        %v984 = vpop.f32.mrb[0].mxu0
        %985 = vmatprep.mubr.f32.mxu0 0.0
        %986 = vmatmul.mubr.f32.gmra.mrb[0].mxu0 %v622
        %v987 = vpop.f32.mrb[0].mxu0
        %v988 = vadd.f32 %v498, %v987
        %v989 = vpop.f32.mrb[0].mxu0
        %990 = vmatprep.mubr.f32.mxu0 0.0
        %991 = vmatmul.mubr.f32.gmra.mrb[0].mxu0 %v625
        %v992 = vpop.f32.mrb[0].mxu0
        %v993 = vadd.f32 %v498, %v992
        %v994 = vpop.f32.mrb[0].mxu0
        %995 = vmatprep.mubr.f32.mxu0 0.0
        %996 = vmatmul.mubr.f32.gmra.mrb[0].mxu0 %v628
        %v997 = vpop.f32.mrb[0].mxu0
        %v998 = vadd.f32 %v498, %v997
        %v999 = vpop.f32.mrb[0].mxu0
        %1000 = vmatprep.mubr.f32.mxu0 0.0
        %1001 = vmatmul.mubr.f32.gmra.mrb[0].mxu0 %v631
        %v1002 = vpop.f32.mrb[0].mxu0
        %v1003 = vadd.f32 %v498, %v1002
        %v1004 = vpop.f32.mrb[0].mxu0
        %1005 = vmatprep.mubr.f32.mxu0 0.0
        %1006 = vmatmul.mubr.f32.gmra.mrb[0].mxu0 %v634
        %v1007 = vpop.f32.mrb[0].mxu0
        %v1008 = vadd.f32 %v498, %v1007
        %v1009 = vpop.f32.mrb[0].mxu0
        %1010 = vmatprep.mubr.f32.mxu0 0.0
        %1011 = vmatmul.mubr.f32.gmra.mrb[0].mxu0 %v637
        %v1012 = vpop.f32.mrb[0].mxu0
        %v1013 = vadd.f32 %v498, %v1012
        %v1014 = vpop.f32.mrb[0].mxu0
        %1015 = vmatprep.mubr.f32.mxu0 0.0
        %1016 = vmatmul.mubr.f32.gmra.mrb[0].mxu0 %v640
        %v1017 = vpop.f32.mrb[0].mxu0
        %v1018 = vadd.f32 %v498, %v1017
        %v1019 = vpop.f32.mrb[0].mxu0
        %1020 = vmatprep.mubr.f32.mxu0 0.0
        %1021 = vmatmul.mubr.f32.gmra.mrb[0].mxu0 %v643
        %v1022 = vpop.f32.mrb[0].mxu0
        %v1023 = vadd.f32 %v498, %v1022
        %v1024 = vpop.f32.mrb[0].mxu0
        %1025 = vmatprep.mubr.f32.mxu0 0.0
        %1026 = vmatmul.mubr.f32.gmra.mrb[0].mxu0 %v646
        %v1027 = vpop.f32.mrb[0].mxu0
        %v1028 = vadd.f32 %v498, %v1027
        %v1029 = vpop.f32.mrb[0].mxu0
        %1030 = vmatprep.mubr.f32.mxu0 0.0
        %1031 = vmatmul.mubr.f32.gmra.mrb[0].mxu0 %v649
        %v1032 = vpop.f32.mrb[0].mxu0
        %v1033 = vadd.f32 %v498, %v1032
        %v1034 = vpop.f32.mrb[0].mxu0
        %1035 = vmatprep.mubr.f32.mxu0 0.0
        %1036 = vmatmul.mubr.f32.gmra.mrb[0].mxu0 %v652
        %v1037 = vpop.f32.mrb[0].mxu0
        %v1038 = vadd.f32 %v498, %v1037
        %v1039 = vpop.f32.mrb[0].mxu0
        %1040 = vmatprep.mubr.f32.mxu0 0.0
        %1041 = vmatmul.mubr.f32.gmra.mrb[0].mxu0 %v655
        %v1042 = vpop.f32.mrb[0].mxu0
        %v1043 = vadd.f32 %v498, %v1042
        %v1044 = vpop.f32.mrb[0].mxu0
        %1045 = vmatprep.mubr.f32.mxu0 0.0
        %1046 = vmatmul.mubr.f32.gmra.mrb[0].mxu0 %v658
        %v1047 = vpop.f32.mrb[0].mxu0
        %v1048 = vadd.f32 %v498, %v1047
        %v1049 = vpop.f32.mrb[0].mxu0
        %1050 = vmatprep.mubr.f32.mxu0 0.0
        %1051 = vmatmul.mubr.f32.gmra.mrb[0].mxu0 %v661
        %v1052 = vpop.f32.mrb[0].mxu0
        %v1053 = vadd.f32 %v498, %v1052
        %v1054 = vpop.f32.mrb[0].mxu0
        %1055 = vmatprep.mubr.f32.mxu0 0.0
        %1056 = vmatmul.mubr.f32.gmra.mrb[0].mxu0 %v664
        %v1057 = vpop.f32.mrb[0].mxu0
        %v1058 = vadd.f32 %v498, %v1057
        %v1059 = vpop.f32.mrb[0].mxu0
        %1060 = vmatprep.mubr.f32.mxu0 0.0
        %1061 = vmatmul.mubr.f32.gmra.mrb[0].mxu0 %v667
        %v1062 = vpop.f32.mrb[0].mxu0
        %v1063 = vadd.f32 %v498, %v1062
        %v1064 = vpop.f32.mrb[0].mxu0
        %1065 = vmatprep.mubr.f32.mxu0 0.0
        %1066 = vmatmul.mubr.f32.gmra.mrb[0].mxu0 %v670
        %v1067 = vpop.f32.mrb[0].mxu0
        %v1068 = vadd.f32 %v498, %v1067
        %v1069 = vpop.f32.mrb[0].mxu0
        %1070 = vmatprep.mubr.f32.mxu0 0.0
        %1071 = vmatmul.mubr.f32.gmra.mrb[0].mxu0 %v673
        %v1072 = vpop.f32.mrb[0].mxu0
        %v1073 = vadd.f32 %v498, %v1072
        %v1074 = vpop.f32.mrb[0].mxu0
        %1075 = vmatprep.mubr.f32.mxu0 0.0
        %1076 = vmatmul.mubr.f32.gmra.mrb[0].mxu0 %v676
        %v1077 = vpop.f32.mrb[0].mxu0
        %v1078 = vadd.f32 %v498, %v1077
        %v1079 = vpop.f32.mrb[0].mxu0
        %1080 = vmatprep.mubr.f32.mxu0 0.0
        %1081 = vmatmul.mubr.f32.gmra.mrb[0].mxu0 %v679
        %v1082 = vpop.f32.mrb[0].mxu0
        %v1083 = vadd.f32 %v498, %v1082
        %v1084 = vpop.f32.mrb[0].mxu0
        %1085 = vmatprep.mubr.f32.mxu0 0.0
        %1086 = vmatmul.mubr.f32.gmra.mrb[0].mxu0 %v682
        %v1087 = vpop.f32.mrb[0].mxu0
        %v1088 = vadd.f32 %v498, %v1087
        %v1089 = vpop.f32.mrb[0].mxu0
        %1090 = vmatprep.mubr.f32.mxu0 0.0
        %1091 = vmatmul.mubr.f32.gmra.mrb[0].mxu0 %v685
        %v1092 = vpop.f32.mrb[0].mxu0
        %v1093 = vadd.f32 %v498, %v1092
        %v1094 = vpop.f32.mrb[0].mxu0
        %1095 = vmatprep.mubr.f32.mxu0 0.0
        %1096 = vmatmul.mubr.f32.gmra.mrb[0].mxu0 %v688
        %v1097 = vpop.f32.mrb[0].mxu0
        %v1098 = vadd.f32 %v498, %v1097
        %v1099 = vpop.f32.mrb[0].mxu0
        %1100 = vmatprep.mubr.f32.mxu0 0.0
        %1101 = vmatmul.mubr.f32.gmra.mrb[0].mxu0 %v691
        %v1102 = vpop.f32.mrb[0].mxu0
        %v1103 = vadd.f32 %v498, %v1102
        %v1104 = vpop.f32.mrb[0].mxu0
        %1105 = vmatprep.mubr.f32.mxu0 0.0
        %1106 = vmatmul.mubr.f32.gmra.mrb[0].mxu0 %v694
        %v1107 = vpop.f32.mrb[0].mxu0
        %v1108 = vadd.f32 %v498, %v1107
        %v1109 = vpop.f32.mrb[0].mxu0
        %1110 = vmatprep.mubr.f32.mxu0 0.0
        %1111 = vmatmul.mubr.f32.gmra.mrb[0].mxu0 %v697
        %v1112 = vpop.f32.mrb[0].mxu0
        %v1113 = vadd.f32 %v498, %v1112
        %v1114 = vpop.f32.mrb[0].mxu0
        %1115 = vmatprep.mubr.f32.mxu0 0.0
        %1116 = vmatmul.mubr.f32.gmra.mrb[0].mxu0 %v700
        %v1117 = vpop.f32.mrb[0].mxu0
        %v1118 = vadd.f32 %v498, %v1117
        %v1119 = vpop.f32.mrb[0].mxu0
        %1120 = vmatprep.mubr.f32.mxu0 0.0
        %1121 = vmatmul.mubr.f32.gmra.mrb[0].mxu0 %v703
        %v1122 = vpop.f32.mrb[0].mxu0
        %v1123 = vadd.f32 %v498, %v1122
        %v1124 = vpop.f32.mrb[0].mxu0
        %1125 = vmatprep.mubr.f32.mxu0 0.0
        %1126 = vmatmul.mubr.f32.gmra.mrb[0].mxu0 %v706
        %v1127 = vpop.f32.mrb[0].mxu0
        %v1128 = vadd.f32 %v498, %v1127
        %v1129 = vpop.f32.mrb[0].mxu0
        %1130 = vmatprep.mubr.f32.mxu0 0.0
        %1131 = vmatmul.mubr.f32.gmra.mrb[0].mxu0 %v709
        %v1132 = vpop.f32.mrb[0].mxu0
        %v1133 = vadd.f32 %v498, %v1132
        %v1134 = vpop.f32.mrb[0].mxu0
        %1135 = vmatprep.mubr.f32.mxu0 0.0
        %1136 = vmatmul.mubr.f32.gmra.mrb[0].mxu0 %v712
        %v1137 = vpop.f32.mrb[0].mxu0
        %v1138 = vadd.f32 %v498, %v1137
        %v1139 = vpop.f32.mrb[0].mxu0
        %1140 = vmatprep.mubr.f32.mxu0 0.0
        %1141 = vmatmul.mubr.f32.gmra.mrb[0].mxu0 %v715
        %v1142 = vpop.f32.mrb[0].mxu0
        %v1143 = vadd.f32 %v498, %v1142
        %v1144 = vpop.f32.mrb[0].mxu0
        %1145 = vdwg.mxu0
        %v1146 = vmax.f32 %v788, 0.0
        %v1147 = vmax.f32 %v793, 0.0
        %v1148 = vmax.f32 %v798, 0.0
        %v1149 = vmax.f32 %v803, 0.0
        %v1150 = vmax.f32 %v808, 0.0
        %v1151 = vmax.f32 %v813, 0.0
        %v1152 = vmax.f32 %v818, 0.0
        %v1153 = vmax.f32 %v823, 0.0
        %v1154 = vmax.f32 %v828, 0.0
        %v1155 = vmax.f32 %v833, 0.0
        %v1156 = vmax.f32 %v838, 0.0
        %v1157 = vmax.f32 %v843, 0.0
        %v1158 = vmax.f32 %v848, 0.0
        %v1159 = vmax.f32 %v853, 0.0
        %v1160 = vmax.f32 %v858, 0.0
        %v1161 = vmax.f32 %v863, 0.0
        %v1162 = vmax.f32 %v868, 0.0
        %v1163 = vmax.f32 %v873, 0.0
        %v1164 = vmax.f32 %v878, 0.0
        %v1165 = vmax.f32 %v883, 0.0
        %v1166 = vmax.f32 %v888, 0.0
        %v1167 = vmax.f32 %v893, 0.0
        %v1168 = vmax.f32 %v898, 0.0
        %v1169 = vmax.f32 %v903, 0.0
        %v1170 = vmax.f32 %v908, 0.0
        %v1171 = vmax.f32 %v913, 0.0
        %v1172 = vmax.f32 %v918, 0.0
        %v1173 = vmax.f32 %v923, 0.0
        %v1174 = vmax.f32 %v928, 0.0
        %v1175 = vmax.f32 %v933, 0.0
        %v1176 = vmax.f32 %v938, 0.0
        %v1177 = vmax.f32 %v943, 0.0
        %v1178 = vmax.f32 %v948, 0.0
        %v1179 = vmax.f32 %v953, 0.0
        %v1180 = vmax.f32 %v958, 0.0
        %v1181 = vmax.f32 %v963, 0.0
        %v1182 = vmax.f32 %v968, 0.0
        %v1183 = vmax.f32 %v973, 0.0
        %v1184 = vmax.f32 %v978, 0.0
        %v1185 = vmax.f32 %v983, 0.0
        %v1186 = vmax.f32 %v988, 0.0
        %v1187 = vmax.f32 %v993, 0.0
        %v1188 = vmax.f32 %v998, 0.0
        %v1189 = vmax.f32 %v1003, 0.0
        %v1190 = vmax.f32 %v1008, 0.0
        %v1191 = vmax.f32 %v1013, 0.0
        %v1192 = vmax.f32 %v1018, 0.0
        %v1193 = vmax.f32 %v1023, 0.0
        %v1194 = vmax.f32 %v1028, 0.0
        %v1195 = vmax.f32 %v1033, 0.0
        %v1196 = vmax.f32 %v1038, 0.0
        %v1197 = vmax.f32 %v1043, 0.0
        %v1198 = vmax.f32 %v1048, 0.0
        %v1199 = vmax.f32 %v1053, 0.0
        %v1200 = vmax.f32 %v1058, 0.0
        %v1201 = vmax.f32 %v1063, 0.0
        %v1202 = vmax.f32 %v1068, 0.0
        %v1203 = vmax.f32 %v1073, 0.0
        %v1204 = vmax.f32 %v1078, 0.0
        %v1205 = vmax.f32 %v1083, 0.0
        %v1206 = vmax.f32 %v1088, 0.0
        %v1207 = vmax.f32 %v1093, 0.0
        %v1208 = vmax.f32 %v1098, 0.0
        %v1209 = vmax.f32 %v1103, 0.0
        %v1210 = vmax.f32 %v1108, 0.0
        %v1211 = vmax.f32 %v1113, 0.0
        %v1212 = vmax.f32 %v1118, 0.0
        %v1213 = vmax.f32 %v1123, 0.0
        %v1214 = vmax.f32 %v1128, 0.0
        %v1215 = vmax.f32 %v1133, 0.0
        %v1216 = vmax.f32 %v1138, 0.0
        %v1217 = vmax.f32 %v1143, 0.0
        %v1218 = vrot.slane %v1146, 1
        %v1219 = vrot.slane %v1147, 1
        %v1220 = vrot.slane %v1148, 1
        %v1221 = vrot.slane %v1149, 1
        %v1222 = vrot.slane %v1150, 1
        %v1223 = vrot.slane %v1151, 1
        %v1224 = vrot.slane %v1152, 1
        %v1225 = vrot.slane %v1153, 1
        %v1226 = vrot.slane %v1154, 1
        %v1227 = vrot.slane %v1155, 1
        %v1228 = vrot.slane %v1156, 1
        %v1229 = vrot.slane %v1157, 1
        %v1230 = vrot.slane %v1158, 1
        %v1231 = vrot.slane %v1159, 1
        %v1232 = vrot.slane %v1160, 1
        %v1233 = vrot.slane %v1161, 1
        %v1234 = vrot.slane %v1162, 1
        %v1235 = vrot.slane %v1163, 1
        %v1236 = vrot.slane %v1164, 1
        %v1237 = vrot.slane %v1165, 1
        %v1238 = vrot.slane %v1166, 1
        %v1239 = vrot.slane %v1167, 1
        %v1240 = vrot.slane %v1168, 1
        %v1241 = vrot.slane %v1169, 1
        %v1242 = vrot.slane %v1170, 1
        %v1243 = vrot.slane %v1171, 1
        %v1244 = vrot.slane %v1172, 1
        %v1245 = vrot.slane %v1173, 1
        %v1246 = vrot.slane %v1174, 1
        %v1247 = vrot.slane %v1175, 1
        %v1248 = vrot.slane %v1176, 1
        %v1249 = vrot.slane %v1177, 1
        %v1250 = vrot.slane %v1178, 1
        %v1251 = vrot.slane %v1179, 1
        %v1252 = vrot.slane %v1180, 1
        %v1253 = vrot.slane %v1181, 1
        %v1254 = vrot.slane %v1182, 1
        %v1255 = vrot.slane %v1183, 1
        %v1256 = vrot.slane %v1184, 1
        %v1257 = vrot.slane %v1185, 1
        %v1258 = vrot.slane %v1186, 1
        %v1259 = vrot.slane %v1187, 1
        %v1260 = vrot.slane %v1188, 1
        %v1261 = vrot.slane %v1189, 1
        %v1262 = vrot.slane %v1190, 1
        %v1263 = vrot.slane %v1191, 1
        %v1264 = vrot.slane %v1192, 1
        %v1265 = vrot.slane %v1193, 1
        %v1266 = vrot.slane %v1194, 1
        %v1267 = vrot.slane %v1195, 1
        %v1268 = vrot.slane %v1196, 1
        %v1269 = vrot.slane %v1197, 1
        %v1270 = vrot.slane %v1198, 1
        %v1271 = vrot.slane %v1199, 1
        %v1272 = vrot.slane %v1200, 1
        %v1273 = vrot.slane %v1201, 1
        %v1274 = vrot.slane %v1202, 1
        %v1275 = vrot.slane %v1203, 1
        %v1276 = vrot.slane %v1204, 1
        %v1277 = vrot.slane %v1205, 1
        %v1278 = vrot.slane %v1206, 1
        %v1279 = vrot.slane %v1207, 1
        %v1280 = vrot.slane %v1208, 1
        %v1281 = vrot.slane %v1209, 1
        %v1282 = vrot.slane %v1210, 1
        %v1283 = vrot.slane %v1211, 1
        %v1284 = vrot.slane %v1212, 1
        %v1285 = vrot.slane %v1213, 1
        %v1286 = vrot.slane %v1214, 1
        %v1287 = vrot.slane %v1215, 1
        %v1288 = vrot.slane %v1216, 1
        %v1289 = vrot.slane %v1217, 1
        %v1290 = vlaneseq
        %v1291 = vshrl.u32 %v1290, 7
        %vm1292 = vcmp.lt.s32.totalorder %v1291, 7
        %v1293 = vsel %vm1292, %v1288, %v1289
        %v1294 = vsel %vm1292, %v1287, %v1288
        %v1295 = vsel %vm1292, %v1286, %v1287
        %v1296 = vsel %vm1292, %v1285, %v1286
        %v1297 = vsel %vm1292, %v1284, %v1285
        %v1298 = vsel %vm1292, %v1283, %v1284
        %v1299 = vsel %vm1292, %v1282, %v1283
        %v1300 = vsel %vm1292, %v1281, %v1282
        %v1301 = vsel %vm1292, %v1280, %v1281
        %v1302 = vsel %vm1292, %v1279, %v1280
        %v1303 = vsel %vm1292, %v1278, %v1279
        %v1304 = vsel %vm1292, %v1277, %v1278
        %v1305 = vsel %vm1292, %v1276, %v1277
        %v1306 = vsel %vm1292, %v1275, %v1276
        %v1307 = vsel %vm1292, %v1274, %v1275
        %v1308 = vsel %vm1292, %v1273, %v1274
        %v1309 = vsel %vm1292, %v1272, %v1273
        %v1310 = vsel %vm1292, %v1271, %v1272
        %v1311 = vsel %vm1292, %v1270, %v1271
        %v1312 = vsel %vm1292, %v1269, %v1270
        %v1313 = vsel %vm1292, %v1268, %v1269
        %v1314 = vsel %vm1292, %v1267, %v1268
        %v1315 = vsel %vm1292, %v1266, %v1267
        %v1316 = vsel %vm1292, %v1265, %v1266
        %v1317 = vsel %vm1292, %v1264, %v1265
        %v1318 = vsel %vm1292, %v1263, %v1264
        %v1319 = vsel %vm1292, %v1262, %v1263
        %v1320 = vsel %vm1292, %v1261, %v1262
        %v1321 = vsel %vm1292, %v1260, %v1261
        %v1322 = vsel %vm1292, %v1259, %v1260
        %v1323 = vsel %vm1292, %v1258, %v1259
        %v1324 = vsel %vm1292, %v1257, %v1258
        %v1325 = vsel %vm1292, %v1256, %v1257
        %v1326 = vsel %vm1292, %v1255, %v1256
        %v1327 = vsel %vm1292, %v1254, %v1255
        %v1328 = vsel %vm1292, %v1253, %v1254
        %v1329 = vsel %vm1292, %v1252, %v1253
        %v1330 = vsel %vm1292, %v1251, %v1252
        %v1331 = vsel %vm1292, %v1250, %v1251
        %v1332 = vsel %vm1292, %v1249, %v1250
        %v1333 = vsel %vm1292, %v1248, %v1249
        %v1334 = vsel %vm1292, %v1247, %v1248
        %v1335 = vsel %vm1292, %v1246, %v1247
        %v1336 = vsel %vm1292, %v1245, %v1246
        %v1337 = vsel %vm1292, %v1244, %v1245
        %v1338 = vsel %vm1292, %v1243, %v1244
        %v1339 = vsel %vm1292, %v1242, %v1243
        %v1340 = vsel %vm1292, %v1241, %v1242
        %v1341 = vsel %vm1292, %v1240, %v1241
        %v1342 = vsel %vm1292, %v1239, %v1240
        %v1343 = vsel %vm1292, %v1238, %v1239
        %v1344 = vsel %vm1292, %v1237, %v1238
        %v1345 = vsel %vm1292, %v1236, %v1237
        %v1346 = vsel %vm1292, %v1235, %v1236
        %v1347 = vsel %vm1292, %v1234, %v1235
        %v1348 = vsel %vm1292, %v1233, %v1234
        %v1349 = vsel %vm1292, %v1232, %v1233
        %v1350 = vsel %vm1292, %v1231, %v1232
        %v1351 = vsel %vm1292, %v1230, %v1231
        %v1352 = vsel %vm1292, %v1229, %v1230
        %v1353 = vsel %vm1292, %v1228, %v1229
        %v1354 = vsel %vm1292, %v1227, %v1228
        %v1355 = vsel %vm1292, %v1226, %v1227
        %v1356 = vsel %vm1292, %v1225, %v1226
        %v1357 = vsel %vm1292, %v1224, %v1225
        %v1358 = vsel %vm1292, %v1223, %v1224
        %v1359 = vsel %vm1292, %v1222, %v1223
        %v1360 = vsel %vm1292, %v1221, %v1222
        %v1361 = vsel %vm1292, %v1220, %v1221
        %v1362 = vsel %vm1292, %v1219, %v1220
        %v1363 = vsel %vm1292, %v1218, %v1219
        %v1364 = vsel %vm1292, %v1289, %v1218
        %v1365 = vmax.f32 %v1146, %v1363
        %v1366 = vmax.f32 %v1147, %v1362
        %v1367 = vmax.f32 %v1148, %v1361
        %v1368 = vmax.f32 %v1149, %v1360
        %v1369 = vmax.f32 %v1150, %v1359
        %v1370 = vmax.f32 %v1151, %v1358
        %v1371 = vmax.f32 %v1152, %v1357
        %v1372 = vmax.f32 %v1153, %v1356
        %v1373 = vmax.f32 %v1154, %v1355
        %v1374 = vmax.f32 %v1155, %v1354
        %v1375 = vmax.f32 %v1156, %v1353
        %v1376 = vmax.f32 %v1157, %v1352
        %v1377 = vmax.f32 %v1158, %v1351
        %v1378 = vmax.f32 %v1159, %v1350
        %v1379 = vmax.f32 %v1160, %v1349
        %v1380 = vmax.f32 %v1161, %v1348
        %v1381 = vmax.f32 %v1162, %v1347
        %v1382 = vmax.f32 %v1163, %v1346
        %v1383 = vmax.f32 %v1164, %v1345
        %v1384 = vmax.f32 %v1165, %v1344
        %v1385 = vmax.f32 %v1166, %v1343
        %v1386 = vmax.f32 %v1167, %v1342
        %v1387 = vmax.f32 %v1168, %v1341
        %v1388 = vmax.f32 %v1169, %v1340
        %v1389 = vmax.f32 %v1170, %v1339
        %v1390 = vmax.f32 %v1171, %v1338
        %v1391 = vmax.f32 %v1172, %v1337
        %v1392 = vmax.f32 %v1173, %v1336
        %v1393 = vmax.f32 %v1174, %v1335
        %v1394 = vmax.f32 %v1175, %v1334
        %v1395 = vmax.f32 %v1176, %v1333
        %v1396 = vmax.f32 %v1177, %v1332
        %v1397 = vmax.f32 %v1178, %v1331
        %v1398 = vmax.f32 %v1179, %v1330
        %v1399 = vmax.f32 %v1180, %v1329
        %v1400 = vmax.f32 %v1181, %v1328
        %v1401 = vmax.f32 %v1182, %v1327
        %v1402 = vmax.f32 %v1183, %v1326
        %v1403 = vmax.f32 %v1184, %v1325
        %v1404 = vmax.f32 %v1185, %v1324
        %v1405 = vmax.f32 %v1186, %v1323
        %v1406 = vmax.f32 %v1187, %v1322
        %v1407 = vmax.f32 %v1188, %v1321
        %v1408 = vmax.f32 %v1189, %v1320
        %v1409 = vmax.f32 %v1190, %v1319
        %v1410 = vmax.f32 %v1191, %v1318
        %v1411 = vmax.f32 %v1192, %v1317
        %v1412 = vmax.f32 %v1193, %v1316
        %v1413 = vmax.f32 %v1194, %v1315
        %v1414 = vmax.f32 %v1195, %v1314
        %v1415 = vmax.f32 %v1196, %v1313
        %v1416 = vmax.f32 %v1197, %v1312
        %v1417 = vmax.f32 %v1198, %v1311
        %v1418 = vmax.f32 %v1199, %v1310
        %v1419 = vmax.f32 %v1200, %v1309
        %v1420 = vmax.f32 %v1201, %v1308
        %v1421 = vmax.f32 %v1202, %v1307
        %v1422 = vmax.f32 %v1203, %v1306
        %v1423 = vmax.f32 %v1204, %v1305
        %v1424 = vmax.f32 %v1205, %v1304
        %v1425 = vmax.f32 %v1206, %v1303
        %v1426 = vmax.f32 %v1207, %v1302
        %v1427 = vmax.f32 %v1208, %v1301
        %v1428 = vmax.f32 %v1209, %v1300
        %v1429 = vmax.f32 %v1210, %v1299
        %v1430 = vmax.f32 %v1211, %v1298
        %v1431 = vmax.f32 %v1212, %v1297
        %v1432 = vmax.f32 %v1213, %v1296
        %v1433 = vmax.f32 %v1214, %v1295
        %v1434 = vmax.f32 %v1215, %v1294
        %v1435 = vmax.f32 %v1216, %v1293
        %v1436 = vmax.f32 %v1217, %v1364
        %v1437 = vmax.f32 %v1365, %v1368
        %v1438 = vmax.f32 %v1366, %v1369
        %v1439 = vmax.f32 %v1367, %v1370
        %v1440 = vmax.f32 %v1368, %v1371
        %v1441 = vmax.f32 %v1369, %v1372
        %v1442 = vmax.f32 %v1370, %v1373
        %v1443 = vmax.f32 %v1371, %v1374
        %v1444 = vmax.f32 %v1372, %v1375
        %v1445 = vmax.f32 %v1373, %v1376
        %v1446 = vmax.f32 %v1374, %v1377
        %v1447 = vmax.f32 %v1375, %v1378
        %v1448 = vmax.f32 %v1376, %v1379
        %v1449 = vmax.f32 %v1377, %v1380
        %v1450 = vmax.f32 %v1378, %v1381
        %v1451 = vmax.f32 %v1379, %v1382
        %v1452 = vmax.f32 %v1380, %v1383
        %v1453 = vmax.f32 %v1381, %v1384
        %v1454 = vmax.f32 %v1382, %v1385
        %v1455 = vmax.f32 %v1383, %v1386
        %v1456 = vmax.f32 %v1384, %v1387
        %v1457 = vmax.f32 %v1385, %v1388
        %v1458 = vmax.f32 %v1386, %v1389
        %v1459 = vmax.f32 %v1387, %v1390
        %v1460 = vmax.f32 %v1388, %v1391
        %v1461 = vmax.f32 %v1389, %v1392
        %v1462 = vmax.f32 %v1390, %v1393
        %v1463 = vmax.f32 %v1391, %v1394
        %v1464 = vmax.f32 %v1392, %v1395
        %v1465 = vmax.f32 %v1393, %v1396
        %v1466 = vmax.f32 %v1394, %v1397
        %v1467 = vmax.f32 %v1395, %v1398
        %v1468 = vmax.f32 %v1396, %v1399
        %v1469 = vmax.f32 %v1397, %v1400
        %v1470 = vmax.f32 %v1398, %v1401
        %v1471 = vmax.f32 %v1399, %v1402
        %v1472 = vmax.f32 %v1400, %v1403
        %v1473 = vmax.f32 %v1401, %v1404
        %v1474 = vmax.f32 %v1402, %v1405
        %v1475 = vmax.f32 %v1403, %v1406
        %v1476 = vmax.f32 %v1404, %v1407
        %v1477 = vmax.f32 %v1405, %v1408
        %v1478 = vmax.f32 %v1406, %v1409
        %v1479 = vmax.f32 %v1407, %v1410
        %v1480 = vmax.f32 %v1408, %v1411
        %v1481 = vmax.f32 %v1409, %v1412
        %v1482 = vmax.f32 %v1410, %v1413
        %v1483 = vmax.f32 %v1411, %v1414
        %v1484 = vmax.f32 %v1412, %v1415
        %v1485 = vmax.f32 %v1413, %v1416
        %v1486 = vmax.f32 %v1414, %v1417
        %v1487 = vmax.f32 %v1415, %v1418
        %v1488 = vmax.f32 %v1416, %v1419
        %v1489 = vmax.f32 %v1417, %v1420
        %v1490 = vmax.f32 %v1418, %v1421
        %v1491 = vmax.f32 %v1419, %v1422
        %v1492 = vmax.f32 %v1420, %v1423
        %v1493 = vmax.f32 %v1421, %v1424
        %v1494 = vmax.f32 %v1422, %v1425
        %v1495 = vmax.f32 %v1423, %v1426
        %v1496 = vmax.f32 %v1424, %v1427
        %v1497 = vmax.f32 %v1425, %v1428
        %v1498 = vmax.f32 %v1426, %v1429
        %v1499 = vmax.f32 %v1427, %v1430
        %v1500 = vmax.f32 %v1428, %v1431
        %v1501 = vmax.f32 %v1429, %v1432
        %v1502 = vmax.f32 %v1430, %v1433
        %v1503 = vmax.f32 %v1431, %v1434
        %v1504 = vmax.f32 %v1432, %v1435
        %v1505 = vmax.f32 %v1433, %v1436
        %1506 = vst.msk [vmem:[#allocation4] sm:$0xff] %vm384, %v1437
        %1507 = vst.msk [vmem:[#allocation4 + $0x8] sm:$0xff] %vm384, %v1438
        %1508 = vst.msk [vmem:[#allocation4 + $0x10] sm:$0xff] %vm384, %v1439
        %1509 = vst.msk [vmem:[#allocation4 + $0x18] sm:$0xff] %vm384, %v1440
        %1510 = vst.msk [vmem:[#allocation4 + $0x20] sm:$0xff] %vm384, %v1441
        %1511 = vst.msk [vmem:[#allocation4 + $0x28] sm:$0xff] %vm384, %v1442
        %1512 = vst.msk [vmem:[#allocation4 + $0x30] sm:$0xff] %vm384, %v1443
        %1513 = vst.msk [vmem:[#allocation4 + $0x38] sm:$0xff] %vm384, %v1444
        %1514 = vst.msk [vmem:[#allocation4 + $0x40] sm:$0xff] %vm384, %v1445
        %1515 = vst.msk [vmem:[#allocation4 + $0x48] sm:$0xff] %vm384, %v1446
        %1516 = vst.msk [vmem:[#allocation4 + $0x50] sm:$0xff] %vm384, %v1447
        %1517 = vst.msk [vmem:[#allocation4 + $0x58] sm:$0xff] %vm384, %v1448
        %1518 = vst.msk [vmem:[#allocation4 + $0x60] sm:$0xff] %vm384, %v1449
        %1519 = vst.msk [vmem:[#allocation4 + $0x68] sm:$0xff] %vm384, %v1450
        %1520 = vst.msk [vmem:[#allocation4 + $0x70] sm:$0xff] %vm384, %v1451
        %1521 = vst.msk [vmem:[#allocation4 + $0x78] sm:$0xff] %vm384, %v1452
        %1522 = vst.msk [vmem:[#allocation4 + $0x80] sm:$0xff] %vm384, %v1453
        %1523 = vst.msk [vmem:[#allocation4 + $0x88] sm:$0xff] %vm384, %v1454
        %1524 = vst.msk [vmem:[#allocation4 + $0x90] sm:$0xff] %vm384, %v1455
        %1525 = vst.msk [vmem:[#allocation4 + $0x98] sm:$0xff] %vm384, %v1456
        %1526 = vst.msk [vmem:[#allocation4 + $0xa0] sm:$0xff] %vm384, %v1457
        %1527 = vst.msk [vmem:[#allocation4 + $0xa8] sm:$0xff] %vm384, %v1458
        %1528 = vst.msk [vmem:[#allocation4 + $0xb0] sm:$0xff] %vm384, %v1459
        %1529 = vst.msk [vmem:[#allocation4 + $0xb8] sm:$0xff] %vm384, %v1460
        %1530 = vst.msk [vmem:[#allocation4 + $0xc0] sm:$0xff] %vm384, %v1461
        %1531 = vst.msk [vmem:[#allocation4 + $0xc8] sm:$0xff] %vm384, %v1462
        %1532 = vst.msk [vmem:[#allocation4 + $0xd0] sm:$0xff] %vm384, %v1463
        %1533 = vst.msk [vmem:[#allocation4 + $0xd8] sm:$0xff] %vm384, %v1464
        %1534 = vst.msk [vmem:[#allocation4 + $0xe0] sm:$0xff] %vm384, %v1465
        %1535 = vst.msk [vmem:[#allocation4 + $0xe8] sm:$0xff] %vm384, %v1466
        %1536 = vst.msk [vmem:[#allocation4 + $0xf0] sm:$0xff] %vm384, %v1467
        %1537 = vst.msk [vmem:[#allocation4 + $0xf8] sm:$0xff] %vm384, %v1468
        %1538 = vst.msk [vmem:[#allocation4 + $0x100] sm:$0xff] %vm384, %v1469
        %1539 = vst.msk [vmem:[#allocation4 + $0x108] sm:$0xff] %vm384, %v1470
        %1540 = vst.msk [vmem:[#allocation4 + $0x110] sm:$0xff] %vm384, %v1471
        %1541 = vst.msk [vmem:[#allocation4 + $0x118] sm:$0xff] %vm384, %v1472
        %1542 = vst.msk [vmem:[#allocation4 + $0x120] sm:$0xff] %vm384, %v1473
        %1543 = vst.msk [vmem:[#allocation4 + $0x128] sm:$0xff] %vm384, %v1474
        %1544 = vst.msk [vmem:[#allocation4 + $0x130] sm:$0xff] %vm384, %v1475
        %1545 = vst.msk [vmem:[#allocation4 + $0x138] sm:$0xff] %vm384, %v1476
        %1546 = vst.msk [vmem:[#allocation4 + $0x140] sm:$0xff] %vm384, %v1477
        %1547 = vst.msk [vmem:[#allocation4 + $0x148] sm:$0xff] %vm384, %v1478
        %1548 = vst.msk [vmem:[#allocation4 + $0x150] sm:$0xff] %vm384, %v1479
        %1549 = vst.msk [vmem:[#allocation4 + $0x158] sm:$0xff] %vm384, %v1480
        %1550 = vst.msk [vmem:[#allocation4 + $0x160] sm:$0xff] %vm384, %v1481
        %1551 = vst.msk [vmem:[#allocation4 + $0x168] sm:$0xff] %vm384, %v1482
        %1552 = vst.msk [vmem:[#allocation4 + $0x170] sm:$0xff] %vm384, %v1483
        %1553 = vst.msk [vmem:[#allocation4 + $0x178] sm:$0xff] %vm384, %v1484
        %1554 = vst.msk [vmem:[#allocation4 + $0x180] sm:$0xff] %vm384, %v1485
        %1555 = vst.msk [vmem:[#allocation4 + $0x188] sm:$0xff] %vm384, %v1486
        %1556 = vst.msk [vmem:[#allocation4 + $0x190] sm:$0xff] %vm384, %v1487
        %1557 = vst.msk [vmem:[#allocation4 + $0x198] sm:$0xff] %vm384, %v1488
        %1558 = vst.msk [vmem:[#allocation4 + $0x1a0] sm:$0xff] %vm384, %v1489
        %1559 = vst.msk [vmem:[#allocation4 + $0x1a8] sm:$0xff] %vm384, %v1490
        %1560 = vst.msk [vmem:[#allocation4 + $0x1b0] sm:$0xff] %vm384, %v1491
        %1561 = vst.msk [vmem:[#allocation4 + $0x1b8] sm:$0xff] %vm384, %v1492
        %1562 = vst.msk [vmem:[#allocation4 + $0x1c0] sm:$0xff] %vm384, %v1493
        %1563 = vst.msk [vmem:[#allocation4 + $0x1c8] sm:$0xff] %vm384, %v1494
        %1564 = vst.msk [vmem:[#allocation4 + $0x1d0] sm:$0xff] %vm384, %v1495
        %1565 = vst.msk [vmem:[#allocation4 + $0x1d8] sm:$0xff] %vm384, %v1496
        %1566 = vst.msk [vmem:[#allocation4 + $0x1e0] sm:$0xff] %vm384, %v1497
        %1567 = vst.msk [vmem:[#allocation4 + $0x1e8] sm:$0xff] %vm384, %v1498
        %1568 = vst.msk [vmem:[#allocation4 + $0x1f0] sm:$0xff] %vm384, %v1499
        %1569 = vst.msk [vmem:[#allocation4 + $0x1f8] sm:$0xff] %vm384, %v1500
        %1570 = vst.msk [vmem:[#allocation4 + $0x200] sm:$0xff] %vm384, %v1501
        %1571 = vst.msk [vmem:[#allocation4 + $0x208] sm:$0xff] %vm384, %v1502
        %1572 = vst.msk [vmem:[#allocation4 + $0x210] sm:$0xff] %vm384, %v1503
        %1573 = vst.msk [vmem:[#allocation4 + $0x218] sm:$0xff] %vm384, %v1504
        %1574 = vst.msk [vmem:[#allocation4 + $0x220] sm:$0xff] %vm384, %v1505
        %v1575 = vld [vmem:[#allocation4] ss:$2 sm:$0xff]
        %s1576 = scalar_lea.vmem [#allocation4], 16
        %v1577 = vld [vmem:[%s1576] ss:$2 sm:$0xf]
        %1578 = vst.msk [vmem:[#allocation2] sm:$0xff] %vm384, %v1575
        %vm1579 = vcmask 257024
        %1580 = vst.msk [vmem:[#allocation2 + $0x8] sm:$0xf] %vm1579, %v1577
        %s1581 = scalar_lea.vmem [#allocation4], 48
        %v1582 = vld [vmem:[%s1581] ss:$2 sm:$0xff]
        %s1583 = scalar_lea.vmem [#allocation4], 64
        %v1584 = vld [vmem:[%s1583] ss:$2 sm:$0xf]
        %1585 = vst.msk [vmem:[#allocation2 + $0x10] sm:$0xff] %vm384, %v1582
        %1586 = vst.msk [vmem:[#allocation2 + $0x18] sm:$0xf] %vm1579, %v1584
        %s1587 = scalar_lea.vmem [#allocation4], 96
        %v1588 = vld [vmem:[%s1587] ss:$2 sm:$0xff]
        %s1589 = scalar_lea.vmem [#allocation4], 112
        %v1590 = vld [vmem:[%s1589] ss:$2 sm:$0xf]
        %1591 = vst.msk [vmem:[#allocation2 + $0x20] sm:$0xff] %vm384, %v1588
        %1592 = vst.msk [vmem:[#allocation2 + $0x28] sm:$0xf] %vm1579, %v1590
        %s1593 = scalar_lea.vmem [#allocation4], 144
        %v1594 = vld [vmem:[%s1593] ss:$2 sm:$0xff]
        %s1595 = scalar_lea.vmem [#allocation4], 160
        %v1596 = vld [vmem:[%s1595] ss:$2 sm:$0xf]
        %1597 = vst.msk [vmem:[#allocation2 + $0x30] sm:$0xff] %vm384, %v1594
        %1598 = vst.msk [vmem:[#allocation2 + $0x38] sm:$0xf] %vm1579, %v1596
        %s1599 = scalar_lea.vmem [#allocation4], 192
        %v1600 = vld [vmem:[%s1599] ss:$2 sm:$0xff]
        %s1601 = scalar_lea.vmem [#allocation4], 208
        %v1602 = vld [vmem:[%s1601] ss:$2 sm:$0xf]
        %1603 = vst.msk [vmem:[#allocation2 + $0x40] sm:$0xff] %vm384, %v1600
        %1604 = vst.msk [vmem:[#allocation2 + $0x48] sm:$0xf] %vm1579, %v1602
        %s1605 = scalar_lea.vmem [#allocation4], 240
        %v1606 = vld [vmem:[%s1605] ss:$2 sm:$0xff]
        %s1607 = scalar_lea.vmem [#allocation4], 256
        %v1608 = vld [vmem:[%s1607] ss:$2 sm:$0xf]
        %1609 = vst.msk [vmem:[#allocation2 + $0x50] sm:$0xff] %vm384, %v1606
        %1610 = vst.msk [vmem:[#allocation2 + $0x58] sm:$0xf] %vm1579, %v1608
        %s1611 = scalar_lea.vmem [#allocation4], 288
        %v1612 = vld [vmem:[%s1611] ss:$2 sm:$0xff]
        %s1613 = scalar_lea.vmem [#allocation4], 304
        %v1614 = vld [vmem:[%s1613] ss:$2 sm:$0xf]
        %1615 = vst.msk [vmem:[#allocation2 + $0x60] sm:$0xff] %vm384, %v1612
        %1616 = vst.msk [vmem:[#allocation2 + $0x68] sm:$0xf] %vm1579, %v1614
        %s1617 = scalar_lea.vmem [#allocation4], 336
        %v1618 = vld [vmem:[%s1617] ss:$2 sm:$0xff]
        %s1619 = scalar_lea.vmem [#allocation4], 352
        %v1620 = vld [vmem:[%s1619] ss:$2 sm:$0xf]
        %1621 = vst.msk [vmem:[#allocation2 + $0x70] sm:$0xff] %vm384, %v1618
        %1622 = vst.msk [vmem:[#allocation2 + $0x78] sm:$0xf] %vm1579, %v1620
        %s1623 = scalar_lea.vmem [#allocation4], 384
        %v1624 = vld [vmem:[%s1623] ss:$2 sm:$0xff]
        %s1625 = scalar_lea.vmem [#allocation4], 400
        %v1626 = vld [vmem:[%s1625] ss:$2 sm:$0xf]
        %1627 = vst.msk [vmem:[#allocation2 + $0x80] sm:$0xff] %vm384, %v1624
        %1628 = vst.msk [vmem:[#allocation2 + $0x88] sm:$0xf] %vm1579, %v1626
        %s1629 = scalar_lea.vmem [#allocation4], 432
        %v1630 = vld [vmem:[%s1629] ss:$2 sm:$0xff]
        %s1631 = scalar_lea.vmem [#allocation4], 448
        %v1632 = vld [vmem:[%s1631] ss:$2 sm:$0xf]
        %1633 = vst.msk [vmem:[#allocation2 + $0x90] sm:$0xff] %vm384, %v1630
        %1634 = vst.msk [vmem:[#allocation2 + $0x98] sm:$0xf] %vm1579, %v1632
        %s1635 = scalar_lea.vmem [#allocation4], 480
        %v1636 = vld [vmem:[%s1635] ss:$2 sm:$0xff]
        %s1637 = scalar_lea.vmem [#allocation4], 496
        %v1638 = vld [vmem:[%s1637] ss:$2 sm:$0xf]
        %1639 = vst.msk [vmem:[#allocation2 + $0xa0] sm:$0xff] %vm384, %v1636
        %1640 = vst.msk [vmem:[#allocation2 + $0xa8] sm:$0xf] %vm1579, %v1638
        %s1641 = scalar_lea.vmem [#allocation4], 528
        %v1642 = vld [vmem:[%s1641] ss:$2 sm:$0xff]
        %s1643 = scalar_lea.vmem [#allocation4], 544
        %v1644 = vld [vmem:[%s1643] ss:$2 sm:$0xf]
        %1645 = vst.msk [vmem:[#allocation2 + $0xb0] sm:$0xff] %vm384, %v1642
        %1646 = vst.msk [vmem:[#allocation2 + $0xb8] sm:$0xf] %vm1579, %v1644
        %v1647 = vld [vmem:[#allocation2] sm:$0xff]
        %v1648 = vld [vmem:[#allocation2 + $0x8] sm:$0xff]
        %v1649 = vld [vmem:[#allocation2 + $0x10] sm:$0xff]
        %v1650 = vld [vmem:[#allocation2 + $0x18] sm:$0xff]
        %v1651 = vld [vmem:[#allocation2 + $0x20] sm:$0xff]
        %v1652 = vld [vmem:[#allocation2 + $0x28] sm:$0xff]
        %v1653 = vld [vmem:[#allocation2 + $0x30] sm:$0xff]
        %v1654 = vld [vmem:[#allocation2 + $0x38] sm:$0xff]
        %v1655 = vld [vmem:[#allocation2 + $0x40] sm:$0xff]
        %v1656 = vld [vmem:[#allocation2 + $0x48] sm:$0xff]
        %v1657 = vld [vmem:[#allocation2 + $0x50] sm:$0xff]
        %v1658 = vld [vmem:[#allocation2 + $0x58] sm:$0xff]
        %v1659 = vld [vmem:[#allocation2 + $0x60] sm:$0xff]
        %v1660 = vld [vmem:[#allocation2 + $0x68] sm:$0xff]
        %v1661 = vld [vmem:[#allocation2 + $0x70] sm:$0xff]
        %v1662 = vld [vmem:[#allocation2 + $0x78] sm:$0xff]
        %v1663 = vld [vmem:[#allocation2 + $0x80] sm:$0xff]
        %v1664 = vld [vmem:[#allocation2 + $0x88] sm:$0xff]
        %v1665 = vld [vmem:[#allocation2 + $0x90] sm:$0xff]
        %v1666 = vld [vmem:[#allocation2 + $0x98] sm:$0xff]
        %v1667 = vld [vmem:[%s3] sm:$0xff]
        %v1668 = vld [vmem:[%s3 + $0x8] sm:$0xff]
        %v1669 = vld [vmem:[%s3 + $0x10] sm:$0xff]
        %v1670 = vld [vmem:[%s3 + $0x18] sm:$0xff]
        %v1671 = vld [vmem:[#allocation2 + $0x1] sm:$0xff]
        %v1672 = vld [vmem:[#allocation2 + $0x9] sm:$0xff]
        %v1673 = vld [vmem:[#allocation2 + $0x11] sm:$0xff]
        %v1674 = vld [vmem:[#allocation2 + $0x19] sm:$0xff]
        %v1675 = vld [vmem:[#allocation2 + $0x21] sm:$0xff]
        %v1676 = vld [vmem:[#allocation2 + $0x29] sm:$0xff]
        %v1677 = vld [vmem:[#allocation2 + $0x31] sm:$0xff]
        %v1678 = vld [vmem:[#allocation2 + $0x39] sm:$0xff]
        %v1679 = vld [vmem:[#allocation2 + $0x41] sm:$0xff]
        %v1680 = vld [vmem:[#allocation2 + $0x49] sm:$0xff]
        %v1681 = vld [vmem:[#allocation2 + $0x51] sm:$0xff]
        %v1682 = vld [vmem:[#allocation2 + $0x59] sm:$0xff]
        %v1683 = vld [vmem:[#allocation2 + $0x61] sm:$0xff]
        %v1684 = vld [vmem:[#allocation2 + $0x69] sm:$0xff]
        %v1685 = vld [vmem:[#allocation2 + $0x71] sm:$0xff]
        %v1686 = vld [vmem:[#allocation2 + $0x79] sm:$0xff]
        %v1687 = vld [vmem:[#allocation2 + $0x81] sm:$0xff]
        %v1688 = vld [vmem:[#allocation2 + $0x89] sm:$0xff]
        %v1689 = vld [vmem:[#allocation2 + $0x91] sm:$0xff]
        %v1690 = vld [vmem:[#allocation2 + $0x99] sm:$0xff]
        %s1691 = scalar_lea.vmem %s3, 32
        %v1692 = vld [vmem:[%s1691] sm:$0xff]
        %v1693 = vld [vmem:[%s1691 + $0x8] sm:$0xff]
        %v1694 = vld [vmem:[%s1691 + $0x10] sm:$0xff]
        %v1695 = vld [vmem:[%s1691 + $0x18] sm:$0xff]
        %v1697 = vsel %vm384, %v1671, 0
        %v1700 = vsel %vm384, %v1672, 0
        %v1703 = vsel %vm384, %v1673, 0
        %v1706 = vsel %vm384, %v1674, 0
        %v1709 = vsel %vm384, %v1675, 0
        %v1712 = vsel %vm384, %v1676, 0
        %v1715 = vsel %vm384, %v1677, 0
        %v1718 = vsel %vm384, %v1678, 0
        %v1721 = vsel %vm384, %v1679, 0
        %v1724 = vsel %vm384, %v1680, 0
        %v1727 = vsel %vm384, %v1681, 0
        %v1730 = vsel %vm384, %v1682, 0
        %v1733 = vsel %vm384, %v1683, 0
        %v1736 = vsel %vm384, %v1684, 0
        %v1739 = vsel %vm384, %v1685, 0
        %v1742 = vsel %vm384, %v1686, 0
        %v1745 = vsel %vm384, %v1687, 0
        %v1748 = vsel %vm384, %v1688, 0
        %v1751 = vsel %vm384, %v1689, 0
        %v1754 = vsel %vm384, %v1690, 0
        %1756 = vmatprep.subr.mxu0 0.0
        %1757 = vmatpush1.msra.mxu0 %v1692
        %1758 = vmatprep.subr.mxu0 0.0
        %1759 = vmatpush1.msra.mxu0 %v1693
        %1760 = vmatprep.subr.mxu0 0.0
        %1761 = vmatpush1.msra.mxu0 %v1694
        %1762 = vmatprep.subr.mxu0 0.0
        %1763 = vmatpush1.msra.mxu0 %v1695
        %1764 = vmatprep.subr.mxu0 0.0
        %1765 = vmatpush1.msra.mxu0 0.0
        %1766 = vmatprep.subr.mxu0 0.0
        %1767 = vmatpush1.msra.mxu0 0.0
        %1768 = vmatprep.subr.mxu0 0.0
        %1769 = vmatpush1.msra.mxu0 0.0
        %1770 = vmatprep.subr.mxu0 0.0
        %1771 = vmatpush1.msra.mxu0 0.0
        %1772 = vmatprep.subr.mxu0 0.0
        %1773 = vmatpush1.msra.mxu0 0.0
        %1774 = vmatprep.subr.mxu0 0.0
        %1775 = vmatpush1.msra.mxu0 0.0
        %1776 = vmatprep.subr.mxu0 0.0
        %1777 = vmatpush1.msra.mxu0 0.0
        %1778 = vmatprep.subr.mxu0 0.0
        %1779 = vmatpush1.msra.mxu0 0.0
        %1780 = vmatprep.subr.mxu0 0.0
        %1781 = vmatpush1.msra.mxu0 0.0
        %1782 = vmatprep.subr.mxu0 0.0
        %1783 = vmatpush1.msra.mxu0 0.0
        %1784 = vmatprep.subr.mxu0 0.0
        %1785 = vmatpush1.msra.mxu0 0.0
        %1786 = vmatprep.subr.mxu0 0.0
        %1787 = vmatpush1.msra.mxu0 0.0
        %1788 = vmatprep.subr.mxu0 0.0
        %1789 = vmatpush1.msra.mxu0 0.0
        %1790 = vmatprep.subr.mxu0 0.0
        %1791 = vmatpush1.msra.mxu0 0.0
        %1792 = vmatprep.subr.mxu0 0.0
        %1793 = vmatpush1.msra.mxu0 0.0
        %1794 = vmatprep.subr.mxu0 0.0
        %1795 = vmatpush1.msra.mxu0 0.0
        %1796 = vmatprep.subr.mxu0 0.0
        %1797 = vmatpush1.msra.mxu0 0.0
        %1798 = vmatprep.subr.mxu0 0.0
        %1799 = vmatpush1.msra.mxu0 0.0
        %1800 = vmatprep.subr.mxu0 0.0
        %1801 = vmatpush1.msra.mxu0 0.0
        %1802 = vmatprep.subr.mxu0 0.0
        %1803 = vmatpush1.msra.mxu0 0.0
        %1804 = vmatprep.subr.mxu0 0.0
        %1805 = vmatpush1.msra.mxu0 0.0
        %1806 = vmatprep.subr.mxu0 0.0
        %1807 = vmatpush1.msra.mxu0 0.0
        %1808 = vmatprep.subr.mxu0 0.0
        %1809 = vmatpush1.msra.mxu0 0.0
        %1810 = vmatprep.subr.mxu0 0.0
        %1811 = vmatpush1.msra.mxu0 0.0
        %1812 = vmatprep.subr.mxu0 0.0
        %1813 = vmatpush1.msra.mxu0 0.0
        %1814 = vmatprep.subr.mxu0 0.0
        %1815 = vmatpush1.msra.mxu0 0.0
        %1816 = vmatprep.subr.mxu0 0.0
        %1817 = vmatpush1.msra.mxu0 0.0
        %1818 = vmatprep.subr.mxu0 0.0
        %1819 = vmatpush1.msra.mxu0 0.0
        %1820 = vmatprep.mubr.f32.mxu0 0.0
        %1821 = vmatmul.mubr.f32.gmra.mrb[0].mxu0 %v1697
        %v1822 = vpop.f32.mrb[0].mxu0
        %v1823 = vadd.f32 0.0, %v1822
        %v1824 = vpop.f32.mrb[0].mxu0
        %1825 = vmatprep.mubr.f32.mxu0 0.0
        %1826 = vmatmul.mubr.f32.gmra.mrb[0].mxu0 %v1700
        %v1827 = vpop.f32.mrb[0].mxu0
        %v1828 = vadd.f32 0.0, %v1827
        %v1829 = vpop.f32.mrb[0].mxu0
        %1830 = vmatprep.mubr.f32.mxu0 0.0
        %1831 = vmatmul.mubr.f32.gmra.mrb[0].mxu0 %v1703
        %v1832 = vpop.f32.mrb[0].mxu0
        %v1833 = vadd.f32 0.0, %v1832
        %v1834 = vpop.f32.mrb[0].mxu0
        %1835 = vmatprep.mubr.f32.mxu0 0.0
        %1836 = vmatmul.mubr.f32.gmra.mrb[0].mxu0 %v1706
        %v1837 = vpop.f32.mrb[0].mxu0
        %v1838 = vadd.f32 0.0, %v1837
        %v1839 = vpop.f32.mrb[0].mxu0
        %1840 = vmatprep.mubr.f32.mxu0 0.0
        %1841 = vmatmul.mubr.f32.gmra.mrb[0].mxu0 %v1709
        %v1842 = vpop.f32.mrb[0].mxu0
        %v1843 = vadd.f32 0.0, %v1842
        %v1844 = vpop.f32.mrb[0].mxu0
        %1845 = vmatprep.mubr.f32.mxu0 0.0
        %1846 = vmatmul.mubr.f32.gmra.mrb[0].mxu0 %v1712
        %v1847 = vpop.f32.mrb[0].mxu0
        %v1848 = vadd.f32 0.0, %v1847
        %v1849 = vpop.f32.mrb[0].mxu0
        %1850 = vmatprep.mubr.f32.mxu0 0.0
        %1851 = vmatmul.mubr.f32.gmra.mrb[0].mxu0 %v1715
        %v1852 = vpop.f32.mrb[0].mxu0
        %v1853 = vadd.f32 0.0, %v1852
        %v1854 = vpop.f32.mrb[0].mxu0
        %1855 = vmatprep.mubr.f32.mxu0 0.0
        %1856 = vmatmul.mubr.f32.gmra.mrb[0].mxu0 %v1718
        %v1857 = vpop.f32.mrb[0].mxu0
        %v1858 = vadd.f32 0.0, %v1857
        %v1859 = vpop.f32.mrb[0].mxu0
        %1860 = vmatprep.mubr.f32.mxu0 0.0
        %1861 = vmatmul.mubr.f32.gmra.mrb[0].mxu0 %v1721
        %v1862 = vpop.f32.mrb[0].mxu0
        %v1863 = vadd.f32 0.0, %v1862
        %v1864 = vpop.f32.mrb[0].mxu0
        %1865 = vmatprep.mubr.f32.mxu0 0.0
        %1866 = vmatmul.mubr.f32.gmra.mrb[0].mxu0 %v1724
        %v1867 = vpop.f32.mrb[0].mxu0
        %v1868 = vadd.f32 0.0, %v1867
        %v1869 = vpop.f32.mrb[0].mxu0
        %1870 = vmatprep.mubr.f32.mxu0 0.0
        %1871 = vmatmul.mubr.f32.gmra.mrb[0].mxu0 %v1727
        %v1872 = vpop.f32.mrb[0].mxu0
        %v1873 = vadd.f32 0.0, %v1872
        %v1874 = vpop.f32.mrb[0].mxu0
        %1875 = vmatprep.mubr.f32.mxu0 0.0
        %1876 = vmatmul.mubr.f32.gmra.mrb[0].mxu0 %v1730
        %v1877 = vpop.f32.mrb[0].mxu0
        %v1878 = vadd.f32 0.0, %v1877
        %v1879 = vpop.f32.mrb[0].mxu0
        %1880 = vmatprep.mubr.f32.mxu0 0.0
        %1881 = vmatmul.mubr.f32.gmra.mrb[0].mxu0 %v1733
        %v1882 = vpop.f32.mrb[0].mxu0
        %v1883 = vadd.f32 0.0, %v1882
        %v1884 = vpop.f32.mrb[0].mxu0
        %1885 = vmatprep.mubr.f32.mxu0 0.0
        %1886 = vmatmul.mubr.f32.gmra.mrb[0].mxu0 %v1736
        %v1887 = vpop.f32.mrb[0].mxu0
        %v1888 = vadd.f32 0.0, %v1887
        %v1889 = vpop.f32.mrb[0].mxu0
        %1890 = vmatprep.mubr.f32.mxu0 0.0
        %1891 = vmatmul.mubr.f32.gmra.mrb[0].mxu0 %v1739
        %v1892 = vpop.f32.mrb[0].mxu0
        %v1893 = vadd.f32 0.0, %v1892
        %v1894 = vpop.f32.mrb[0].mxu0
        %1895 = vmatprep.mubr.f32.mxu0 0.0
        %1896 = vmatmul.mubr.f32.gmra.mrb[0].mxu0 %v1742
        %v1897 = vpop.f32.mrb[0].mxu0
        %v1898 = vadd.f32 0.0, %v1897
        %v1899 = vpop.f32.mrb[0].mxu0
        %1900 = vmatprep.mubr.f32.mxu0 0.0
        %1901 = vmatmul.mubr.f32.gmra.mrb[0].mxu0 %v1745
        %v1902 = vpop.f32.mrb[0].mxu0
        %v1903 = vadd.f32 0.0, %v1902
        %v1904 = vpop.f32.mrb[0].mxu0
        %1905 = vmatprep.mubr.f32.mxu0 0.0
        %1906 = vmatmul.mubr.f32.gmra.mrb[0].mxu0 %v1748
        %v1907 = vpop.f32.mrb[0].mxu0
        %v1908 = vadd.f32 0.0, %v1907
        %v1909 = vpop.f32.mrb[0].mxu0
        %1910 = vmatprep.mubr.f32.mxu0 0.0
        %1911 = vmatmul.mubr.f32.gmra.mrb[0].mxu0 %v1751
        %v1912 = vpop.f32.mrb[0].mxu0
        %v1913 = vadd.f32 0.0, %v1912
        %v1914 = vpop.f32.mrb[0].mxu0
        %1915 = vmatprep.mubr.f32.mxu0 0.0
        %1916 = vmatmul.mubr.f32.gmra.mrb[0].mxu0 %v1754
        %v1917 = vpop.f32.mrb[0].mxu0
        %v1918 = vadd.f32 0.0, %v1917
        %v1919 = vpop.f32.mrb[0].mxu0
        %1920 = vdwg.mxu0
        %v1922 = vsel %vm384, %v1647, 0
        %v1925 = vsel %vm384, %v1648, 0
        %v1928 = vsel %vm384, %v1649, 0
        %v1931 = vsel %vm384, %v1650, 0
        %v1934 = vsel %vm384, %v1651, 0
        %v1937 = vsel %vm384, %v1652, 0
        %v1940 = vsel %vm384, %v1653, 0
        %v1943 = vsel %vm384, %v1654, 0
        %v1946 = vsel %vm384, %v1655, 0
        %v1949 = vsel %vm384, %v1656, 0
        %v1952 = vsel %vm384, %v1657, 0
        %v1955 = vsel %vm384, %v1658, 0
        %v1958 = vsel %vm384, %v1659, 0
        %v1961 = vsel %vm384, %v1660, 0
        %v1964 = vsel %vm384, %v1661, 0
        %v1967 = vsel %vm384, %v1662, 0
        %v1970 = vsel %vm384, %v1663, 0
        %v1973 = vsel %vm384, %v1664, 0
        %v1976 = vsel %vm384, %v1665, 0
        %v1979 = vsel %vm384, %v1666, 0
        %1981 = vmatprep.subr.mxu0 0.0
        %1982 = vmatpush1.msra.mxu0 %v1667
        %1983 = vmatprep.subr.mxu0 0.0
        %1984 = vmatpush1.msra.mxu0 %v1668
        %1985 = vmatprep.subr.mxu0 0.0
        %1986 = vmatpush1.msra.mxu0 %v1669
        %1987 = vmatprep.subr.mxu0 0.0
        %1988 = vmatpush1.msra.mxu0 %v1670
        %1989 = vmatprep.subr.mxu0 0.0
        %1990 = vmatpush1.msra.mxu0 0.0
        %1991 = vmatprep.subr.mxu0 0.0
        %1992 = vmatpush1.msra.mxu0 0.0
        %1993 = vmatprep.subr.mxu0 0.0
        %1994 = vmatpush1.msra.mxu0 0.0
        %1995 = vmatprep.subr.mxu0 0.0
        %1996 = vmatpush1.msra.mxu0 0.0
        %1997 = vmatprep.subr.mxu0 0.0
        %1998 = vmatpush1.msra.mxu0 0.0
        %1999 = vmatprep.subr.mxu0 0.0
        %2000 = vmatpush1.msra.mxu0 0.0
        %2001 = vmatprep.subr.mxu0 0.0
        %2002 = vmatpush1.msra.mxu0 0.0
        %2003 = vmatprep.subr.mxu0 0.0
        %2004 = vmatpush1.msra.mxu0 0.0
        %2005 = vmatprep.subr.mxu0 0.0
        %2006 = vmatpush1.msra.mxu0 0.0
        %2007 = vmatprep.subr.mxu0 0.0
        %2008 = vmatpush1.msra.mxu0 0.0
        %2009 = vmatprep.subr.mxu0 0.0
        %2010 = vmatpush1.msra.mxu0 0.0
        %2011 = vmatprep.subr.mxu0 0.0
        %2012 = vmatpush1.msra.mxu0 0.0
        %2013 = vmatprep.subr.mxu0 0.0
        %2014 = vmatpush1.msra.mxu0 0.0
        %2015 = vmatprep.subr.mxu0 0.0
        %2016 = vmatpush1.msra.mxu0 0.0
        %2017 = vmatprep.subr.mxu0 0.0
        %2018 = vmatpush1.msra.mxu0 0.0
        %2019 = vmatprep.subr.mxu0 0.0
        %2020 = vmatpush1.msra.mxu0 0.0
        %2021 = vmatprep.subr.mxu0 0.0
        %2022 = vmatpush1.msra.mxu0 0.0
        %2023 = vmatprep.subr.mxu0 0.0
        %2024 = vmatpush1.msra.mxu0 0.0
        %2025 = vmatprep.subr.mxu0 0.0
        %2026 = vmatpush1.msra.mxu0 0.0
        %2027 = vmatprep.subr.mxu0 0.0
        %2028 = vmatpush1.msra.mxu0 0.0
        %2029 = vmatprep.subr.mxu0 0.0
        %2030 = vmatpush1.msra.mxu0 0.0
        %2031 = vmatprep.subr.mxu0 0.0
        %2032 = vmatpush1.msra.mxu0 0.0
        %2033 = vmatprep.subr.mxu0 0.0
        %2034 = vmatpush1.msra.mxu0 0.0
        %2035 = vmatprep.subr.mxu0 0.0
        %2036 = vmatpush1.msra.mxu0 0.0
        %2037 = vmatprep.subr.mxu0 0.0
        %2038 = vmatpush1.msra.mxu0 0.0
        %2039 = vmatprep.subr.mxu0 0.0
        %2040 = vmatpush1.msra.mxu0 0.0
        %2041 = vmatprep.subr.mxu0 0.0
        %2042 = vmatpush1.msra.mxu0 0.0
        %2043 = vmatprep.subr.mxu0 0.0
        %2044 = vmatpush1.msra.mxu0 0.0
        %2045 = vmatprep.mubr.f32.mxu0 0.0
        %2046 = vmatmul.mubr.f32.gmra.mrb[0].mxu0 %v1922
        %v2047 = vpop.f32.mrb[0].mxu0
        %v2048 = vadd.f32 %v1823, %v2047
        %v2049 = vpop.f32.mrb[0].mxu0
        %2050 = vmatprep.mubr.f32.mxu0 0.0
        %2051 = vmatmul.mubr.f32.gmra.mrb[0].mxu0 %v1925
        %v2052 = vpop.f32.mrb[0].mxu0
        %v2053 = vadd.f32 %v1828, %v2052
        %v2054 = vpop.f32.mrb[0].mxu0
        %2055 = vmatprep.mubr.f32.mxu0 0.0
        %2056 = vmatmul.mubr.f32.gmra.mrb[0].mxu0 %v1928
        %v2057 = vpop.f32.mrb[0].mxu0
        %v2058 = vadd.f32 %v1833, %v2057
        %v2059 = vpop.f32.mrb[0].mxu0
        %2060 = vmatprep.mubr.f32.mxu0 0.0
        %2061 = vmatmul.mubr.f32.gmra.mrb[0].mxu0 %v1931
        %v2062 = vpop.f32.mrb[0].mxu0
        %v2063 = vadd.f32 %v1838, %v2062
        %v2064 = vpop.f32.mrb[0].mxu0
        %2065 = vmatprep.mubr.f32.mxu0 0.0
        %2066 = vmatmul.mubr.f32.gmra.mrb[0].mxu0 %v1934
        %v2067 = vpop.f32.mrb[0].mxu0
        %v2068 = vadd.f32 %v1843, %v2067
        %v2069 = vpop.f32.mrb[0].mxu0
        %2070 = vmatprep.mubr.f32.mxu0 0.0
        %2071 = vmatmul.mubr.f32.gmra.mrb[0].mxu0 %v1937
        %v2072 = vpop.f32.mrb[0].mxu0
        %v2073 = vadd.f32 %v1848, %v2072
        %v2074 = vpop.f32.mrb[0].mxu0
        %2075 = vmatprep.mubr.f32.mxu0 0.0
        %2076 = vmatmul.mubr.f32.gmra.mrb[0].mxu0 %v1940
        %v2077 = vpop.f32.mrb[0].mxu0
        %v2078 = vadd.f32 %v1853, %v2077
        %v2079 = vpop.f32.mrb[0].mxu0
        %2080 = vmatprep.mubr.f32.mxu0 0.0
        %2081 = vmatmul.mubr.f32.gmra.mrb[0].mxu0 %v1943
        %v2082 = vpop.f32.mrb[0].mxu0
        %v2083 = vadd.f32 %v1858, %v2082
        %v2084 = vpop.f32.mrb[0].mxu0
        %2085 = vmatprep.mubr.f32.mxu0 0.0
        %2086 = vmatmul.mubr.f32.gmra.mrb[0].mxu0 %v1946
        %v2087 = vpop.f32.mrb[0].mxu0
        %v2088 = vadd.f32 %v1863, %v2087
        %v2089 = vpop.f32.mrb[0].mxu0
        %2090 = vmatprep.mubr.f32.mxu0 0.0
        %2091 = vmatmul.mubr.f32.gmra.mrb[0].mxu0 %v1949
        %v2092 = vpop.f32.mrb[0].mxu0
        %v2093 = vadd.f32 %v1868, %v2092
        %v2094 = vpop.f32.mrb[0].mxu0
        %2095 = vmatprep.mubr.f32.mxu0 0.0
        %2096 = vmatmul.mubr.f32.gmra.mrb[0].mxu0 %v1952
        %v2097 = vpop.f32.mrb[0].mxu0
        %v2098 = vadd.f32 %v1873, %v2097
        %v2099 = vpop.f32.mrb[0].mxu0
        %2100 = vmatprep.mubr.f32.mxu0 0.0
        %2101 = vmatmul.mubr.f32.gmra.mrb[0].mxu0 %v1955
        %v2102 = vpop.f32.mrb[0].mxu0
        %v2103 = vadd.f32 %v1878, %v2102
        %v2104 = vpop.f32.mrb[0].mxu0
        %2105 = vmatprep.mubr.f32.mxu0 0.0
        %2106 = vmatmul.mubr.f32.gmra.mrb[0].mxu0 %v1958
        %v2107 = vpop.f32.mrb[0].mxu0
        %v2108 = vadd.f32 %v1883, %v2107
        %v2109 = vpop.f32.mrb[0].mxu0
        %2110 = vmatprep.mubr.f32.mxu0 0.0
        %2111 = vmatmul.mubr.f32.gmra.mrb[0].mxu0 %v1961
        %v2112 = vpop.f32.mrb[0].mxu0
        %v2113 = vadd.f32 %v1888, %v2112
        %v2114 = vpop.f32.mrb[0].mxu0
        %2115 = vmatprep.mubr.f32.mxu0 0.0
        %2116 = vmatmul.mubr.f32.gmra.mrb[0].mxu0 %v1964
        %v2117 = vpop.f32.mrb[0].mxu0
        %v2118 = vadd.f32 %v1893, %v2117
        %v2119 = vpop.f32.mrb[0].mxu0
        %2120 = vmatprep.mubr.f32.mxu0 0.0
        %2121 = vmatmul.mubr.f32.gmra.mrb[0].mxu0 %v1967
        %v2122 = vpop.f32.mrb[0].mxu0
        %v2123 = vadd.f32 %v1898, %v2122
        %v2124 = vpop.f32.mrb[0].mxu0
        %2125 = vmatprep.mubr.f32.mxu0 0.0
        %2126 = vmatmul.mubr.f32.gmra.mrb[0].mxu0 %v1970
        %v2127 = vpop.f32.mrb[0].mxu0
        %v2128 = vadd.f32 %v1903, %v2127
        %v2129 = vpop.f32.mrb[0].mxu0
        %2130 = vmatprep.mubr.f32.mxu0 0.0
        %2131 = vmatmul.mubr.f32.gmra.mrb[0].mxu0 %v1973
        %v2132 = vpop.f32.mrb[0].mxu0
        %v2133 = vadd.f32 %v1908, %v2132
        %v2134 = vpop.f32.mrb[0].mxu0
        %2135 = vmatprep.mubr.f32.mxu0 0.0
        %2136 = vmatmul.mubr.f32.gmra.mrb[0].mxu0 %v1976
        %v2137 = vpop.f32.mrb[0].mxu0
        %v2138 = vadd.f32 %v1913, %v2137
        %v2139 = vpop.f32.mrb[0].mxu0
        %2140 = vmatprep.mubr.f32.mxu0 0.0
        %2141 = vmatmul.mubr.f32.gmra.mrb[0].mxu0 %v1979
        %v2142 = vpop.f32.mrb[0].mxu0
        %v2143 = vadd.f32 %v1918, %v2142
        %v2144 = vpop.f32.mrb[0].mxu0
        %2145 = vdwg.mxu0
        %v2146 = vld [vmem:[#allocation2 + $0x2] sm:$0xff]
        %v2147 = vld [vmem:[#allocation2 + $0xa] sm:$0xff]
        %v2148 = vld [vmem:[#allocation2 + $0x12] sm:$0xff]
        %v2149 = vld [vmem:[#allocation2 + $0x1a] sm:$0xff]
        %v2150 = vld [vmem:[#allocation2 + $0x22] sm:$0xff]
        %v2151 = vld [vmem:[#allocation2 + $0x2a] sm:$0xff]
        %v2152 = vld [vmem:[#allocation2 + $0x32] sm:$0xff]
        %v2153 = vld [vmem:[#allocation2 + $0x3a] sm:$0xff]
        %v2154 = vld [vmem:[#allocation2 + $0x42] sm:$0xff]
        %v2155 = vld [vmem:[#allocation2 + $0x4a] sm:$0xff]
        %v2156 = vld [vmem:[#allocation2 + $0x52] sm:$0xff]
        %v2157 = vld [vmem:[#allocation2 + $0x5a] sm:$0xff]
        %v2158 = vld [vmem:[#allocation2 + $0x62] sm:$0xff]
        %v2159 = vld [vmem:[#allocation2 + $0x6a] sm:$0xff]
        %v2160 = vld [vmem:[#allocation2 + $0x72] sm:$0xff]
        %v2161 = vld [vmem:[#allocation2 + $0x7a] sm:$0xff]
        %v2162 = vld [vmem:[#allocation2 + $0x82] sm:$0xff]
        %v2163 = vld [vmem:[#allocation2 + $0x8a] sm:$0xff]
        %v2164 = vld [vmem:[#allocation2 + $0x92] sm:$0xff]
        %v2165 = vld [vmem:[#allocation2 + $0x9a] sm:$0xff]
        %s2166 = scalar_lea.vmem %s3, 64
        %v2167 = vld [vmem:[%s2166] sm:$0xff]
        %v2168 = vld [vmem:[%s2166 + $0x8] sm:$0xff]
        %v2169 = vld [vmem:[%s2166 + $0x10] sm:$0xff]
        %v2170 = vld [vmem:[%s2166 + $0x18] sm:$0xff]
        %v2172 = vsel %vm384, %v2146, 0
        %v2175 = vsel %vm384, %v2147, 0
        %v2178 = vsel %vm384, %v2148, 0
        %v2181 = vsel %vm384, %v2149, 0
        %v2184 = vsel %vm384, %v2150, 0
        %v2187 = vsel %vm384, %v2151, 0
        %v2190 = vsel %vm384, %v2152, 0
        %v2193 = vsel %vm384, %v2153, 0
        %v2196 = vsel %vm384, %v2154, 0
        %v2199 = vsel %vm384, %v2155, 0
        %v2202 = vsel %vm384, %v2156, 0
        %v2205 = vsel %vm384, %v2157, 0
        %v2208 = vsel %vm384, %v2158, 0
        %v2211 = vsel %vm384, %v2159, 0
        %v2214 = vsel %vm384, %v2160, 0
        %v2217 = vsel %vm384, %v2161, 0
        %v2220 = vsel %vm384, %v2162, 0
        %v2223 = vsel %vm384, %v2163, 0
        %v2226 = vsel %vm384, %v2164, 0
        %v2229 = vsel %vm384, %v2165, 0
        %2231 = vmatprep.subr.mxu0 0.0
        %2232 = vmatpush1.msra.mxu0 %v2167
        %2233 = vmatprep.subr.mxu0 0.0
        %2234 = vmatpush1.msra.mxu0 %v2168
        %2235 = vmatprep.subr.mxu0 0.0
        %2236 = vmatpush1.msra.mxu0 %v2169
        %2237 = vmatprep.subr.mxu0 0.0
        %2238 = vmatpush1.msra.mxu0 %v2170
        %2239 = vmatprep.subr.mxu0 0.0
        %2240 = vmatpush1.msra.mxu0 0.0
        %2241 = vmatprep.subr.mxu0 0.0
        %2242 = vmatpush1.msra.mxu0 0.0
        %2243 = vmatprep.subr.mxu0 0.0
        %2244 = vmatpush1.msra.mxu0 0.0
        %2245 = vmatprep.subr.mxu0 0.0
        %2246 = vmatpush1.msra.mxu0 0.0
        %2247 = vmatprep.subr.mxu0 0.0
        %2248 = vmatpush1.msra.mxu0 0.0
        %2249 = vmatprep.subr.mxu0 0.0
        %2250 = vmatpush1.msra.mxu0 0.0
        %2251 = vmatprep.subr.mxu0 0.0
        %2252 = vmatpush1.msra.mxu0 0.0
        %2253 = vmatprep.subr.mxu0 0.0
        %2254 = vmatpush1.msra.mxu0 0.0
        %2255 = vmatprep.subr.mxu0 0.0
        %2256 = vmatpush1.msra.mxu0 0.0
        %2257 = vmatprep.subr.mxu0 0.0
        %2258 = vmatpush1.msra.mxu0 0.0
        %2259 = vmatprep.subr.mxu0 0.0
        %2260 = vmatpush1.msra.mxu0 0.0
        %2261 = vmatprep.subr.mxu0 0.0
        %2262 = vmatpush1.msra.mxu0 0.0
        %2263 = vmatprep.subr.mxu0 0.0
        %2264 = vmatpush1.msra.mxu0 0.0
        %2265 = vmatprep.subr.mxu0 0.0
        %2266 = vmatpush1.msra.mxu0 0.0
        %2267 = vmatprep.subr.mxu0 0.0
        %2268 = vmatpush1.msra.mxu0 0.0
        %2269 = vmatprep.subr.mxu0 0.0
        %2270 = vmatpush1.msra.mxu0 0.0
        %2271 = vmatprep.subr.mxu0 0.0
        %2272 = vmatpush1.msra.mxu0 0.0
        %2273 = vmatprep.subr.mxu0 0.0
        %2274 = vmatpush1.msra.mxu0 0.0
        %2275 = vmatprep.subr.mxu0 0.0
        %2276 = vmatpush1.msra.mxu0 0.0
        %2277 = vmatprep.subr.mxu0 0.0
        %2278 = vmatpush1.msra.mxu0 0.0
        %2279 = vmatprep.subr.mxu0 0.0
        %2280 = vmatpush1.msra.mxu0 0.0
        %2281 = vmatprep.subr.mxu0 0.0
        %2282 = vmatpush1.msra.mxu0 0.0
        %2283 = vmatprep.subr.mxu0 0.0
        %2284 = vmatpush1.msra.mxu0 0.0
        %2285 = vmatprep.subr.mxu0 0.0
        %2286 = vmatpush1.msra.mxu0 0.0
        %2287 = vmatprep.subr.mxu0 0.0
        %2288 = vmatpush1.msra.mxu0 0.0
        %2289 = vmatprep.subr.mxu0 0.0
        %2290 = vmatpush1.msra.mxu0 0.0
        %2291 = vmatprep.subr.mxu0 0.0
        %2292 = vmatpush1.msra.mxu0 0.0
        %2293 = vmatprep.subr.mxu0 0.0
        %2294 = vmatpush1.msra.mxu0 0.0
        %2295 = vmatprep.mubr.f32.mxu0 0.0
        %2296 = vmatmul.mubr.f32.gmra.mrb[0].mxu0 %v2172
        %v2297 = vpop.f32.mrb[0].mxu0
        %v2298 = vadd.f32 0.0, %v2297
        %v2299 = vpop.f32.mrb[0].mxu0
        %2300 = vmatprep.mubr.f32.mxu0 0.0
        %2301 = vmatmul.mubr.f32.gmra.mrb[0].mxu0 %v2175
        %v2302 = vpop.f32.mrb[0].mxu0
        %v2303 = vadd.f32 0.0, %v2302
        %v2304 = vpop.f32.mrb[0].mxu0
        %2305 = vmatprep.mubr.f32.mxu0 0.0
        %2306 = vmatmul.mubr.f32.gmra.mrb[0].mxu0 %v2178
        %v2307 = vpop.f32.mrb[0].mxu0
        %v2308 = vadd.f32 0.0, %v2307
        %v2309 = vpop.f32.mrb[0].mxu0
        %2310 = vmatprep.mubr.f32.mxu0 0.0
        %2311 = vmatmul.mubr.f32.gmra.mrb[0].mxu0 %v2181
        %v2312 = vpop.f32.mrb[0].mxu0
        %v2313 = vadd.f32 0.0, %v2312
        %v2314 = vpop.f32.mrb[0].mxu0
        %2315 = vmatprep.mubr.f32.mxu0 0.0
        %2316 = vmatmul.mubr.f32.gmra.mrb[0].mxu0 %v2184
        %v2317 = vpop.f32.mrb[0].mxu0
        %v2318 = vadd.f32 0.0, %v2317
        %v2319 = vpop.f32.mrb[0].mxu0
        %2320 = vmatprep.mubr.f32.mxu0 0.0
        %2321 = vmatmul.mubr.f32.gmra.mrb[0].mxu0 %v2187
        %v2322 = vpop.f32.mrb[0].mxu0
        %v2323 = vadd.f32 0.0, %v2322
        %v2324 = vpop.f32.mrb[0].mxu0
        %2325 = vmatprep.mubr.f32.mxu0 0.0
        %2326 = vmatmul.mubr.f32.gmra.mrb[0].mxu0 %v2190
        %v2327 = vpop.f32.mrb[0].mxu0
        %v2328 = vadd.f32 0.0, %v2327
        %v2329 = vpop.f32.mrb[0].mxu0
        %2330 = vmatprep.mubr.f32.mxu0 0.0
        %2331 = vmatmul.mubr.f32.gmra.mrb[0].mxu0 %v2193
        %v2332 = vpop.f32.mrb[0].mxu0
        %v2333 = vadd.f32 0.0, %v2332
        %v2334 = vpop.f32.mrb[0].mxu0
        %2335 = vmatprep.mubr.f32.mxu0 0.0
        %2336 = vmatmul.mubr.f32.gmra.mrb[0].mxu0 %v2196
        %v2337 = vpop.f32.mrb[0].mxu0
        %v2338 = vadd.f32 0.0, %v2337
        %v2339 = vpop.f32.mrb[0].mxu0
        %2340 = vmatprep.mubr.f32.mxu0 0.0
        %2341 = vmatmul.mubr.f32.gmra.mrb[0].mxu0 %v2199
        %v2342 = vpop.f32.mrb[0].mxu0
        %v2343 = vadd.f32 0.0, %v2342
        %v2344 = vpop.f32.mrb[0].mxu0
        %2345 = vmatprep.mubr.f32.mxu0 0.0
        %2346 = vmatmul.mubr.f32.gmra.mrb[0].mxu0 %v2202
        %v2347 = vpop.f32.mrb[0].mxu0
        %v2348 = vadd.f32 0.0, %v2347
        %v2349 = vpop.f32.mrb[0].mxu0
        %2350 = vmatprep.mubr.f32.mxu0 0.0
        %2351 = vmatmul.mubr.f32.gmra.mrb[0].mxu0 %v2205
        %v2352 = vpop.f32.mrb[0].mxu0
        %v2353 = vadd.f32 0.0, %v2352
        %v2354 = vpop.f32.mrb[0].mxu0
        %2355 = vmatprep.mubr.f32.mxu0 0.0
        %2356 = vmatmul.mubr.f32.gmra.mrb[0].mxu0 %v2208
        %v2357 = vpop.f32.mrb[0].mxu0
        %v2358 = vadd.f32 0.0, %v2357
        %v2359 = vpop.f32.mrb[0].mxu0
        %2360 = vmatprep.mubr.f32.mxu0 0.0
        %2361 = vmatmul.mubr.f32.gmra.mrb[0].mxu0 %v2211
        %v2362 = vpop.f32.mrb[0].mxu0
        %v2363 = vadd.f32 0.0, %v2362
        %v2364 = vpop.f32.mrb[0].mxu0
        %2365 = vmatprep.mubr.f32.mxu0 0.0
        %2366 = vmatmul.mubr.f32.gmra.mrb[0].mxu0 %v2214
        %v2367 = vpop.f32.mrb[0].mxu0
        %v2368 = vadd.f32 0.0, %v2367
        %v2369 = vpop.f32.mrb[0].mxu0
        %2370 = vmatprep.mubr.f32.mxu0 0.0
        %2371 = vmatmul.mubr.f32.gmra.mrb[0].mxu0 %v2217
        %v2372 = vpop.f32.mrb[0].mxu0
        %v2373 = vadd.f32 0.0, %v2372
        %v2374 = vpop.f32.mrb[0].mxu0
        %2375 = vmatprep.mubr.f32.mxu0 0.0
        %2376 = vmatmul.mubr.f32.gmra.mrb[0].mxu0 %v2220
        %v2377 = vpop.f32.mrb[0].mxu0
        %v2378 = vadd.f32 0.0, %v2377
        %v2379 = vpop.f32.mrb[0].mxu0
        %2380 = vmatprep.mubr.f32.mxu0 0.0
        %2381 = vmatmul.mubr.f32.gmra.mrb[0].mxu0 %v2223
        %v2382 = vpop.f32.mrb[0].mxu0
        %v2383 = vadd.f32 0.0, %v2382
        %v2384 = vpop.f32.mrb[0].mxu0
        %2385 = vmatprep.mubr.f32.mxu0 0.0
        %2386 = vmatmul.mubr.f32.gmra.mrb[0].mxu0 %v2226
        %v2387 = vpop.f32.mrb[0].mxu0
        %v2388 = vadd.f32 0.0, %v2387
        %v2389 = vpop.f32.mrb[0].mxu0
        %2390 = vmatprep.mubr.f32.mxu0 0.0
        %2391 = vmatmul.mubr.f32.gmra.mrb[0].mxu0 %v2229
        %v2392 = vpop.f32.mrb[0].mxu0
        %v2393 = vadd.f32 0.0, %v2392
        %v2394 = vpop.f32.mrb[0].mxu0
        %2395 = vdwg.mxu0
        %v2396 = vadd.f32 %v2048, %v2298
        %v2397 = vadd.f32 %v2053, %v2303
        %v2398 = vadd.f32 %v2058, %v2308
        %v2399 = vadd.f32 %v2063, %v2313
        %v2400 = vadd.f32 %v2068, %v2318
        %v2401 = vadd.f32 %v2073, %v2323
        %v2402 = vadd.f32 %v2078, %v2328
        %v2403 = vadd.f32 %v2083, %v2333
        %v2404 = vadd.f32 %v2088, %v2338
        %v2405 = vadd.f32 %v2093, %v2343
        %v2406 = vadd.f32 %v2098, %v2348
        %v2407 = vadd.f32 %v2103, %v2353
        %v2408 = vadd.f32 %v2108, %v2358
        %v2409 = vadd.f32 %v2113, %v2363
        %v2410 = vadd.f32 %v2118, %v2368
        %v2411 = vadd.f32 %v2123, %v2373
        %v2412 = vadd.f32 %v2128, %v2378
        %v2413 = vadd.f32 %v2133, %v2383
        %v2414 = vadd.f32 %v2138, %v2388
        %v2415 = vadd.f32 %v2143, %v2393
        %v2416 = vld [vmem:[#allocation2 + $0x10] sm:$0xff]
        %v2417 = vld [vmem:[#allocation2 + $0x18] sm:$0xff]
        %v2418 = vld [vmem:[#allocation2 + $0x20] sm:$0xff]
        %v2419 = vld [vmem:[#allocation2 + $0x28] sm:$0xff]
        %v2420 = vld [vmem:[#allocation2 + $0x30] sm:$0xff]
        %v2421 = vld [vmem:[#allocation2 + $0x38] sm:$0xff]
        %v2422 = vld [vmem:[#allocation2 + $0x40] sm:$0xff]
        %v2423 = vld [vmem:[#allocation2 + $0x48] sm:$0xff]
        %v2424 = vld [vmem:[#allocation2 + $0x50] sm:$0xff]
        %v2425 = vld [vmem:[#allocation2 + $0x58] sm:$0xff]
        %v2426 = vld [vmem:[#allocation2 + $0x60] sm:$0xff]
        %v2427 = vld [vmem:[#allocation2 + $0x68] sm:$0xff]
        %v2428 = vld [vmem:[#allocation2 + $0x70] sm:$0xff]
        %v2429 = vld [vmem:[#allocation2 + $0x78] sm:$0xff]
        %v2430 = vld [vmem:[#allocation2 + $0x80] sm:$0xff]
        %v2431 = vld [vmem:[#allocation2 + $0x88] sm:$0xff]
        %v2432 = vld [vmem:[#allocation2 + $0x90] sm:$0xff]
        %v2433 = vld [vmem:[#allocation2 + $0x98] sm:$0xff]
        %v2434 = vld [vmem:[#allocation2 + $0xa0] sm:$0xff]
        %v2435 = vld [vmem:[#allocation2 + $0xa8] sm:$0xff]
        %s2436 = scalar_lea.vmem %s3, 96
        %v2437 = vld [vmem:[%s2436] sm:$0xff]
        %v2438 = vld [vmem:[%s2436 + $0x8] sm:$0xff]
        %v2439 = vld [vmem:[%s2436 + $0x10] sm:$0xff]
        %v2440 = vld [vmem:[%s2436 + $0x18] sm:$0xff]
        %v2442 = vsel %vm384, %v2416, 0
        %v2445 = vsel %vm384, %v2417, 0
        %v2448 = vsel %vm384, %v2418, 0
        %v2451 = vsel %vm384, %v2419, 0
        %v2454 = vsel %vm384, %v2420, 0
        %v2457 = vsel %vm384, %v2421, 0
        %v2460 = vsel %vm384, %v2422, 0
        %v2463 = vsel %vm384, %v2423, 0
        %v2466 = vsel %vm384, %v2424, 0
        %v2469 = vsel %vm384, %v2425, 0
        %v2472 = vsel %vm384, %v2426, 0
        %v2475 = vsel %vm384, %v2427, 0
        %v2478 = vsel %vm384, %v2428, 0
        %v2481 = vsel %vm384, %v2429, 0
        %v2484 = vsel %vm384, %v2430, 0
        %v2487 = vsel %vm384, %v2431, 0
        %v2490 = vsel %vm384, %v2432, 0
        %v2493 = vsel %vm384, %v2433, 0
        %v2496 = vsel %vm384, %v2434, 0
        %v2499 = vsel %vm384, %v2435, 0
        %2501 = vmatprep.subr.mxu0 0.0
        %2502 = vmatpush1.msra.mxu0 %v2437
        %2503 = vmatprep.subr.mxu0 0.0
        %2504 = vmatpush1.msra.mxu0 %v2438
        %2505 = vmatprep.subr.mxu0 0.0
        %2506 = vmatpush1.msra.mxu0 %v2439
        %2507 = vmatprep.subr.mxu0 0.0
        %2508 = vmatpush1.msra.mxu0 %v2440
        %2509 = vmatprep.subr.mxu0 0.0
        %2510 = vmatpush1.msra.mxu0 0.0
        %2511 = vmatprep.subr.mxu0 0.0
        %2512 = vmatpush1.msra.mxu0 0.0
        %2513 = vmatprep.subr.mxu0 0.0
        %2514 = vmatpush1.msra.mxu0 0.0
        %2515 = vmatprep.subr.mxu0 0.0
        %2516 = vmatpush1.msra.mxu0 0.0
        %2517 = vmatprep.subr.mxu0 0.0
        %2518 = vmatpush1.msra.mxu0 0.0
        %2519 = vmatprep.subr.mxu0 0.0
        %2520 = vmatpush1.msra.mxu0 0.0
        %2521 = vmatprep.subr.mxu0 0.0
        %2522 = vmatpush1.msra.mxu0 0.0
        %2523 = vmatprep.subr.mxu0 0.0
        %2524 = vmatpush1.msra.mxu0 0.0
        %2525 = vmatprep.subr.mxu0 0.0
        %2526 = vmatpush1.msra.mxu0 0.0
        %2527 = vmatprep.subr.mxu0 0.0
        %2528 = vmatpush1.msra.mxu0 0.0
        %2529 = vmatprep.subr.mxu0 0.0
        %2530 = vmatpush1.msra.mxu0 0.0
        %2531 = vmatprep.subr.mxu0 0.0
        %2532 = vmatpush1.msra.mxu0 0.0
        %2533 = vmatprep.subr.mxu0 0.0
        %2534 = vmatpush1.msra.mxu0 0.0
        %2535 = vmatprep.subr.mxu0 0.0
        %2536 = vmatpush1.msra.mxu0 0.0
        %2537 = vmatprep.subr.mxu0 0.0
        %2538 = vmatpush1.msra.mxu0 0.0
        %2539 = vmatprep.subr.mxu0 0.0
        %2540 = vmatpush1.msra.mxu0 0.0
        %2541 = vmatprep.subr.mxu0 0.0
        %2542 = vmatpush1.msra.mxu0 0.0
        %2543 = vmatprep.subr.mxu0 0.0
        %2544 = vmatpush1.msra.mxu0 0.0
        %2545 = vmatprep.subr.mxu0 0.0
        %2546 = vmatpush1.msra.mxu0 0.0
        %2547 = vmatprep.subr.mxu0 0.0
        %2548 = vmatpush1.msra.mxu0 0.0
        %2549 = vmatprep.subr.mxu0 0.0
        %2550 = vmatpush1.msra.mxu0 0.0
        %2551 = vmatprep.subr.mxu0 0.0
        %2552 = vmatpush1.msra.mxu0 0.0
        %2553 = vmatprep.subr.mxu0 0.0
        %2554 = vmatpush1.msra.mxu0 0.0
        %2555 = vmatprep.subr.mxu0 0.0
        %2556 = vmatpush1.msra.mxu0 0.0
        %2557 = vmatprep.subr.mxu0 0.0
        %2558 = vmatpush1.msra.mxu0 0.0
        %2559 = vmatprep.subr.mxu0 0.0
        %2560 = vmatpush1.msra.mxu0 0.0
        %2561 = vmatprep.subr.mxu0 0.0
        %2562 = vmatpush1.msra.mxu0 0.0
        %2563 = vmatprep.subr.mxu0 0.0
        %2564 = vmatpush1.msra.mxu0 0.0
        %2565 = vmatprep.mubr.f32.mxu0 0.0
        %2566 = vmatmul.mubr.f32.gmra.mrb[0].mxu0 %v2442
        %v2567 = vpop.f32.mrb[0].mxu0
        %v2568 = vadd.f32 0.0, %v2567
        %v2569 = vpop.f32.mrb[0].mxu0
        %2570 = vmatprep.mubr.f32.mxu0 0.0
        %2571 = vmatmul.mubr.f32.gmra.mrb[0].mxu0 %v2445
        %v2572 = vpop.f32.mrb[0].mxu0
        %v2573 = vadd.f32 0.0, %v2572
        %v2574 = vpop.f32.mrb[0].mxu0
        %2575 = vmatprep.mubr.f32.mxu0 0.0
        %2576 = vmatmul.mubr.f32.gmra.mrb[0].mxu0 %v2448
        %v2577 = vpop.f32.mrb[0].mxu0
        %v2578 = vadd.f32 0.0, %v2577
        %v2579 = vpop.f32.mrb[0].mxu0
        %2580 = vmatprep.mubr.f32.mxu0 0.0
        %2581 = vmatmul.mubr.f32.gmra.mrb[0].mxu0 %v2451
        %v2582 = vpop.f32.mrb[0].mxu0
        %v2583 = vadd.f32 0.0, %v2582
        %v2584 = vpop.f32.mrb[0].mxu0
        %2585 = vmatprep.mubr.f32.mxu0 0.0
        %2586 = vmatmul.mubr.f32.gmra.mrb[0].mxu0 %v2454
        %v2587 = vpop.f32.mrb[0].mxu0
        %v2588 = vadd.f32 0.0, %v2587
        %v2589 = vpop.f32.mrb[0].mxu0
        %2590 = vmatprep.mubr.f32.mxu0 0.0
        %2591 = vmatmul.mubr.f32.gmra.mrb[0].mxu0 %v2457
        %v2592 = vpop.f32.mrb[0].mxu0
        %v2593 = vadd.f32 0.0, %v2592
        %v2594 = vpop.f32.mrb[0].mxu0
        %2595 = vmatprep.mubr.f32.mxu0 0.0
        %2596 = vmatmul.mubr.f32.gmra.mrb[0].mxu0 %v2460
        %v2597 = vpop.f32.mrb[0].mxu0
        %v2598 = vadd.f32 0.0, %v2597
        %v2599 = vpop.f32.mrb[0].mxu0
        %2600 = vmatprep.mubr.f32.mxu0 0.0
        %2601 = vmatmul.mubr.f32.gmra.mrb[0].mxu0 %v2463
        %v2602 = vpop.f32.mrb[0].mxu0
        %v2603 = vadd.f32 0.0, %v2602
        %v2604 = vpop.f32.mrb[0].mxu0
        %2605 = vmatprep.mubr.f32.mxu0 0.0
        %2606 = vmatmul.mubr.f32.gmra.mrb[0].mxu0 %v2466
        %v2607 = vpop.f32.mrb[0].mxu0
        %v2608 = vadd.f32 0.0, %v2607
        %v2609 = vpop.f32.mrb[0].mxu0
        %2610 = vmatprep.mubr.f32.mxu0 0.0
        %2611 = vmatmul.mubr.f32.gmra.mrb[0].mxu0 %v2469
        %v2612 = vpop.f32.mrb[0].mxu0
        %v2613 = vadd.f32 0.0, %v2612
        %v2614 = vpop.f32.mrb[0].mxu0
        %2615 = vmatprep.mubr.f32.mxu0 0.0
        %2616 = vmatmul.mubr.f32.gmra.mrb[0].mxu0 %v2472
        %v2617 = vpop.f32.mrb[0].mxu0
        %v2618 = vadd.f32 0.0, %v2617
        %v2619 = vpop.f32.mrb[0].mxu0
        %2620 = vmatprep.mubr.f32.mxu0 0.0
        %2621 = vmatmul.mubr.f32.gmra.mrb[0].mxu0 %v2475
        %v2622 = vpop.f32.mrb[0].mxu0
        %v2623 = vadd.f32 0.0, %v2622
        %v2624 = vpop.f32.mrb[0].mxu0
        %2625 = vmatprep.mubr.f32.mxu0 0.0
        %2626 = vmatmul.mubr.f32.gmra.mrb[0].mxu0 %v2478
        %v2627 = vpop.f32.mrb[0].mxu0
        %v2628 = vadd.f32 0.0, %v2627
        %v2629 = vpop.f32.mrb[0].mxu0
        %2630 = vmatprep.mubr.f32.mxu0 0.0
        %2631 = vmatmul.mubr.f32.gmra.mrb[0].mxu0 %v2481
        %v2632 = vpop.f32.mrb[0].mxu0
        %v2633 = vadd.f32 0.0, %v2632
        %v2634 = vpop.f32.mrb[0].mxu0
        %2635 = vmatprep.mubr.f32.mxu0 0.0
        %2636 = vmatmul.mubr.f32.gmra.mrb[0].mxu0 %v2484
        %v2637 = vpop.f32.mrb[0].mxu0
        %v2638 = vadd.f32 0.0, %v2637
        %v2639 = vpop.f32.mrb[0].mxu0
        %2640 = vmatprep.mubr.f32.mxu0 0.0
        %2641 = vmatmul.mubr.f32.gmra.mrb[0].mxu0 %v2487
        %v2642 = vpop.f32.mrb[0].mxu0
        %v2643 = vadd.f32 0.0, %v2642
        %v2644 = vpop.f32.mrb[0].mxu0
        %2645 = vmatprep.mubr.f32.mxu0 0.0
        %2646 = vmatmul.mubr.f32.gmra.mrb[0].mxu0 %v2490
        %v2647 = vpop.f32.mrb[0].mxu0
        %v2648 = vadd.f32 0.0, %v2647
        %v2649 = vpop.f32.mrb[0].mxu0
        %2650 = vmatprep.mubr.f32.mxu0 0.0
        %2651 = vmatmul.mubr.f32.gmra.mrb[0].mxu0 %v2493
        %v2652 = vpop.f32.mrb[0].mxu0
        %v2653 = vadd.f32 0.0, %v2652
        %v2654 = vpop.f32.mrb[0].mxu0
        %2655 = vmatprep.mubr.f32.mxu0 0.0
        %2656 = vmatmul.mubr.f32.gmra.mrb[0].mxu0 %v2496
        %v2657 = vpop.f32.mrb[0].mxu0
        %v2658 = vadd.f32 0.0, %v2657
        %v2659 = vpop.f32.mrb[0].mxu0
        %2660 = vmatprep.mubr.f32.mxu0 0.0
        %2661 = vmatmul.mubr.f32.gmra.mrb[0].mxu0 %v2499
        %v2662 = vpop.f32.mrb[0].mxu0
        %v2663 = vadd.f32 0.0, %v2662
        %v2664 = vpop.f32.mrb[0].mxu0
        %2665 = vdwg.mxu0
        %v2666 = vadd.f32 %v2396, %v2568
        %v2667 = vadd.f32 %v2397, %v2573
        %v2668 = vadd.f32 %v2398, %v2578
        %v2669 = vadd.f32 %v2399, %v2583
        %v2670 = vadd.f32 %v2400, %v2588
        %v2671 = vadd.f32 %v2401, %v2593
        %v2672 = vadd.f32 %v2402, %v2598
        %v2673 = vadd.f32 %v2403, %v2603
        %v2674 = vadd.f32 %v2404, %v2608
        %v2675 = vadd.f32 %v2405, %v2613
        %v2676 = vadd.f32 %v2406, %v2618
        %v2677 = vadd.f32 %v2407, %v2623
        %v2678 = vadd.f32 %v2408, %v2628
        %v2679 = vadd.f32 %v2409, %v2633
        %v2680 = vadd.f32 %v2410, %v2638
        %v2681 = vadd.f32 %v2411, %v2643
        %v2682 = vadd.f32 %v2412, %v2648
        %v2683 = vadd.f32 %v2413, %v2653
        %v2684 = vadd.f32 %v2414, %v2658
        %v2685 = vadd.f32 %v2415, %v2663
        %v2686 = vld [vmem:[#allocation2 + $0x11] sm:$0xff]
        %v2687 = vld [vmem:[#allocation2 + $0x19] sm:$0xff]
        %v2688 = vld [vmem:[#allocation2 + $0x21] sm:$0xff]
        %v2689 = vld [vmem:[#allocation2 + $0x29] sm:$0xff]
        %v2690 = vld [vmem:[#allocation2 + $0x31] sm:$0xff]
        %v2691 = vld [vmem:[#allocation2 + $0x39] sm:$0xff]
        %v2692 = vld [vmem:[#allocation2 + $0x41] sm:$0xff]
        %v2693 = vld [vmem:[#allocation2 + $0x49] sm:$0xff]
        %v2694 = vld [vmem:[#allocation2 + $0x51] sm:$0xff]
        %v2695 = vld [vmem:[#allocation2 + $0x59] sm:$0xff]
        %v2696 = vld [vmem:[#allocation2 + $0x61] sm:$0xff]
        %v2697 = vld [vmem:[#allocation2 + $0x69] sm:$0xff]
        %v2698 = vld [vmem:[#allocation2 + $0x71] sm:$0xff]
        %v2699 = vld [vmem:[#allocation2 + $0x79] sm:$0xff]
        %v2700 = vld [vmem:[#allocation2 + $0x81] sm:$0xff]
        %v2701 = vld [vmem:[#allocation2 + $0x89] sm:$0xff]
        %v2702 = vld [vmem:[#allocation2 + $0x91] sm:$0xff]
        %v2703 = vld [vmem:[#allocation2 + $0x99] sm:$0xff]
        %v2704 = vld [vmem:[#allocation2 + $0xa1] sm:$0xff]
        %v2705 = vld [vmem:[#allocation2 + $0xa9] sm:$0xff]
        %s2706 = scalar_lea.vmem %s3, 128
        %v2707 = vld [vmem:[%s2706] sm:$0xff]
        %v2708 = vld [vmem:[%s2706 + $0x8] sm:$0xff]
        %v2709 = vld [vmem:[%s2706 + $0x10] sm:$0xff]
        %v2710 = vld [vmem:[%s2706 + $0x18] sm:$0xff]
        %v2712 = vsel %vm384, %v2686, 0
        %v2715 = vsel %vm384, %v2687, 0
        %v2718 = vsel %vm384, %v2688, 0
        %v2721 = vsel %vm384, %v2689, 0
        %v2724 = vsel %vm384, %v2690, 0
        %v2727 = vsel %vm384, %v2691, 0
        %v2730 = vsel %vm384, %v2692, 0
        %v2733 = vsel %vm384, %v2693, 0
        %v2736 = vsel %vm384, %v2694, 0
        %v2739 = vsel %vm384, %v2695, 0
        %v2742 = vsel %vm384, %v2696, 0
        %v2745 = vsel %vm384, %v2697, 0
        %v2748 = vsel %vm384, %v2698, 0
        %v2751 = vsel %vm384, %v2699, 0
        %v2754 = vsel %vm384, %v2700, 0
        %v2757 = vsel %vm384, %v2701, 0
        %v2760 = vsel %vm384, %v2702, 0
        %v2763 = vsel %vm384, %v2703, 0
        %v2766 = vsel %vm384, %v2704, 0
        %v2769 = vsel %vm384, %v2705, 0
        %2771 = vmatprep.subr.mxu0 0.0
        %2772 = vmatpush1.msra.mxu0 %v2707
        %2773 = vmatprep.subr.mxu0 0.0
        %2774 = vmatpush1.msra.mxu0 %v2708
        %2775 = vmatprep.subr.mxu0 0.0
        %2776 = vmatpush1.msra.mxu0 %v2709
        %2777 = vmatprep.subr.mxu0 0.0
        %2778 = vmatpush1.msra.mxu0 %v2710
        %2779 = vmatprep.subr.mxu0 0.0
        %2780 = vmatpush1.msra.mxu0 0.0
        %2781 = vmatprep.subr.mxu0 0.0
        %2782 = vmatpush1.msra.mxu0 0.0
        %2783 = vmatprep.subr.mxu0 0.0
        %2784 = vmatpush1.msra.mxu0 0.0
        %2785 = vmatprep.subr.mxu0 0.0
        %2786 = vmatpush1.msra.mxu0 0.0
        %2787 = vmatprep.subr.mxu0 0.0
        %2788 = vmatpush1.msra.mxu0 0.0
        %2789 = vmatprep.subr.mxu0 0.0
        %2790 = vmatpush1.msra.mxu0 0.0
        %2791 = vmatprep.subr.mxu0 0.0
        %2792 = vmatpush1.msra.mxu0 0.0
        %2793 = vmatprep.subr.mxu0 0.0
        %2794 = vmatpush1.msra.mxu0 0.0
        %2795 = vmatprep.subr.mxu0 0.0
        %2796 = vmatpush1.msra.mxu0 0.0
        %2797 = vmatprep.subr.mxu0 0.0
        %2798 = vmatpush1.msra.mxu0 0.0
        %2799 = vmatprep.subr.mxu0 0.0
        %2800 = vmatpush1.msra.mxu0 0.0
        %2801 = vmatprep.subr.mxu0 0.0
        %2802 = vmatpush1.msra.mxu0 0.0
        %2803 = vmatprep.subr.mxu0 0.0
        %2804 = vmatpush1.msra.mxu0 0.0
        %2805 = vmatprep.subr.mxu0 0.0
        %2806 = vmatpush1.msra.mxu0 0.0
        %2807 = vmatprep.subr.mxu0 0.0
        %2808 = vmatpush1.msra.mxu0 0.0
        %2809 = vmatprep.subr.mxu0 0.0
        %2810 = vmatpush1.msra.mxu0 0.0
        %2811 = vmatprep.subr.mxu0 0.0
        %2812 = vmatpush1.msra.mxu0 0.0
        %2813 = vmatprep.subr.mxu0 0.0
        %2814 = vmatpush1.msra.mxu0 0.0
        %2815 = vmatprep.subr.mxu0 0.0
        %2816 = vmatpush1.msra.mxu0 0.0
        %2817 = vmatprep.subr.mxu0 0.0
        %2818 = vmatpush1.msra.mxu0 0.0
        %2819 = vmatprep.subr.mxu0 0.0
        %2820 = vmatpush1.msra.mxu0 0.0
        %2821 = vmatprep.subr.mxu0 0.0
        %2822 = vmatpush1.msra.mxu0 0.0
        %2823 = vmatprep.subr.mxu0 0.0
        %2824 = vmatpush1.msra.mxu0 0.0
        %2825 = vmatprep.subr.mxu0 0.0
        %2826 = vmatpush1.msra.mxu0 0.0
        %2827 = vmatprep.subr.mxu0 0.0
        %2828 = vmatpush1.msra.mxu0 0.0
        %2829 = vmatprep.subr.mxu0 0.0
        %2830 = vmatpush1.msra.mxu0 0.0
        %2831 = vmatprep.subr.mxu0 0.0
        %2832 = vmatpush1.msra.mxu0 0.0
        %2833 = vmatprep.subr.mxu0 0.0
        %2834 = vmatpush1.msra.mxu0 0.0
        %2835 = vmatprep.mubr.f32.mxu0 0.0
        %2836 = vmatmul.mubr.f32.gmra.mrb[0].mxu0 %v2712
        %v2837 = vpop.f32.mrb[0].mxu0
        %v2838 = vadd.f32 0.0, %v2837
        %v2839 = vpop.f32.mrb[0].mxu0
        %2840 = vmatprep.mubr.f32.mxu0 0.0
        %2841 = vmatmul.mubr.f32.gmra.mrb[0].mxu0 %v2715
        %v2842 = vpop.f32.mrb[0].mxu0
        %v2843 = vadd.f32 0.0, %v2842
        %v2844 = vpop.f32.mrb[0].mxu0
        %2845 = vmatprep.mubr.f32.mxu0 0.0
        %2846 = vmatmul.mubr.f32.gmra.mrb[0].mxu0 %v2718
        %v2847 = vpop.f32.mrb[0].mxu0
        %v2848 = vadd.f32 0.0, %v2847
        %v2849 = vpop.f32.mrb[0].mxu0
        %2850 = vmatprep.mubr.f32.mxu0 0.0
        %2851 = vmatmul.mubr.f32.gmra.mrb[0].mxu0 %v2721
        %v2852 = vpop.f32.mrb[0].mxu0
        %v2853 = vadd.f32 0.0, %v2852
        %v2854 = vpop.f32.mrb[0].mxu0
        %2855 = vmatprep.mubr.f32.mxu0 0.0
        %2856 = vmatmul.mubr.f32.gmra.mrb[0].mxu0 %v2724
        %v2857 = vpop.f32.mrb[0].mxu0
        %v2858 = vadd.f32 0.0, %v2857
        %v2859 = vpop.f32.mrb[0].mxu0
        %2860 = vmatprep.mubr.f32.mxu0 0.0
        %2861 = vmatmul.mubr.f32.gmra.mrb[0].mxu0 %v2727
        %v2862 = vpop.f32.mrb[0].mxu0
        %v2863 = vadd.f32 0.0, %v2862
        %v2864 = vpop.f32.mrb[0].mxu0
        %2865 = vmatprep.mubr.f32.mxu0 0.0
        %2866 = vmatmul.mubr.f32.gmra.mrb[0].mxu0 %v2730
        %v2867 = vpop.f32.mrb[0].mxu0
        %v2868 = vadd.f32 0.0, %v2867
        %v2869 = vpop.f32.mrb[0].mxu0
        %2870 = vmatprep.mubr.f32.mxu0 0.0
        %2871 = vmatmul.mubr.f32.gmra.mrb[0].mxu0 %v2733
        %v2872 = vpop.f32.mrb[0].mxu0
        %v2873 = vadd.f32 0.0, %v2872
        %v2874 = vpop.f32.mrb[0].mxu0
        %2875 = vmatprep.mubr.f32.mxu0 0.0
        %2876 = vmatmul.mubr.f32.gmra.mrb[0].mxu0 %v2736
        %v2877 = vpop.f32.mrb[0].mxu0
        %v2878 = vadd.f32 0.0, %v2877
        %v2879 = vpop.f32.mrb[0].mxu0
        %2880 = vmatprep.mubr.f32.mxu0 0.0
        %2881 = vmatmul.mubr.f32.gmra.mrb[0].mxu0 %v2739
        %v2882 = vpop.f32.mrb[0].mxu0
        %v2883 = vadd.f32 0.0, %v2882
        %v2884 = vpop.f32.mrb[0].mxu0
        %2885 = vmatprep.mubr.f32.mxu0 0.0
        %2886 = vmatmul.mubr.f32.gmra.mrb[0].mxu0 %v2742
        %v2887 = vpop.f32.mrb[0].mxu0
        %v2888 = vadd.f32 0.0, %v2887
        %v2889 = vpop.f32.mrb[0].mxu0
        %2890 = vmatprep.mubr.f32.mxu0 0.0
        %2891 = vmatmul.mubr.f32.gmra.mrb[0].mxu0 %v2745
        %v2892 = vpop.f32.mrb[0].mxu0
        %v2893 = vadd.f32 0.0, %v2892
        %v2894 = vpop.f32.mrb[0].mxu0
        %2895 = vmatprep.mubr.f32.mxu0 0.0
        %2896 = vmatmul.mubr.f32.gmra.mrb[0].mxu0 %v2748
        %v2897 = vpop.f32.mrb[0].mxu0
        %v2898 = vadd.f32 0.0, %v2897
        %v2899 = vpop.f32.mrb[0].mxu0
        %2900 = vmatprep.mubr.f32.mxu0 0.0
        %2901 = vmatmul.mubr.f32.gmra.mrb[0].mxu0 %v2751
        %v2902 = vpop.f32.mrb[0].mxu0
        %v2903 = vadd.f32 0.0, %v2902
        %v2904 = vpop.f32.mrb[0].mxu0
        %2905 = vmatprep.mubr.f32.mxu0 0.0
        %2906 = vmatmul.mubr.f32.gmra.mrb[0].mxu0 %v2754
        %v2907 = vpop.f32.mrb[0].mxu0
        %v2908 = vadd.f32 0.0, %v2907
        %v2909 = vpop.f32.mrb[0].mxu0
        %2910 = vmatprep.mubr.f32.mxu0 0.0
        %2911 = vmatmul.mubr.f32.gmra.mrb[0].mxu0 %v2757
        %v2912 = vpop.f32.mrb[0].mxu0
        %v2913 = vadd.f32 0.0, %v2912
        %v2914 = vpop.f32.mrb[0].mxu0
        %2915 = vmatprep.mubr.f32.mxu0 0.0
        %2916 = vmatmul.mubr.f32.gmra.mrb[0].mxu0 %v2760
        %v2917 = vpop.f32.mrb[0].mxu0
        %v2918 = vadd.f32 0.0, %v2917
        %v2919 = vpop.f32.mrb[0].mxu0
        %2920 = vmatprep.mubr.f32.mxu0 0.0
        %2921 = vmatmul.mubr.f32.gmra.mrb[0].mxu0 %v2763
        %v2922 = vpop.f32.mrb[0].mxu0
        %v2923 = vadd.f32 0.0, %v2922
        %v2924 = vpop.f32.mrb[0].mxu0
        %2925 = vmatprep.mubr.f32.mxu0 0.0
        %2926 = vmatmul.mubr.f32.gmra.mrb[0].mxu0 %v2766
        %v2927 = vpop.f32.mrb[0].mxu0
        %v2928 = vadd.f32 0.0, %v2927
        %v2929 = vpop.f32.mrb[0].mxu0
        %2930 = vmatprep.mubr.f32.mxu0 0.0
        %2931 = vmatmul.mubr.f32.gmra.mrb[0].mxu0 %v2769
        %v2932 = vpop.f32.mrb[0].mxu0
        %v2933 = vadd.f32 0.0, %v2932
        %v2934 = vpop.f32.mrb[0].mxu0
        %2935 = vdwg.mxu0
        %v2936 = vadd.f32 %v2666, %v2838
        %v2937 = vadd.f32 %v2667, %v2843
        %v2938 = vadd.f32 %v2668, %v2848
        %v2939 = vadd.f32 %v2669, %v2853
        %v2940 = vadd.f32 %v2670, %v2858
        %v2941 = vadd.f32 %v2671, %v2863
        %v2942 = vadd.f32 %v2672, %v2868
        %v2943 = vadd.f32 %v2673, %v2873
        %v2944 = vadd.f32 %v2674, %v2878
        %v2945 = vadd.f32 %v2675, %v2883
        %v2946 = vadd.f32 %v2676, %v2888
        %v2947 = vadd.f32 %v2677, %v2893
        %v2948 = vadd.f32 %v2678, %v2898
        %v2949 = vadd.f32 %v2679, %v2903
        %v2950 = vadd.f32 %v2680, %v2908
        %v2951 = vadd.f32 %v2681, %v2913
        %v2952 = vadd.f32 %v2682, %v2918
        %v2953 = vadd.f32 %v2683, %v2923
        %v2954 = vadd.f32 %v2684, %v2928
        %v2955 = vadd.f32 %v2685, %v2933
        %v2956 = vld [vmem:[#allocation2 + $0x12] sm:$0xff]
        %v2957 = vld [vmem:[#allocation2 + $0x1a] sm:$0xff]
        %v2958 = vld [vmem:[#allocation2 + $0x22] sm:$0xff]
        %v2959 = vld [vmem:[#allocation2 + $0x2a] sm:$0xff]
        %v2960 = vld [vmem:[#allocation2 + $0x32] sm:$0xff]
        %v2961 = vld [vmem:[#allocation2 + $0x3a] sm:$0xff]
        %v2962 = vld [vmem:[#allocation2 + $0x42] sm:$0xff]
        %v2963 = vld [vmem:[#allocation2 + $0x4a] sm:$0xff]
        %v2964 = vld [vmem:[#allocation2 + $0x52] sm:$0xff]
        %v2965 = vld [vmem:[#allocation2 + $0x5a] sm:$0xff]
        %v2966 = vld [vmem:[#allocation2 + $0x62] sm:$0xff]
        %v2967 = vld [vmem:[#allocation2 + $0x6a] sm:$0xff]
        %v2968 = vld [vmem:[#allocation2 + $0x72] sm:$0xff]
        %v2969 = vld [vmem:[#allocation2 + $0x7a] sm:$0xff]
        %v2970 = vld [vmem:[#allocation2 + $0x82] sm:$0xff]
        %v2971 = vld [vmem:[#allocation2 + $0x8a] sm:$0xff]
        %v2972 = vld [vmem:[#allocation2 + $0x92] sm:$0xff]
        %v2973 = vld [vmem:[#allocation2 + $0x9a] sm:$0xff]
        %v2974 = vld [vmem:[#allocation2 + $0xa2] sm:$0xff]
        %v2975 = vld [vmem:[#allocation2 + $0xaa] sm:$0xff]
        %s2976 = scalar_lea.vmem %s3, 160
        %v2977 = vld [vmem:[%s2976] sm:$0xff]
        %v2978 = vld [vmem:[%s2976 + $0x8] sm:$0xff]
        %v2979 = vld [vmem:[%s2976 + $0x10] sm:$0xff]
        %v2980 = vld [vmem:[%s2976 + $0x18] sm:$0xff]
        %v2982 = vsel %vm384, %v2956, 0
        %v2985 = vsel %vm384, %v2957, 0
        %v2988 = vsel %vm384, %v2958, 0
        %v2991 = vsel %vm384, %v2959, 0
        %v2994 = vsel %vm384, %v2960, 0
        %v2997 = vsel %vm384, %v2961, 0
        %v3000 = vsel %vm384, %v2962, 0
        %v3003 = vsel %vm384, %v2963, 0
        %v3006 = vsel %vm384, %v2964, 0
        %v3009 = vsel %vm384, %v2965, 0
        %v3012 = vsel %vm384, %v2966, 0
        %v3015 = vsel %vm384, %v2967, 0
        %v3018 = vsel %vm384, %v2968, 0
        %v3021 = vsel %vm384, %v2969, 0
        %v3024 = vsel %vm384, %v2970, 0
        %v3027 = vsel %vm384, %v2971, 0
        %v3030 = vsel %vm384, %v2972, 0
        %v3033 = vsel %vm384, %v2973, 0
        %v3036 = vsel %vm384, %v2974, 0
        %v3039 = vsel %vm384, %v2975, 0
        %3041 = vmatprep.subr.mxu0 0.0
        %3042 = vmatpush1.msra.mxu0 %v2977
        %3043 = vmatprep.subr.mxu0 0.0
        %3044 = vmatpush1.msra.mxu0 %v2978
        %3045 = vmatprep.subr.mxu0 0.0
        %3046 = vmatpush1.msra.mxu0 %v2979
        %3047 = vmatprep.subr.mxu0 0.0
        %3048 = vmatpush1.msra.mxu0 %v2980
        %3049 = vmatprep.subr.mxu0 0.0
        %3050 = vmatpush1.msra.mxu0 0.0
        %3051 = vmatprep.subr.mxu0 0.0
        %3052 = vmatpush1.msra.mxu0 0.0
        %3053 = vmatprep.subr.mxu0 0.0
        %3054 = vmatpush1.msra.mxu0 0.0
        %3055 = vmatprep.subr.mxu0 0.0
        %3056 = vmatpush1.msra.mxu0 0.0
        %3057 = vmatprep.subr.mxu0 0.0
        %3058 = vmatpush1.msra.mxu0 0.0
        %3059 = vmatprep.subr.mxu0 0.0
        %3060 = vmatpush1.msra.mxu0 0.0
        %3061 = vmatprep.subr.mxu0 0.0
        %3062 = vmatpush1.msra.mxu0 0.0
        %3063 = vmatprep.subr.mxu0 0.0
        %3064 = vmatpush1.msra.mxu0 0.0
        %3065 = vmatprep.subr.mxu0 0.0
        %3066 = vmatpush1.msra.mxu0 0.0
        %3067 = vmatprep.subr.mxu0 0.0
        %3068 = vmatpush1.msra.mxu0 0.0
        %3069 = vmatprep.subr.mxu0 0.0
        %3070 = vmatpush1.msra.mxu0 0.0
        %3071 = vmatprep.subr.mxu0 0.0
        %3072 = vmatpush1.msra.mxu0 0.0
        %3073 = vmatprep.subr.mxu0 0.0
        %3074 = vmatpush1.msra.mxu0 0.0
        %3075 = vmatprep.subr.mxu0 0.0
        %3076 = vmatpush1.msra.mxu0 0.0
        %3077 = vmatprep.subr.mxu0 0.0
        %3078 = vmatpush1.msra.mxu0 0.0
        %3079 = vmatprep.subr.mxu0 0.0
        %3080 = vmatpush1.msra.mxu0 0.0
        %3081 = vmatprep.subr.mxu0 0.0
        %3082 = vmatpush1.msra.mxu0 0.0
        %3083 = vmatprep.subr.mxu0 0.0
        %3084 = vmatpush1.msra.mxu0 0.0
        %3085 = vmatprep.subr.mxu0 0.0
        %3086 = vmatpush1.msra.mxu0 0.0
        %3087 = vmatprep.subr.mxu0 0.0
        %3088 = vmatpush1.msra.mxu0 0.0
        %3089 = vmatprep.subr.mxu0 0.0
        %3090 = vmatpush1.msra.mxu0 0.0
        %3091 = vmatprep.subr.mxu0 0.0
        %3092 = vmatpush1.msra.mxu0 0.0
        %3093 = vmatprep.subr.mxu0 0.0
        %3094 = vmatpush1.msra.mxu0 0.0
        %3095 = vmatprep.subr.mxu0 0.0
        %3096 = vmatpush1.msra.mxu0 0.0
        %3097 = vmatprep.subr.mxu0 0.0
        %3098 = vmatpush1.msra.mxu0 0.0
        %3099 = vmatprep.subr.mxu0 0.0
        %3100 = vmatpush1.msra.mxu0 0.0
        %3101 = vmatprep.subr.mxu0 0.0
        %3102 = vmatpush1.msra.mxu0 0.0
        %3103 = vmatprep.subr.mxu0 0.0
        %3104 = vmatpush1.msra.mxu0 0.0
        %3105 = vmatprep.mubr.f32.mxu0 0.0
        %3106 = vmatmul.mubr.f32.gmra.mrb[0].mxu0 %v2982
        %v3107 = vpop.f32.mrb[0].mxu0
        %v3108 = vadd.f32 0.0, %v3107
        %v3109 = vpop.f32.mrb[0].mxu0
        %3110 = vmatprep.mubr.f32.mxu0 0.0
        %3111 = vmatmul.mubr.f32.gmra.mrb[0].mxu0 %v2985
        %v3112 = vpop.f32.mrb[0].mxu0
        %v3113 = vadd.f32 0.0, %v3112
        %v3114 = vpop.f32.mrb[0].mxu0
        %3115 = vmatprep.mubr.f32.mxu0 0.0
        %3116 = vmatmul.mubr.f32.gmra.mrb[0].mxu0 %v2988
        %v3117 = vpop.f32.mrb[0].mxu0
        %v3118 = vadd.f32 0.0, %v3117
        %v3119 = vpop.f32.mrb[0].mxu0
        %3120 = vmatprep.mubr.f32.mxu0 0.0
        %3121 = vmatmul.mubr.f32.gmra.mrb[0].mxu0 %v2991
        %v3122 = vpop.f32.mrb[0].mxu0
        %v3123 = vadd.f32 0.0, %v3122
        %v3124 = vpop.f32.mrb[0].mxu0
        %3125 = vmatprep.mubr.f32.mxu0 0.0
        %3126 = vmatmul.mubr.f32.gmra.mrb[0].mxu0 %v2994
        %v3127 = vpop.f32.mrb[0].mxu0
        %v3128 = vadd.f32 0.0, %v3127
        %v3129 = vpop.f32.mrb[0].mxu0
        %3130 = vmatprep.mubr.f32.mxu0 0.0
        %3131 = vmatmul.mubr.f32.gmra.mrb[0].mxu0 %v2997
        %v3132 = vpop.f32.mrb[0].mxu0
        %v3133 = vadd.f32 0.0, %v3132
        %v3134 = vpop.f32.mrb[0].mxu0
        %3135 = vmatprep.mubr.f32.mxu0 0.0
        %3136 = vmatmul.mubr.f32.gmra.mrb[0].mxu0 %v3000
        %v3137 = vpop.f32.mrb[0].mxu0
        %v3138 = vadd.f32 0.0, %v3137
        %v3139 = vpop.f32.mrb[0].mxu0
        %3140 = vmatprep.mubr.f32.mxu0 0.0
        %3141 = vmatmul.mubr.f32.gmra.mrb[0].mxu0 %v3003
        %v3142 = vpop.f32.mrb[0].mxu0
        %v3143 = vadd.f32 0.0, %v3142
        %v3144 = vpop.f32.mrb[0].mxu0
        %3145 = vmatprep.mubr.f32.mxu0 0.0
        %3146 = vmatmul.mubr.f32.gmra.mrb[0].mxu0 %v3006
        %v3147 = vpop.f32.mrb[0].mxu0
        %v3148 = vadd.f32 0.0, %v3147
        %v3149 = vpop.f32.mrb[0].mxu0
        %3150 = vmatprep.mubr.f32.mxu0 0.0
        %3151 = vmatmul.mubr.f32.gmra.mrb[0].mxu0 %v3009
        %v3152 = vpop.f32.mrb[0].mxu0
        %v3153 = vadd.f32 0.0, %v3152
        %v3154 = vpop.f32.mrb[0].mxu0
        %3155 = vmatprep.mubr.f32.mxu0 0.0
        %3156 = vmatmul.mubr.f32.gmra.mrb[0].mxu0 %v3012
        %v3157 = vpop.f32.mrb[0].mxu0
        %v3158 = vadd.f32 0.0, %v3157
        %v3159 = vpop.f32.mrb[0].mxu0
        %3160 = vmatprep.mubr.f32.mxu0 0.0
        %3161 = vmatmul.mubr.f32.gmra.mrb[0].mxu0 %v3015
        %v3162 = vpop.f32.mrb[0].mxu0
        %v3163 = vadd.f32 0.0, %v3162
        %v3164 = vpop.f32.mrb[0].mxu0
        %3165 = vmatprep.mubr.f32.mxu0 0.0
        %3166 = vmatmul.mubr.f32.gmra.mrb[0].mxu0 %v3018
        %v3167 = vpop.f32.mrb[0].mxu0
        %v3168 = vadd.f32 0.0, %v3167
        %v3169 = vpop.f32.mrb[0].mxu0
        %3170 = vmatprep.mubr.f32.mxu0 0.0
        %3171 = vmatmul.mubr.f32.gmra.mrb[0].mxu0 %v3021
        %v3172 = vpop.f32.mrb[0].mxu0
        %v3173 = vadd.f32 0.0, %v3172
        %v3174 = vpop.f32.mrb[0].mxu0
        %3175 = vmatprep.mubr.f32.mxu0 0.0
        %3176 = vmatmul.mubr.f32.gmra.mrb[0].mxu0 %v3024
        %v3177 = vpop.f32.mrb[0].mxu0
        %v3178 = vadd.f32 0.0, %v3177
        %v3179 = vpop.f32.mrb[0].mxu0
        %3180 = vmatprep.mubr.f32.mxu0 0.0
        %3181 = vmatmul.mubr.f32.gmra.mrb[0].mxu0 %v3027
        %v3182 = vpop.f32.mrb[0].mxu0
        %v3183 = vadd.f32 0.0, %v3182
        %v3184 = vpop.f32.mrb[0].mxu0
        %3185 = vmatprep.mubr.f32.mxu0 0.0
        %3186 = vmatmul.mubr.f32.gmra.mrb[0].mxu0 %v3030
        %v3187 = vpop.f32.mrb[0].mxu0
        %v3188 = vadd.f32 0.0, %v3187
        %v3189 = vpop.f32.mrb[0].mxu0
        %3190 = vmatprep.mubr.f32.mxu0 0.0
        %3191 = vmatmul.mubr.f32.gmra.mrb[0].mxu0 %v3033
        %v3192 = vpop.f32.mrb[0].mxu0
        %v3193 = vadd.f32 0.0, %v3192
        %v3194 = vpop.f32.mrb[0].mxu0
        %3195 = vmatprep.mubr.f32.mxu0 0.0
        %3196 = vmatmul.mubr.f32.gmra.mrb[0].mxu0 %v3036
        %v3197 = vpop.f32.mrb[0].mxu0
        %v3198 = vadd.f32 0.0, %v3197
        %v3199 = vpop.f32.mrb[0].mxu0
        %3200 = vmatprep.mubr.f32.mxu0 0.0
        %3201 = vmatmul.mubr.f32.gmra.mrb[0].mxu0 %v3039
        %v3202 = vpop.f32.mrb[0].mxu0
        %v3203 = vadd.f32 0.0, %v3202
        %v3204 = vpop.f32.mrb[0].mxu0
        %3205 = vdwg.mxu0
        %v3206 = vadd.f32 %v2936, %v3108
        %v3207 = vadd.f32 %v2937, %v3113
        %v3208 = vadd.f32 %v2938, %v3118
        %v3209 = vadd.f32 %v2939, %v3123
        %v3210 = vadd.f32 %v2940, %v3128
        %v3211 = vadd.f32 %v2941, %v3133
        %v3212 = vadd.f32 %v2942, %v3138
        %v3213 = vadd.f32 %v2943, %v3143
        %v3214 = vadd.f32 %v2944, %v3148
        %v3215 = vadd.f32 %v2945, %v3153
        %v3216 = vadd.f32 %v2946, %v3158
        %v3217 = vadd.f32 %v2947, %v3163
        %v3218 = vadd.f32 %v2948, %v3168
        %v3219 = vadd.f32 %v2949, %v3173
        %v3220 = vadd.f32 %v2950, %v3178
        %v3221 = vadd.f32 %v2951, %v3183
        %v3222 = vadd.f32 %v2952, %v3188
        %v3223 = vadd.f32 %v2953, %v3193
        %v3224 = vadd.f32 %v2954, %v3198
        %v3225 = vadd.f32 %v2955, %v3203
        %v3226 = vld [vmem:[#allocation2 + $0x20] sm:$0xff]
        %v3227 = vld [vmem:[#allocation2 + $0x28] sm:$0xff]
        %v3228 = vld [vmem:[#allocation2 + $0x30] sm:$0xff]
        %v3229 = vld [vmem:[#allocation2 + $0x38] sm:$0xff]
        %v3230 = vld [vmem:[#allocation2 + $0x40] sm:$0xff]
        %v3231 = vld [vmem:[#allocation2 + $0x48] sm:$0xff]
        %v3232 = vld [vmem:[#allocation2 + $0x50] sm:$0xff]
        %v3233 = vld [vmem:[#allocation2 + $0x58] sm:$0xff]
        %v3234 = vld [vmem:[#allocation2 + $0x60] sm:$0xff]
        %v3235 = vld [vmem:[#allocation2 + $0x68] sm:$0xff]
        %v3236 = vld [vmem:[#allocation2 + $0x70] sm:$0xff]
        %v3237 = vld [vmem:[#allocation2 + $0x78] sm:$0xff]
        %v3238 = vld [vmem:[#allocation2 + $0x80] sm:$0xff]
        %v3239 = vld [vmem:[#allocation2 + $0x88] sm:$0xff]
        %v3240 = vld [vmem:[#allocation2 + $0x90] sm:$0xff]
        %v3241 = vld [vmem:[#allocation2 + $0x98] sm:$0xff]
        %v3242 = vld [vmem:[#allocation2 + $0xa0] sm:$0xff]
        %v3243 = vld [vmem:[#allocation2 + $0xa8] sm:$0xff]
        %v3244 = vld [vmem:[#allocation2 + $0xb0] sm:$0xff]
        %v3245 = vld [vmem:[#allocation2 + $0xb8] sm:$0xff]
        %s3246 = scalar_lea.vmem %s3, 192
        %v3247 = vld [vmem:[%s3246] sm:$0xff]
        %v3248 = vld [vmem:[%s3246 + $0x8] sm:$0xff]
        %v3249 = vld [vmem:[%s3246 + $0x10] sm:$0xff]
        %v3250 = vld [vmem:[%s3246 + $0x18] sm:$0xff]
        %v3252 = vsel %vm384, %v3226, 0
        %v3255 = vsel %vm384, %v3227, 0
        %v3258 = vsel %vm384, %v3228, 0
        %v3261 = vsel %vm384, %v3229, 0
        %v3264 = vsel %vm384, %v3230, 0
        %v3267 = vsel %vm384, %v3231, 0
        %v3270 = vsel %vm384, %v3232, 0
        %v3273 = vsel %vm384, %v3233, 0
        %v3276 = vsel %vm384, %v3234, 0
        %v3279 = vsel %vm384, %v3235, 0
        %v3282 = vsel %vm384, %v3236, 0
        %v3285 = vsel %vm384, %v3237, 0
        %v3288 = vsel %vm384, %v3238, 0
        %v3291 = vsel %vm384, %v3239, 0
        %v3294 = vsel %vm384, %v3240, 0
        %v3297 = vsel %vm384, %v3241, 0
        %v3300 = vsel %vm384, %v3242, 0
        %v3303 = vsel %vm384, %v3243, 0
        %v3306 = vsel %vm384, %v3244, 0
        %v3309 = vsel %vm384, %v3245, 0
        %3311 = vmatprep.subr.mxu0 0.0
        %3312 = vmatpush1.msra.mxu0 %v3247
        %3313 = vmatprep.subr.mxu0 0.0
        %3314 = vmatpush1.msra.mxu0 %v3248
        %3315 = vmatprep.subr.mxu0 0.0
        %3316 = vmatpush1.msra.mxu0 %v3249
        %3317 = vmatprep.subr.mxu0 0.0
        %3318 = vmatpush1.msra.mxu0 %v3250
        %3319 = vmatprep.subr.mxu0 0.0
        %3320 = vmatpush1.msra.mxu0 0.0
        %3321 = vmatprep.subr.mxu0 0.0
        %3322 = vmatpush1.msra.mxu0 0.0
        %3323 = vmatprep.subr.mxu0 0.0
        %3324 = vmatpush1.msra.mxu0 0.0
        %3325 = vmatprep.subr.mxu0 0.0
        %3326 = vmatpush1.msra.mxu0 0.0
        %3327 = vmatprep.subr.mxu0 0.0
        %3328 = vmatpush1.msra.mxu0 0.0
        %3329 = vmatprep.subr.mxu0 0.0
        %3330 = vmatpush1.msra.mxu0 0.0
        %3331 = vmatprep.subr.mxu0 0.0
        %3332 = vmatpush1.msra.mxu0 0.0
        %3333 = vmatprep.subr.mxu0 0.0
        %3334 = vmatpush1.msra.mxu0 0.0
        %3335 = vmatprep.subr.mxu0 0.0
        %3336 = vmatpush1.msra.mxu0 0.0
        %3337 = vmatprep.subr.mxu0 0.0
        %3338 = vmatpush1.msra.mxu0 0.0
        %3339 = vmatprep.subr.mxu0 0.0
        %3340 = vmatpush1.msra.mxu0 0.0
        %3341 = vmatprep.subr.mxu0 0.0
        %3342 = vmatpush1.msra.mxu0 0.0
        %3343 = vmatprep.subr.mxu0 0.0
        %3344 = vmatpush1.msra.mxu0 0.0
        %3345 = vmatprep.subr.mxu0 0.0
        %3346 = vmatpush1.msra.mxu0 0.0
        %3347 = vmatprep.subr.mxu0 0.0
        %3348 = vmatpush1.msra.mxu0 0.0
        %3349 = vmatprep.subr.mxu0 0.0
        %3350 = vmatpush1.msra.mxu0 0.0
        %3351 = vmatprep.subr.mxu0 0.0
        %3352 = vmatpush1.msra.mxu0 0.0
        %3353 = vmatprep.subr.mxu0 0.0
        %3354 = vmatpush1.msra.mxu0 0.0
        %3355 = vmatprep.subr.mxu0 0.0
        %3356 = vmatpush1.msra.mxu0 0.0
        %3357 = vmatprep.subr.mxu0 0.0
        %3358 = vmatpush1.msra.mxu0 0.0
        %3359 = vmatprep.subr.mxu0 0.0
        %3360 = vmatpush1.msra.mxu0 0.0
        %3361 = vmatprep.subr.mxu0 0.0
        %3362 = vmatpush1.msra.mxu0 0.0
        %3363 = vmatprep.subr.mxu0 0.0
        %3364 = vmatpush1.msra.mxu0 0.0
        %3365 = vmatprep.subr.mxu0 0.0
        %3366 = vmatpush1.msra.mxu0 0.0
        %3367 = vmatprep.subr.mxu0 0.0
        %3368 = vmatpush1.msra.mxu0 0.0
        %3369 = vmatprep.subr.mxu0 0.0
        %3370 = vmatpush1.msra.mxu0 0.0
        %3371 = vmatprep.subr.mxu0 0.0
        %3372 = vmatpush1.msra.mxu0 0.0
        %3373 = vmatprep.subr.mxu0 0.0
        %3374 = vmatpush1.msra.mxu0 0.0
        %3375 = vmatprep.mubr.f32.mxu0 0.0
        %3376 = vmatmul.mubr.f32.gmra.mrb[0].mxu0 %v3252
        %v3377 = vpop.f32.mrb[0].mxu0
        %v3378 = vadd.f32 0.0, %v3377
        %v3379 = vpop.f32.mrb[0].mxu0
        %3380 = vmatprep.mubr.f32.mxu0 0.0
        %3381 = vmatmul.mubr.f32.gmra.mrb[0].mxu0 %v3255
        %v3382 = vpop.f32.mrb[0].mxu0
        %v3383 = vadd.f32 0.0, %v3382
        %v3384 = vpop.f32.mrb[0].mxu0
        %3385 = vmatprep.mubr.f32.mxu0 0.0
        %3386 = vmatmul.mubr.f32.gmra.mrb[0].mxu0 %v3258
        %v3387 = vpop.f32.mrb[0].mxu0
        %v3388 = vadd.f32 0.0, %v3387
        %v3389 = vpop.f32.mrb[0].mxu0
        %3390 = vmatprep.mubr.f32.mxu0 0.0
        %3391 = vmatmul.mubr.f32.gmra.mrb[0].mxu0 %v3261
        %v3392 = vpop.f32.mrb[0].mxu0
        %v3393 = vadd.f32 0.0, %v3392
        %v3394 = vpop.f32.mrb[0].mxu0
        %3395 = vmatprep.mubr.f32.mxu0 0.0
        %3396 = vmatmul.mubr.f32.gmra.mrb[0].mxu0 %v3264
        %v3397 = vpop.f32.mrb[0].mxu0
        %v3398 = vadd.f32 0.0, %v3397
        %v3399 = vpop.f32.mrb[0].mxu0
        %3400 = vmatprep.mubr.f32.mxu0 0.0
        %3401 = vmatmul.mubr.f32.gmra.mrb[0].mxu0 %v3267
        %v3402 = vpop.f32.mrb[0].mxu0
        %v3403 = vadd.f32 0.0, %v3402
        %v3404 = vpop.f32.mrb[0].mxu0
        %3405 = vmatprep.mubr.f32.mxu0 0.0
        %3406 = vmatmul.mubr.f32.gmra.mrb[0].mxu0 %v3270
        %v3407 = vpop.f32.mrb[0].mxu0
        %v3408 = vadd.f32 0.0, %v3407
        %v3409 = vpop.f32.mrb[0].mxu0
        %3410 = vmatprep.mubr.f32.mxu0 0.0
        %3411 = vmatmul.mubr.f32.gmra.mrb[0].mxu0 %v3273
        %v3412 = vpop.f32.mrb[0].mxu0
        %v3413 = vadd.f32 0.0, %v3412
        %v3414 = vpop.f32.mrb[0].mxu0
        %3415 = vmatprep.mubr.f32.mxu0 0.0
        %3416 = vmatmul.mubr.f32.gmra.mrb[0].mxu0 %v3276
        %v3417 = vpop.f32.mrb[0].mxu0
        %v3418 = vadd.f32 0.0, %v3417
        %v3419 = vpop.f32.mrb[0].mxu0
        %3420 = vmatprep.mubr.f32.mxu0 0.0
        %3421 = vmatmul.mubr.f32.gmra.mrb[0].mxu0 %v3279
        %v3422 = vpop.f32.mrb[0].mxu0
        %v3423 = vadd.f32 0.0, %v3422
        %v3424 = vpop.f32.mrb[0].mxu0
        %3425 = vmatprep.mubr.f32.mxu0 0.0
        %3426 = vmatmul.mubr.f32.gmra.mrb[0].mxu0 %v3282
        %v3427 = vpop.f32.mrb[0].mxu0
        %v3428 = vadd.f32 0.0, %v3427
        %v3429 = vpop.f32.mrb[0].mxu0
        %3430 = vmatprep.mubr.f32.mxu0 0.0
        %3431 = vmatmul.mubr.f32.gmra.mrb[0].mxu0 %v3285
        %v3432 = vpop.f32.mrb[0].mxu0
        %v3433 = vadd.f32 0.0, %v3432
        %v3434 = vpop.f32.mrb[0].mxu0
        %3435 = vmatprep.mubr.f32.mxu0 0.0
        %3436 = vmatmul.mubr.f32.gmra.mrb[0].mxu0 %v3288
        %v3437 = vpop.f32.mrb[0].mxu0
        %v3438 = vadd.f32 0.0, %v3437
        %v3439 = vpop.f32.mrb[0].mxu0
        %3440 = vmatprep.mubr.f32.mxu0 0.0
        %3441 = vmatmul.mubr.f32.gmra.mrb[0].mxu0 %v3291
        %v3442 = vpop.f32.mrb[0].mxu0
        %v3443 = vadd.f32 0.0, %v3442
        %v3444 = vpop.f32.mrb[0].mxu0
        %3445 = vmatprep.mubr.f32.mxu0 0.0
        %3446 = vmatmul.mubr.f32.gmra.mrb[0].mxu0 %v3294
        %v3447 = vpop.f32.mrb[0].mxu0
        %v3448 = vadd.f32 0.0, %v3447
        %v3449 = vpop.f32.mrb[0].mxu0
        %3450 = vmatprep.mubr.f32.mxu0 0.0
        %3451 = vmatmul.mubr.f32.gmra.mrb[0].mxu0 %v3297
        %v3452 = vpop.f32.mrb[0].mxu0
        %v3453 = vadd.f32 0.0, %v3452
        %v3454 = vpop.f32.mrb[0].mxu0
        %3455 = vmatprep.mubr.f32.mxu0 0.0
        %3456 = vmatmul.mubr.f32.gmra.mrb[0].mxu0 %v3300
        %v3457 = vpop.f32.mrb[0].mxu0
        %v3458 = vadd.f32 0.0, %v3457
        %v3459 = vpop.f32.mrb[0].mxu0
        %3460 = vmatprep.mubr.f32.mxu0 0.0
        %3461 = vmatmul.mubr.f32.gmra.mrb[0].mxu0 %v3303
        %v3462 = vpop.f32.mrb[0].mxu0
        %v3463 = vadd.f32 0.0, %v3462
        %v3464 = vpop.f32.mrb[0].mxu0
        %3465 = vmatprep.mubr.f32.mxu0 0.0
        %3466 = vmatmul.mubr.f32.gmra.mrb[0].mxu0 %v3306
        %v3467 = vpop.f32.mrb[0].mxu0
        %v3468 = vadd.f32 0.0, %v3467
        %v3469 = vpop.f32.mrb[0].mxu0
        %3470 = vmatprep.mubr.f32.mxu0 0.0
        %3471 = vmatmul.mubr.f32.gmra.mrb[0].mxu0 %v3309
        %v3472 = vpop.f32.mrb[0].mxu0
        %v3473 = vadd.f32 0.0, %v3472
        %v3474 = vpop.f32.mrb[0].mxu0
        %3475 = vdwg.mxu0
        %v3476 = vadd.f32 %v3206, %v3378
        %v3477 = vadd.f32 %v3207, %v3383
        %v3478 = vadd.f32 %v3208, %v3388
        %v3479 = vadd.f32 %v3209, %v3393
        %v3480 = vadd.f32 %v3210, %v3398
        %v3481 = vadd.f32 %v3211, %v3403
        %v3482 = vadd.f32 %v3212, %v3408
        %v3483 = vadd.f32 %v3213, %v3413
        %v3484 = vadd.f32 %v3214, %v3418
        %v3485 = vadd.f32 %v3215, %v3423
        %v3486 = vadd.f32 %v3216, %v3428
        %v3487 = vadd.f32 %v3217, %v3433
        %v3488 = vadd.f32 %v3218, %v3438
        %v3489 = vadd.f32 %v3219, %v3443
        %v3490 = vadd.f32 %v3220, %v3448
        %v3491 = vadd.f32 %v3221, %v3453
        %v3492 = vadd.f32 %v3222, %v3458
        %v3493 = vadd.f32 %v3223, %v3463
        %v3494 = vadd.f32 %v3224, %v3468
        %v3495 = vadd.f32 %v3225, %v3473
        %v3496 = vld [vmem:[#allocation2 + $0x21] sm:$0xff]
        %v3497 = vld [vmem:[#allocation2 + $0x29] sm:$0xff]
        %v3498 = vld [vmem:[#allocation2 + $0x31] sm:$0xff]
        %v3499 = vld [vmem:[#allocation2 + $0x39] sm:$0xff]
        %v3500 = vld [vmem:[#allocation2 + $0x41] sm:$0xff]
        %v3501 = vld [vmem:[#allocation2 + $0x49] sm:$0xff]
        %v3502 = vld [vmem:[#allocation2 + $0x51] sm:$0xff]
        %v3503 = vld [vmem:[#allocation2 + $0x59] sm:$0xff]
        %v3504 = vld [vmem:[#allocation2 + $0x61] sm:$0xff]
        %v3505 = vld [vmem:[#allocation2 + $0x69] sm:$0xff]
        %v3506 = vld [vmem:[#allocation2 + $0x71] sm:$0xff]
        %v3507 = vld [vmem:[#allocation2 + $0x79] sm:$0xff]
        %v3508 = vld [vmem:[#allocation2 + $0x81] sm:$0xff]
        %v3509 = vld [vmem:[#allocation2 + $0x89] sm:$0xff]
        %v3510 = vld [vmem:[#allocation2 + $0x91] sm:$0xff]
        %v3511 = vld [vmem:[#allocation2 + $0x99] sm:$0xff]
        %v3512 = vld [vmem:[#allocation2 + $0xa1] sm:$0xff]
        %v3513 = vld [vmem:[#allocation2 + $0xa9] sm:$0xff]
        %v3514 = vld [vmem:[#allocation2 + $0xb1] sm:$0xff]
        %v3515 = vld [vmem:[#allocation2 + $0xb9] sm:$0xff]
        %s3516 = scalar_lea.vmem %s3, 224
        %v3517 = vld [vmem:[%s3516] sm:$0xff]
        %v3518 = vld [vmem:[%s3516 + $0x8] sm:$0xff]
        %v3519 = vld [vmem:[%s3516 + $0x10] sm:$0xff]
        %v3520 = vld [vmem:[%s3516 + $0x18] sm:$0xff]
        %v3522 = vsel %vm384, %v3496, 0
        %v3525 = vsel %vm384, %v3497, 0
        %v3528 = vsel %vm384, %v3498, 0
        %v3531 = vsel %vm384, %v3499, 0
        %v3534 = vsel %vm384, %v3500, 0
        %v3537 = vsel %vm384, %v3501, 0
        %v3540 = vsel %vm384, %v3502, 0
        %v3543 = vsel %vm384, %v3503, 0
        %v3546 = vsel %vm384, %v3504, 0
        %v3549 = vsel %vm384, %v3505, 0
        %v3552 = vsel %vm384, %v3506, 0
        %v3555 = vsel %vm384, %v3507, 0
        %v3558 = vsel %vm384, %v3508, 0
        %v3561 = vsel %vm384, %v3509, 0
        %v3564 = vsel %vm384, %v3510, 0
        %v3567 = vsel %vm384, %v3511, 0
        %v3570 = vsel %vm384, %v3512, 0
        %v3573 = vsel %vm384, %v3513, 0
        %v3576 = vsel %vm384, %v3514, 0
        %v3579 = vsel %vm384, %v3515, 0
        %3581 = vmatprep.subr.mxu0 0.0
        %3582 = vmatpush1.msra.mxu0 %v3517
        %3583 = vmatprep.subr.mxu0 0.0
        %3584 = vmatpush1.msra.mxu0 %v3518
        %3585 = vmatprep.subr.mxu0 0.0
        %3586 = vmatpush1.msra.mxu0 %v3519
        %3587 = vmatprep.subr.mxu0 0.0
        %3588 = vmatpush1.msra.mxu0 %v3520
        %3589 = vmatprep.subr.mxu0 0.0
        %3590 = vmatpush1.msra.mxu0 0.0
        %3591 = vmatprep.subr.mxu0 0.0
        %3592 = vmatpush1.msra.mxu0 0.0
        %3593 = vmatprep.subr.mxu0 0.0
        %3594 = vmatpush1.msra.mxu0 0.0
        %3595 = vmatprep.subr.mxu0 0.0
        %3596 = vmatpush1.msra.mxu0 0.0
        %3597 = vmatprep.subr.mxu0 0.0
        %3598 = vmatpush1.msra.mxu0 0.0
        %3599 = vmatprep.subr.mxu0 0.0
        %3600 = vmatpush1.msra.mxu0 0.0
        %3601 = vmatprep.subr.mxu0 0.0
        %3602 = vmatpush1.msra.mxu0 0.0
        %3603 = vmatprep.subr.mxu0 0.0
        %3604 = vmatpush1.msra.mxu0 0.0
        %3605 = vmatprep.subr.mxu0 0.0
        %3606 = vmatpush1.msra.mxu0 0.0
        %3607 = vmatprep.subr.mxu0 0.0
        %3608 = vmatpush1.msra.mxu0 0.0
        %3609 = vmatprep.subr.mxu0 0.0
        %3610 = vmatpush1.msra.mxu0 0.0
        %3611 = vmatprep.subr.mxu0 0.0
        %3612 = vmatpush1.msra.mxu0 0.0
        %3613 = vmatprep.subr.mxu0 0.0
        %3614 = vmatpush1.msra.mxu0 0.0
        %3615 = vmatprep.subr.mxu0 0.0
        %3616 = vmatpush1.msra.mxu0 0.0
        %3617 = vmatprep.subr.mxu0 0.0
        %3618 = vmatpush1.msra.mxu0 0.0
        %3619 = vmatprep.subr.mxu0 0.0
        %3620 = vmatpush1.msra.mxu0 0.0
        %3621 = vmatprep.subr.mxu0 0.0
        %3622 = vmatpush1.msra.mxu0 0.0
        %3623 = vmatprep.subr.mxu0 0.0
        %3624 = vmatpush1.msra.mxu0 0.0
        %3625 = vmatprep.subr.mxu0 0.0
        %3626 = vmatpush1.msra.mxu0 0.0
        %3627 = vmatprep.subr.mxu0 0.0
        %3628 = vmatpush1.msra.mxu0 0.0
        %3629 = vmatprep.subr.mxu0 0.0
        %3630 = vmatpush1.msra.mxu0 0.0
        %3631 = vmatprep.subr.mxu0 0.0
        %3632 = vmatpush1.msra.mxu0 0.0
        %3633 = vmatprep.subr.mxu0 0.0
        %3634 = vmatpush1.msra.mxu0 0.0
        %3635 = vmatprep.subr.mxu0 0.0
        %3636 = vmatpush1.msra.mxu0 0.0
        %3637 = vmatprep.subr.mxu0 0.0
        %3638 = vmatpush1.msra.mxu0 0.0
        %3639 = vmatprep.subr.mxu0 0.0
        %3640 = vmatpush1.msra.mxu0 0.0
        %3641 = vmatprep.subr.mxu0 0.0
        %3642 = vmatpush1.msra.mxu0 0.0
        %3643 = vmatprep.subr.mxu0 0.0
        %3644 = vmatpush1.msra.mxu0 0.0
        %3645 = vmatprep.mubr.f32.mxu0 0.0
        %3646 = vmatmul.mubr.f32.gmra.mrb[0].mxu0 %v3522
        %v3647 = vpop.f32.mrb[0].mxu0
        %v3648 = vadd.f32 0.0, %v3647
        %v3649 = vpop.f32.mrb[0].mxu0
        %3650 = vmatprep.mubr.f32.mxu0 0.0
        %3651 = vmatmul.mubr.f32.gmra.mrb[0].mxu0 %v3525
        %v3652 = vpop.f32.mrb[0].mxu0
        %v3653 = vadd.f32 0.0, %v3652
        %v3654 = vpop.f32.mrb[0].mxu0
        %3655 = vmatprep.mubr.f32.mxu0 0.0
        %3656 = vmatmul.mubr.f32.gmra.mrb[0].mxu0 %v3528
        %v3657 = vpop.f32.mrb[0].mxu0
        %v3658 = vadd.f32 0.0, %v3657
        %v3659 = vpop.f32.mrb[0].mxu0
        %3660 = vmatprep.mubr.f32.mxu0 0.0
        %3661 = vmatmul.mubr.f32.gmra.mrb[0].mxu0 %v3531
        %v3662 = vpop.f32.mrb[0].mxu0
        %v3663 = vadd.f32 0.0, %v3662
        %v3664 = vpop.f32.mrb[0].mxu0
        %3665 = vmatprep.mubr.f32.mxu0 0.0
        %3666 = vmatmul.mubr.f32.gmra.mrb[0].mxu0 %v3534
        %v3667 = vpop.f32.mrb[0].mxu0
        %v3668 = vadd.f32 0.0, %v3667
        %v3669 = vpop.f32.mrb[0].mxu0
        %3670 = vmatprep.mubr.f32.mxu0 0.0
        %3671 = vmatmul.mubr.f32.gmra.mrb[0].mxu0 %v3537
        %v3672 = vpop.f32.mrb[0].mxu0
        %v3673 = vadd.f32 0.0, %v3672
        %v3674 = vpop.f32.mrb[0].mxu0
        %3675 = vmatprep.mubr.f32.mxu0 0.0
        %3676 = vmatmul.mubr.f32.gmra.mrb[0].mxu0 %v3540
        %v3677 = vpop.f32.mrb[0].mxu0
        %v3678 = vadd.f32 0.0, %v3677
        %v3679 = vpop.f32.mrb[0].mxu0
        %3680 = vmatprep.mubr.f32.mxu0 0.0
        %3681 = vmatmul.mubr.f32.gmra.mrb[0].mxu0 %v3543
        %v3682 = vpop.f32.mrb[0].mxu0
        %v3683 = vadd.f32 0.0, %v3682
        %v3684 = vpop.f32.mrb[0].mxu0
        %3685 = vmatprep.mubr.f32.mxu0 0.0
        %3686 = vmatmul.mubr.f32.gmra.mrb[0].mxu0 %v3546
        %v3687 = vpop.f32.mrb[0].mxu0
        %v3688 = vadd.f32 0.0, %v3687
        %v3689 = vpop.f32.mrb[0].mxu0
        %3690 = vmatprep.mubr.f32.mxu0 0.0
        %3691 = vmatmul.mubr.f32.gmra.mrb[0].mxu0 %v3549
        %v3692 = vpop.f32.mrb[0].mxu0
        %v3693 = vadd.f32 0.0, %v3692
        %v3694 = vpop.f32.mrb[0].mxu0
        %3695 = vmatprep.mubr.f32.mxu0 0.0
        %3696 = vmatmul.mubr.f32.gmra.mrb[0].mxu0 %v3552
        %v3697 = vpop.f32.mrb[0].mxu0
        %v3698 = vadd.f32 0.0, %v3697
        %v3699 = vpop.f32.mrb[0].mxu0
        %3700 = vmatprep.mubr.f32.mxu0 0.0
        %3701 = vmatmul.mubr.f32.gmra.mrb[0].mxu0 %v3555
        %v3702 = vpop.f32.mrb[0].mxu0
        %v3703 = vadd.f32 0.0, %v3702
        %v3704 = vpop.f32.mrb[0].mxu0
        %3705 = vmatprep.mubr.f32.mxu0 0.0
        %3706 = vmatmul.mubr.f32.gmra.mrb[0].mxu0 %v3558
        %v3707 = vpop.f32.mrb[0].mxu0
        %v3708 = vadd.f32 0.0, %v3707
        %v3709 = vpop.f32.mrb[0].mxu0
        %3710 = vmatprep.mubr.f32.mxu0 0.0
        %3711 = vmatmul.mubr.f32.gmra.mrb[0].mxu0 %v3561
        %v3712 = vpop.f32.mrb[0].mxu0
        %v3713 = vadd.f32 0.0, %v3712
        %v3714 = vpop.f32.mrb[0].mxu0
        %3715 = vmatprep.mubr.f32.mxu0 0.0
        %3716 = vmatmul.mubr.f32.gmra.mrb[0].mxu0 %v3564
        %v3717 = vpop.f32.mrb[0].mxu0
        %v3718 = vadd.f32 0.0, %v3717
        %v3719 = vpop.f32.mrb[0].mxu0
        %3720 = vmatprep.mubr.f32.mxu0 0.0
        %3721 = vmatmul.mubr.f32.gmra.mrb[0].mxu0 %v3567
        %v3722 = vpop.f32.mrb[0].mxu0
        %v3723 = vadd.f32 0.0, %v3722
        %v3724 = vpop.f32.mrb[0].mxu0
        %3725 = vmatprep.mubr.f32.mxu0 0.0
        %3726 = vmatmul.mubr.f32.gmra.mrb[0].mxu0 %v3570
        %v3727 = vpop.f32.mrb[0].mxu0
        %v3728 = vadd.f32 0.0, %v3727
        %v3729 = vpop.f32.mrb[0].mxu0
        %3730 = vmatprep.mubr.f32.mxu0 0.0
        %3731 = vmatmul.mubr.f32.gmra.mrb[0].mxu0 %v3573
        %v3732 = vpop.f32.mrb[0].mxu0
        %v3733 = vadd.f32 0.0, %v3732
        %v3734 = vpop.f32.mrb[0].mxu0
        %3735 = vmatprep.mubr.f32.mxu0 0.0
        %3736 = vmatmul.mubr.f32.gmra.mrb[0].mxu0 %v3576
        %v3737 = vpop.f32.mrb[0].mxu0
        %v3738 = vadd.f32 0.0, %v3737
        %v3739 = vpop.f32.mrb[0].mxu0
        %3740 = vmatprep.mubr.f32.mxu0 0.0
        %3741 = vmatmul.mubr.f32.gmra.mrb[0].mxu0 %v3579
        %v3742 = vpop.f32.mrb[0].mxu0
        %v3743 = vadd.f32 0.0, %v3742
        %v3744 = vpop.f32.mrb[0].mxu0
        %3745 = vdwg.mxu0
        %v3746 = vadd.f32 %v3476, %v3648
        %v3747 = vadd.f32 %v3477, %v3653
        %v3748 = vadd.f32 %v3478, %v3658
        %v3749 = vadd.f32 %v3479, %v3663
        %v3750 = vadd.f32 %v3480, %v3668
        %v3751 = vadd.f32 %v3481, %v3673
        %v3752 = vadd.f32 %v3482, %v3678
        %v3753 = vadd.f32 %v3483, %v3683
        %v3754 = vadd.f32 %v3484, %v3688
        %v3755 = vadd.f32 %v3485, %v3693
        %v3756 = vadd.f32 %v3486, %v3698
        %v3757 = vadd.f32 %v3487, %v3703
        %v3758 = vadd.f32 %v3488, %v3708
        %v3759 = vadd.f32 %v3489, %v3713
        %v3760 = vadd.f32 %v3490, %v3718
        %v3761 = vadd.f32 %v3491, %v3723
        %v3762 = vadd.f32 %v3492, %v3728
        %v3763 = vadd.f32 %v3493, %v3733
        %v3764 = vadd.f32 %v3494, %v3738
        %v3765 = vadd.f32 %v3495, %v3743
        %v3766 = vld [vmem:[#allocation2 + $0x22] sm:$0xff]
        %v3767 = vld [vmem:[#allocation2 + $0x2a] sm:$0xff]
        %v3768 = vld [vmem:[#allocation2 + $0x32] sm:$0xff]
        %v3769 = vld [vmem:[#allocation2 + $0x3a] sm:$0xff]
        %v3770 = vld [vmem:[#allocation2 + $0x42] sm:$0xff]
        %v3771 = vld [vmem:[#allocation2 + $0x4a] sm:$0xff]
        %v3772 = vld [vmem:[#allocation2 + $0x52] sm:$0xff]
        %v3773 = vld [vmem:[#allocation2 + $0x5a] sm:$0xff]
        %v3774 = vld [vmem:[#allocation2 + $0x62] sm:$0xff]
        %v3775 = vld [vmem:[#allocation2 + $0x6a] sm:$0xff]
        %v3776 = vld [vmem:[#allocation2 + $0x72] sm:$0xff]
        %v3777 = vld [vmem:[#allocation2 + $0x7a] sm:$0xff]
        %v3778 = vld [vmem:[#allocation2 + $0x82] sm:$0xff]
        %v3779 = vld [vmem:[#allocation2 + $0x8a] sm:$0xff]
        %v3780 = vld [vmem:[#allocation2 + $0x92] sm:$0xff]
        %v3781 = vld [vmem:[#allocation2 + $0x9a] sm:$0xff]
        %v3782 = vld [vmem:[#allocation2 + $0xa2] sm:$0xff]
        %v3783 = vld [vmem:[#allocation2 + $0xaa] sm:$0xff]
        %v3784 = vld [vmem:[#allocation2 + $0xb2] sm:$0xff]
        %v3785 = vld [vmem:[#allocation2 + $0xba] sm:$0xff]
        %s3786 = scalar_lea.vmem %s3, 256
        %v3787 = vld [vmem:[%s3786] sm:$0xff]
        %v3788 = vld [vmem:[%s3786 + $0x8] sm:$0xff]
        %v3789 = vld [vmem:[%s3786 + $0x10] sm:$0xff]
        %v3790 = vld [vmem:[%s3786 + $0x18] sm:$0xff]
        %v3792 = vsel %vm384, %v3766, 0
        %v3795 = vsel %vm384, %v3767, 0
        %v3798 = vsel %vm384, %v3768, 0
        %v3801 = vsel %vm384, %v3769, 0
        %v3804 = vsel %vm384, %v3770, 0
        %v3807 = vsel %vm384, %v3771, 0
        %v3810 = vsel %vm384, %v3772, 0
        %v3813 = vsel %vm384, %v3773, 0
        %v3816 = vsel %vm384, %v3774, 0
        %v3819 = vsel %vm384, %v3775, 0
        %v3822 = vsel %vm384, %v3776, 0
        %v3825 = vsel %vm384, %v3777, 0
        %v3828 = vsel %vm384, %v3778, 0
        %v3831 = vsel %vm384, %v3779, 0
        %v3834 = vsel %vm384, %v3780, 0
        %v3837 = vsel %vm384, %v3781, 0
        %v3840 = vsel %vm384, %v3782, 0
        %v3843 = vsel %vm384, %v3783, 0
        %v3846 = vsel %vm384, %v3784, 0
        %v3849 = vsel %vm384, %v3785, 0
        %3851 = vmatprep.subr.mxu0 0.0
        %3852 = vmatpush1.msra.mxu0 %v3787
        %3853 = vmatprep.subr.mxu0 0.0
        %3854 = vmatpush1.msra.mxu0 %v3788
        %3855 = vmatprep.subr.mxu0 0.0
        %3856 = vmatpush1.msra.mxu0 %v3789
        %3857 = vmatprep.subr.mxu0 0.0
        %3858 = vmatpush1.msra.mxu0 %v3790
        %3859 = vmatprep.subr.mxu0 0.0
        %3860 = vmatpush1.msra.mxu0 0.0
        %3861 = vmatprep.subr.mxu0 0.0
        %3862 = vmatpush1.msra.mxu0 0.0
        %3863 = vmatprep.subr.mxu0 0.0
        %3864 = vmatpush1.msra.mxu0 0.0
        %3865 = vmatprep.subr.mxu0 0.0
        %3866 = vmatpush1.msra.mxu0 0.0
        %3867 = vmatprep.subr.mxu0 0.0
        %3868 = vmatpush1.msra.mxu0 0.0
        %3869 = vmatprep.subr.mxu0 0.0
        %3870 = vmatpush1.msra.mxu0 0.0
        %3871 = vmatprep.subr.mxu0 0.0
        %3872 = vmatpush1.msra.mxu0 0.0
        %3873 = vmatprep.subr.mxu0 0.0
        %3874 = vmatpush1.msra.mxu0 0.0
        %3875 = vmatprep.subr.mxu0 0.0
        %3876 = vmatpush1.msra.mxu0 0.0
        %3877 = vmatprep.subr.mxu0 0.0
        %3878 = vmatpush1.msra.mxu0 0.0
        %3879 = vmatprep.subr.mxu0 0.0
        %3880 = vmatpush1.msra.mxu0 0.0
        %3881 = vmatprep.subr.mxu0 0.0
        %3882 = vmatpush1.msra.mxu0 0.0
        %3883 = vmatprep.subr.mxu0 0.0
        %3884 = vmatpush1.msra.mxu0 0.0
        %3885 = vmatprep.subr.mxu0 0.0
        %3886 = vmatpush1.msra.mxu0 0.0
        %3887 = vmatprep.subr.mxu0 0.0
        %3888 = vmatpush1.msra.mxu0 0.0
        %3889 = vmatprep.subr.mxu0 0.0
        %3890 = vmatpush1.msra.mxu0 0.0
        %3891 = vmatprep.subr.mxu0 0.0
        %3892 = vmatpush1.msra.mxu0 0.0
        %3893 = vmatprep.subr.mxu0 0.0
        %3894 = vmatpush1.msra.mxu0 0.0
        %3895 = vmatprep.subr.mxu0 0.0
        %3896 = vmatpush1.msra.mxu0 0.0
        %3897 = vmatprep.subr.mxu0 0.0
        %3898 = vmatpush1.msra.mxu0 0.0
        %3899 = vmatprep.subr.mxu0 0.0
        %3900 = vmatpush1.msra.mxu0 0.0
        %3901 = vmatprep.subr.mxu0 0.0
        %3902 = vmatpush1.msra.mxu0 0.0
        %3903 = vmatprep.subr.mxu0 0.0
        %3904 = vmatpush1.msra.mxu0 0.0
        %3905 = vmatprep.subr.mxu0 0.0
        %3906 = vmatpush1.msra.mxu0 0.0
        %3907 = vmatprep.subr.mxu0 0.0
        %3908 = vmatpush1.msra.mxu0 0.0
        %3909 = vmatprep.subr.mxu0 0.0
        %3910 = vmatpush1.msra.mxu0 0.0
        %3911 = vmatprep.subr.mxu0 0.0
        %3912 = vmatpush1.msra.mxu0 0.0
        %3913 = vmatprep.subr.mxu0 0.0
        %3914 = vmatpush1.msra.mxu0 0.0
        %3915 = vmatprep.mubr.f32.mxu0 0.0
        %3916 = vmatmul.mubr.f32.gmra.mrb[0].mxu0 %v3792
        %v3917 = vpop.f32.mrb[0].mxu0
        %v3918 = vadd.f32 0.0, %v3917
        %v3919 = vpop.f32.mrb[0].mxu0
        %3920 = vmatprep.mubr.f32.mxu0 0.0
        %3921 = vmatmul.mubr.f32.gmra.mrb[0].mxu0 %v3795
        %v3922 = vpop.f32.mrb[0].mxu0
        %v3923 = vadd.f32 0.0, %v3922
        %v3924 = vpop.f32.mrb[0].mxu0
        %3925 = vmatprep.mubr.f32.mxu0 0.0
        %3926 = vmatmul.mubr.f32.gmra.mrb[0].mxu0 %v3798
        %v3927 = vpop.f32.mrb[0].mxu0
        %v3928 = vadd.f32 0.0, %v3927
        %v3929 = vpop.f32.mrb[0].mxu0
        %3930 = vmatprep.mubr.f32.mxu0 0.0
        %3931 = vmatmul.mubr.f32.gmra.mrb[0].mxu0 %v3801
        %v3932 = vpop.f32.mrb[0].mxu0
        %v3933 = vadd.f32 0.0, %v3932
        %v3934 = vpop.f32.mrb[0].mxu0
        %3935 = vmatprep.mubr.f32.mxu0 0.0
        %3936 = vmatmul.mubr.f32.gmra.mrb[0].mxu0 %v3804
        %v3937 = vpop.f32.mrb[0].mxu0
        %v3938 = vadd.f32 0.0, %v3937
        %v3939 = vpop.f32.mrb[0].mxu0
        %3940 = vmatprep.mubr.f32.mxu0 0.0
        %3941 = vmatmul.mubr.f32.gmra.mrb[0].mxu0 %v3807
        %v3942 = vpop.f32.mrb[0].mxu0
        %v3943 = vadd.f32 0.0, %v3942
        %v3944 = vpop.f32.mrb[0].mxu0
        %3945 = vmatprep.mubr.f32.mxu0 0.0
        %3946 = vmatmul.mubr.f32.gmra.mrb[0].mxu0 %v3810
        %v3947 = vpop.f32.mrb[0].mxu0
        %v3948 = vadd.f32 0.0, %v3947
        %v3949 = vpop.f32.mrb[0].mxu0
        %3950 = vmatprep.mubr.f32.mxu0 0.0
        %3951 = vmatmul.mubr.f32.gmra.mrb[0].mxu0 %v3813
        %v3952 = vpop.f32.mrb[0].mxu0
        %v3953 = vadd.f32 0.0, %v3952
        %v3954 = vpop.f32.mrb[0].mxu0
        %3955 = vmatprep.mubr.f32.mxu0 0.0
        %3956 = vmatmul.mubr.f32.gmra.mrb[0].mxu0 %v3816
        %v3957 = vpop.f32.mrb[0].mxu0
        %v3958 = vadd.f32 0.0, %v3957
        %v3959 = vpop.f32.mrb[0].mxu0
        %3960 = vmatprep.mubr.f32.mxu0 0.0
        %3961 = vmatmul.mubr.f32.gmra.mrb[0].mxu0 %v3819
        %v3962 = vpop.f32.mrb[0].mxu0
        %v3963 = vadd.f32 0.0, %v3962
        %v3964 = vpop.f32.mrb[0].mxu0
        %3965 = vmatprep.mubr.f32.mxu0 0.0
        %3966 = vmatmul.mubr.f32.gmra.mrb[0].mxu0 %v3822
        %v3967 = vpop.f32.mrb[0].mxu0
        %v3968 = vadd.f32 0.0, %v3967
        %v3969 = vpop.f32.mrb[0].mxu0
        %3970 = vmatprep.mubr.f32.mxu0 0.0
        %3971 = vmatmul.mubr.f32.gmra.mrb[0].mxu0 %v3825
        %v3972 = vpop.f32.mrb[0].mxu0
        %v3973 = vadd.f32 0.0, %v3972
        %v3974 = vpop.f32.mrb[0].mxu0
        %3975 = vmatprep.mubr.f32.mxu0 0.0
        %3976 = vmatmul.mubr.f32.gmra.mrb[0].mxu0 %v3828
        %v3977 = vpop.f32.mrb[0].mxu0
        %v3978 = vadd.f32 0.0, %v3977
        %v3979 = vpop.f32.mrb[0].mxu0
        %3980 = vmatprep.mubr.f32.mxu0 0.0
        %3981 = vmatmul.mubr.f32.gmra.mrb[0].mxu0 %v3831
        %v3982 = vpop.f32.mrb[0].mxu0
        %v3983 = vadd.f32 0.0, %v3982
        %v3984 = vpop.f32.mrb[0].mxu0
        %3985 = vmatprep.mubr.f32.mxu0 0.0
        %3986 = vmatmul.mubr.f32.gmra.mrb[0].mxu0 %v3834
        %v3987 = vpop.f32.mrb[0].mxu0
        %v3988 = vadd.f32 0.0, %v3987
        %v3989 = vpop.f32.mrb[0].mxu0
        %3990 = vmatprep.mubr.f32.mxu0 0.0
        %3991 = vmatmul.mubr.f32.gmra.mrb[0].mxu0 %v3837
        %v3992 = vpop.f32.mrb[0].mxu0
        %v3993 = vadd.f32 0.0, %v3992
        %v3994 = vpop.f32.mrb[0].mxu0
        %3995 = vmatprep.mubr.f32.mxu0 0.0
        %3996 = vmatmul.mubr.f32.gmra.mrb[0].mxu0 %v3840
        %v3997 = vpop.f32.mrb[0].mxu0
        %v3998 = vadd.f32 0.0, %v3997
        %v3999 = vpop.f32.mrb[0].mxu0
        %4000 = vmatprep.mubr.f32.mxu0 0.0
        %4001 = vmatmul.mubr.f32.gmra.mrb[0].mxu0 %v3843
        %v4002 = vpop.f32.mrb[0].mxu0
        %v4003 = vadd.f32 0.0, %v4002
        %v4004 = vpop.f32.mrb[0].mxu0
        %4005 = vmatprep.mubr.f32.mxu0 0.0
        %4006 = vmatmul.mubr.f32.gmra.mrb[0].mxu0 %v3846
        %v4007 = vpop.f32.mrb[0].mxu0
        %v4008 = vadd.f32 0.0, %v4007
        %v4009 = vpop.f32.mrb[0].mxu0
        %4010 = vmatprep.mubr.f32.mxu0 0.0
        %4011 = vmatmul.mubr.f32.gmra.mrb[0].mxu0 %v3849
        %v4012 = vpop.f32.mrb[0].mxu0
        %v4013 = vadd.f32 0.0, %v4012
        %v4014 = vpop.f32.mrb[0].mxu0
        %4015 = vdwg.mxu0
        %v4016 = vadd.f32 %v3746, %v3918
        %v4017 = vadd.f32 %v3747, %v3923
        %v4018 = vadd.f32 %v3748, %v3928
        %v4019 = vadd.f32 %v3749, %v3933
        %v4020 = vadd.f32 %v3750, %v3938
        %v4021 = vadd.f32 %v3751, %v3943
        %v4022 = vadd.f32 %v3752, %v3948
        %v4023 = vadd.f32 %v3753, %v3953
        %v4024 = vadd.f32 %v3754, %v3958
        %v4025 = vadd.f32 %v3755, %v3963
        %v4026 = vadd.f32 %v3756, %v3968
        %v4027 = vadd.f32 %v3757, %v3973
        %v4028 = vadd.f32 %v3758, %v3978
        %v4029 = vadd.f32 %v3759, %v3983
        %v4030 = vadd.f32 %v3760, %v3988
        %v4031 = vadd.f32 %v3761, %v3993
        %v4032 = vadd.f32 %v3762, %v3998
        %v4033 = vadd.f32 %v3763, %v4003
        %v4034 = vadd.f32 %v3764, %v4008
        %v4035 = vadd.f32 %v3765, %v4013
        %v4036 = vld [vmem:[%s4] sm:$0x1]
        %v4038 = vlaneseq
        %v4039 = vshrl.u32 %v4038, 7
        %v4040 = vsub.s32 0, %v4039
        %v4041 = vrot.slane %v4036, %v4040
        %v4043 = vadd.f32 %v4016, %v4041
        %v4044 = vadd.f32 %v4017, %v4041
        %v4045 = vadd.f32 %v4018, %v4041
        %v4046 = vadd.f32 %v4019, %v4041
        %v4047 = vadd.f32 %v4020, %v4041
        %v4048 = vadd.f32 %v4021, %v4041
        %v4049 = vadd.f32 %v4022, %v4041
        %v4050 = vadd.f32 %v4023, %v4041
        %v4051 = vadd.f32 %v4024, %v4041
        %v4052 = vadd.f32 %v4025, %v4041
        %v4053 = vadd.f32 %v4026, %v4041
        %v4054 = vadd.f32 %v4027, %v4041
        %v4055 = vadd.f32 %v4028, %v4041
        %v4056 = vadd.f32 %v4029, %v4041
        %v4057 = vadd.f32 %v4030, %v4041
        %v4058 = vadd.f32 %v4031, %v4041
        %v4059 = vadd.f32 %v4032, %v4041
        %v4060 = vadd.f32 %v4033, %v4041
        %v4061 = vadd.f32 %v4034, %v4041
        %v4062 = vadd.f32 %v4035, %v4041
        %v4063 = vmax.f32 %v4043, 0.0
        %v4064 = vmax.f32 %v4044, 0.0
        %v4065 = vmax.f32 %v4045, 0.0
        %v4066 = vmax.f32 %v4046, 0.0
        %v4067 = vmax.f32 %v4047, 0.0
        %v4068 = vmax.f32 %v4048, 0.0
        %v4069 = vmax.f32 %v4049, 0.0
        %v4070 = vmax.f32 %v4050, 0.0
        %v4071 = vmax.f32 %v4051, 0.0
        %v4072 = vmax.f32 %v4052, 0.0
        %v4073 = vmax.f32 %v4053, 0.0
        %v4074 = vmax.f32 %v4054, 0.0
        %v4075 = vmax.f32 %v4055, 0.0
        %v4076 = vmax.f32 %v4056, 0.0
        %v4077 = vmax.f32 %v4057, 0.0
        %v4078 = vmax.f32 %v4058, 0.0
        %v4079 = vmax.f32 %v4059, 0.0
        %v4080 = vmax.f32 %v4060, 0.0
        %v4081 = vmax.f32 %v4061, 0.0
        %v4082 = vmax.f32 %v4062, 0.0
        %v4083 = vrot.slane %v4063, 1
        %v4084 = vrot.slane %v4064, 1
        %v4085 = vrot.slane %v4065, 1
        %v4086 = vrot.slane %v4066, 1
        %v4087 = vrot.slane %v4067, 1
        %v4088 = vrot.slane %v4068, 1
        %v4089 = vrot.slane %v4069, 1
        %v4090 = vrot.slane %v4070, 1
        %v4091 = vrot.slane %v4071, 1
        %v4092 = vrot.slane %v4072, 1
        %v4093 = vrot.slane %v4073, 1
        %v4094 = vrot.slane %v4074, 1
        %v4095 = vrot.slane %v4075, 1
        %v4096 = vrot.slane %v4076, 1
        %v4097 = vrot.slane %v4077, 1
        %v4098 = vrot.slane %v4078, 1
        %v4099 = vrot.slane %v4079, 1
        %v4100 = vrot.slane %v4080, 1
        %v4101 = vrot.slane %v4081, 1
        %v4102 = vrot.slane %v4082, 1
        %v4103 = vsel %vm1292, %v4101, %v4102
        %v4104 = vsel %vm1292, %v4100, %v4101
        %v4105 = vsel %vm1292, %v4099, %v4100
        %v4106 = vsel %vm1292, %v4098, %v4099
        %v4107 = vsel %vm1292, %v4097, %v4098
        %v4108 = vsel %vm1292, %v4096, %v4097
        %v4109 = vsel %vm1292, %v4095, %v4096
        %v4110 = vsel %vm1292, %v4094, %v4095
        %v4111 = vsel %vm1292, %v4093, %v4094
        %v4112 = vsel %vm1292, %v4092, %v4093
        %v4113 = vsel %vm1292, %v4091, %v4092
        %v4114 = vsel %vm1292, %v4090, %v4091
        %v4115 = vsel %vm1292, %v4089, %v4090
        %v4116 = vsel %vm1292, %v4088, %v4089
        %v4117 = vsel %vm1292, %v4087, %v4088
        %v4118 = vsel %vm1292, %v4086, %v4087
        %v4119 = vsel %vm1292, %v4085, %v4086
        %v4120 = vsel %vm1292, %v4084, %v4085
        %v4121 = vsel %vm1292, %v4083, %v4084
        %v4122 = vsel %vm1292, %v4102, %v4083
        %v4123 = vmax.f32 %v4063, %v4121
        %v4124 = vmax.f32 %v4064, %v4120
        %v4125 = vmax.f32 %v4065, %v4119
        %v4126 = vmax.f32 %v4066, %v4118
        %v4127 = vmax.f32 %v4067, %v4117
        %v4128 = vmax.f32 %v4068, %v4116
        %v4129 = vmax.f32 %v4069, %v4115
        %v4130 = vmax.f32 %v4070, %v4114
        %v4131 = vmax.f32 %v4071, %v4113
        %v4132 = vmax.f32 %v4072, %v4112
        %v4133 = vmax.f32 %v4073, %v4111
        %v4134 = vmax.f32 %v4074, %v4110
        %v4135 = vmax.f32 %v4075, %v4109
        %v4136 = vmax.f32 %v4076, %v4108
        %v4137 = vmax.f32 %v4077, %v4107
        %v4138 = vmax.f32 %v4078, %v4106
        %v4139 = vmax.f32 %v4079, %v4105
        %v4140 = vmax.f32 %v4080, %v4104
        %v4141 = vmax.f32 %v4081, %v4103
        %v4142 = vmax.f32 %v4082, %v4122
        %v4143 = vmax.f32 %v4123, %v4125
        %v4144 = vmax.f32 %v4124, %v4126
        %v4145 = vmax.f32 %v4125, %v4127
        %v4146 = vmax.f32 %v4126, %v4128
        %v4147 = vmax.f32 %v4127, %v4129
        %v4148 = vmax.f32 %v4128, %v4130
        %v4149 = vmax.f32 %v4129, %v4131
        %v4150 = vmax.f32 %v4130, %v4132
        %v4151 = vmax.f32 %v4131, %v4133
        %v4152 = vmax.f32 %v4132, %v4134
        %v4153 = vmax.f32 %v4133, %v4135
        %v4154 = vmax.f32 %v4134, %v4136
        %v4155 = vmax.f32 %v4135, %v4137
        %v4156 = vmax.f32 %v4136, %v4138
        %v4157 = vmax.f32 %v4137, %v4139
        %v4158 = vmax.f32 %v4138, %v4140
        %v4159 = vmax.f32 %v4139, %v4141
        %v4160 = vmax.f32 %v4140, %v4142
        %4161 = vst.msk [vmem:[#allocation5] sm:$0xff] %vm410, %v4143
        %4162 = vst.msk [vmem:[#allocation5 + $0x8] sm:$0xff] %vm410, %v4144
        %4163 = vst.msk [vmem:[#allocation5 + $0x10] sm:$0xff] %vm410, %v4145
        %4164 = vst.msk [vmem:[#allocation5 + $0x18] sm:$0xff] %vm410, %v4146
        %4165 = vst.msk [vmem:[#allocation5 + $0x20] sm:$0xff] %vm410, %v4147
        %4166 = vst.msk [vmem:[#allocation5 + $0x28] sm:$0xff] %vm410, %v4148
        %4167 = vst.msk [vmem:[#allocation5 + $0x30] sm:$0xff] %vm410, %v4149
        %4168 = vst.msk [vmem:[#allocation5 + $0x38] sm:$0xff] %vm410, %v4150
        %4169 = vst.msk [vmem:[#allocation5 + $0x40] sm:$0xff] %vm410, %v4151
        %4170 = vst.msk [vmem:[#allocation5 + $0x48] sm:$0xff] %vm410, %v4152
        %4171 = vst.msk [vmem:[#allocation5 + $0x50] sm:$0xff] %vm410, %v4153
        %4172 = vst.msk [vmem:[#allocation5 + $0x58] sm:$0xff] %vm410, %v4154
        %4173 = vst.msk [vmem:[#allocation5 + $0x60] sm:$0xff] %vm410, %v4155
        %4174 = vst.msk [vmem:[#allocation5 + $0x68] sm:$0xff] %vm410, %v4156
        %4175 = vst.msk [vmem:[#allocation5 + $0x70] sm:$0xff] %vm410, %v4157
        %4176 = vst.msk [vmem:[#allocation5 + $0x78] sm:$0xff] %vm410, %v4158
        %4177 = vst.msk [vmem:[#allocation5 + $0x80] sm:$0xff] %vm410, %v4159
        %4178 = vst.msk [vmem:[#allocation5 + $0x88] sm:$0xff] %vm410, %v4160
        %v4179 = vld [vmem:[#allocation5] ss:$2 sm:$0x1f]
        %vm4180 = vcmask 520192
        %4181 = vst.msk [vmem:[#allocation3] sm:$0x1f] %vm4180, %v4179
        %s4182 = scalar_lea.vmem [#allocation5], 32
        %v4183 = vld [vmem:[%s4182] ss:$2 sm:$0x1f]
        %4184 = vst.msk [vmem:[#allocation3 + $0x8] sm:$0x1f] %vm4180, %v4183
        %s4185 = scalar_lea.vmem [#allocation5], 64
        %v4186 = vld [vmem:[%s4185] ss:$2 sm:$0x1f]
        %4187 = vst.msk [vmem:[#allocation3 + $0x10] sm:$0x1f] %vm4180, %v4186
        %s4188 = scalar_lea.vmem [#allocation5], 96
        %v4189 = vld [vmem:[%s4188] ss:$2 sm:$0x1f]
        %4190 = vst.msk [vmem:[#allocation3 + $0x18] sm:$0x1f] %vm4180, %v4189
        %s4191 = scalar_lea.vmem [#allocation5], 128
        %v4192 = vld [vmem:[%s4191] ss:$2 sm:$0x1f]
        %4193 = vst.msk [vmem:[#allocation3 + $0x20] sm:$0x1f] %vm4180, %v4192
        %v4194 = vld [vmem:[#allocation3] sm:$0xff]
        %v4195 = vld [vmem:[#allocation3 + $0x8] sm:$0xff]
        %v4196 = vld [vmem:[#allocation3 + $0x10] sm:$0xff]
        %v4197 = vld [vmem:[%s5] sm:$0xff]
        %v4198 = vld [vmem:[%s5 + $0x8] sm:$0xff]
        %v4199 = vld [vmem:[%s5 + $0x10] sm:$0xff]
        %v4200 = vld [vmem:[%s5 + $0x18] sm:$0xff]
        %v4201 = vld [vmem:[%s5 + $0x20] sm:$0xff]
        %v4202 = vld [vmem:[%s5 + $0x28] sm:$0xff]
        %v4203 = vld [vmem:[%s5 + $0x30] sm:$0xff]
        %v4204 = vld [vmem:[%s5 + $0x38] sm:$0xff]
        %v4205 = vld [vmem:[#allocation3 + $0x1] sm:$0xff]
        %v4206 = vld [vmem:[#allocation3 + $0x9] sm:$0xff]
        %v4207 = vld [vmem:[#allocation3 + $0x11] sm:$0xff]
        %s4208 = scalar_lea.vmem %s5, 64
        %v4209 = vld [vmem:[%s4208] sm:$0xff]
        %v4210 = vld [vmem:[%s4208 + $0x8] sm:$0xff]
        %v4211 = vld [vmem:[%s4208 + $0x10] sm:$0xff]
        %v4212 = vld [vmem:[%s4208 + $0x18] sm:$0xff]
        %v4213 = vld [vmem:[%s4208 + $0x20] sm:$0xff]
        %v4214 = vld [vmem:[%s4208 + $0x28] sm:$0xff]
        %v4215 = vld [vmem:[%s4208 + $0x30] sm:$0xff]
        %v4216 = vld [vmem:[%s4208 + $0x38] sm:$0xff]
        %v4218 = vsel %vm410, %v4205, 0
        %v4221 = vsel %vm410, %v4206, 0
        %v4224 = vsel %vm410, %v4207, 0
        %4226 = vmatprep.subr.mxu0 0.0
        %4227 = vmatpush1.msra.mxu0 %v4209
        %4228 = vmatprep.subr.mxu0 0.0
        %4229 = vmatpush1.msra.mxu0 %v4210
        %4230 = vmatprep.subr.mxu0 0.0
        %4231 = vmatpush1.msra.mxu0 %v4211
        %4232 = vmatprep.subr.mxu0 0.0
        %4233 = vmatpush1.msra.mxu0 %v4212
        %4234 = vmatprep.subr.mxu0 0.0
        %4235 = vmatpush1.msra.mxu0 %v4213
        %4236 = vmatprep.subr.mxu0 0.0
        %4237 = vmatpush1.msra.mxu0 %v4214
        %4238 = vmatprep.subr.mxu0 0.0
        %4239 = vmatpush1.msra.mxu0 %v4215
        %4240 = vmatprep.subr.mxu0 0.0
        %4241 = vmatpush1.msra.mxu0 %v4216
        %4242 = vmatprep.subr.mxu0 0.0
        %4243 = vmatpush1.msra.mxu0 0.0
        %4244 = vmatprep.subr.mxu0 0.0
        %4245 = vmatpush1.msra.mxu0 0.0
        %4246 = vmatprep.subr.mxu0 0.0
        %4247 = vmatpush1.msra.mxu0 0.0
        %4248 = vmatprep.subr.mxu0 0.0
        %4249 = vmatpush1.msra.mxu0 0.0
        %4250 = vmatprep.subr.mxu0 0.0
        %4251 = vmatpush1.msra.mxu0 0.0
        %4252 = vmatprep.subr.mxu0 0.0
        %4253 = vmatpush1.msra.mxu0 0.0
        %4254 = vmatprep.subr.mxu0 0.0
        %4255 = vmatpush1.msra.mxu0 0.0
        %4256 = vmatprep.subr.mxu0 0.0
        %4257 = vmatpush1.msra.mxu0 0.0
        %4258 = vmatprep.subr.mxu0 0.0
        %4259 = vmatpush1.msra.mxu0 0.0
        %4260 = vmatprep.subr.mxu0 0.0
        %4261 = vmatpush1.msra.mxu0 0.0
        %4262 = vmatprep.subr.mxu0 0.0
        %4263 = vmatpush1.msra.mxu0 0.0
        %4264 = vmatprep.subr.mxu0 0.0
        %4265 = vmatpush1.msra.mxu0 0.0
        %4266 = vmatprep.subr.mxu0 0.0
        %4267 = vmatpush1.msra.mxu0 0.0
        %4268 = vmatprep.subr.mxu0 0.0
        %4269 = vmatpush1.msra.mxu0 0.0
        %4270 = vmatprep.subr.mxu0 0.0
        %4271 = vmatpush1.msra.mxu0 0.0
        %4272 = vmatprep.subr.mxu0 0.0
        %4273 = vmatpush1.msra.mxu0 0.0
        %4274 = vmatprep.subr.mxu0 0.0
        %4275 = vmatpush1.msra.mxu0 0.0
        %4276 = vmatprep.subr.mxu0 0.0
        %4277 = vmatpush1.msra.mxu0 0.0
        %4278 = vmatprep.subr.mxu0 0.0
        %4279 = vmatpush1.msra.mxu0 0.0
        %4280 = vmatprep.subr.mxu0 0.0
        %4281 = vmatpush1.msra.mxu0 0.0
        %4282 = vmatprep.subr.mxu0 0.0
        %4283 = vmatpush1.msra.mxu0 0.0
        %4284 = vmatprep.subr.mxu0 0.0
        %4285 = vmatpush1.msra.mxu0 0.0
        %4286 = vmatprep.subr.mxu0 0.0
        %4287 = vmatpush1.msra.mxu0 0.0
        %4288 = vmatprep.subr.mxu0 0.0
        %4289 = vmatpush1.msra.mxu0 0.0
        %4290 = vmatprep.mubr.f32.mxu0 0.0
        %4291 = vmatmul.mubr.f32.gmra.mrb[0].mxu0 %v4218
        %v4292 = vpop.f32.mrb[0].mxu0
        %v4293 = vadd.f32 0.0, %v4292
        %v4294 = vpop.f32.mrb[0].mxu0
        %4295 = vmatprep.mubr.f32.mxu0 0.0
        %4296 = vmatmul.mubr.f32.gmra.mrb[0].mxu0 %v4221
        %v4297 = vpop.f32.mrb[0].mxu0
        %v4298 = vadd.f32 0.0, %v4297
        %v4299 = vpop.f32.mrb[0].mxu0
        %4300 = vmatprep.mubr.f32.mxu0 0.0
        %4301 = vmatmul.mubr.f32.gmra.mrb[0].mxu0 %v4224
        %v4302 = vpop.f32.mrb[0].mxu0
        %v4303 = vadd.f32 0.0, %v4302
        %v4304 = vpop.f32.mrb[0].mxu0
        %4305 = vdwg.mxu0
        %v4307 = vsel %vm410, %v4194, 0
        %v4310 = vsel %vm410, %v4195, 0
        %v4313 = vsel %vm410, %v4196, 0
        %4315 = vmatprep.subr.mxu0 0.0
        %4316 = vmatpush1.msra.mxu0 %v4197
        %4317 = vmatprep.subr.mxu0 0.0
        %4318 = vmatpush1.msra.mxu0 %v4198
        %4319 = vmatprep.subr.mxu0 0.0
        %4320 = vmatpush1.msra.mxu0 %v4199
        %4321 = vmatprep.subr.mxu0 0.0
        %4322 = vmatpush1.msra.mxu0 %v4200
        %4323 = vmatprep.subr.mxu0 0.0
        %4324 = vmatpush1.msra.mxu0 %v4201
        %4325 = vmatprep.subr.mxu0 0.0
        %4326 = vmatpush1.msra.mxu0 %v4202
        %4327 = vmatprep.subr.mxu0 0.0
        %4328 = vmatpush1.msra.mxu0 %v4203
        %4329 = vmatprep.subr.mxu0 0.0
        %4330 = vmatpush1.msra.mxu0 %v4204
        %4331 = vmatprep.subr.mxu0 0.0
        %4332 = vmatpush1.msra.mxu0 0.0
        %4333 = vmatprep.subr.mxu0 0.0
        %4334 = vmatpush1.msra.mxu0 0.0
        %4335 = vmatprep.subr.mxu0 0.0
        %4336 = vmatpush1.msra.mxu0 0.0
        %4337 = vmatprep.subr.mxu0 0.0
        %4338 = vmatpush1.msra.mxu0 0.0
        %4339 = vmatprep.subr.mxu0 0.0
        %4340 = vmatpush1.msra.mxu0 0.0
        %4341 = vmatprep.subr.mxu0 0.0
        %4342 = vmatpush1.msra.mxu0 0.0
        %4343 = vmatprep.subr.mxu0 0.0
        %4344 = vmatpush1.msra.mxu0 0.0
        %4345 = vmatprep.subr.mxu0 0.0
        %4346 = vmatpush1.msra.mxu0 0.0
        %4347 = vmatprep.subr.mxu0 0.0
        %4348 = vmatpush1.msra.mxu0 0.0
        %4349 = vmatprep.subr.mxu0 0.0
        %4350 = vmatpush1.msra.mxu0 0.0
        %4351 = vmatprep.subr.mxu0 0.0
        %4352 = vmatpush1.msra.mxu0 0.0
        %4353 = vmatprep.subr.mxu0 0.0
        %4354 = vmatpush1.msra.mxu0 0.0
        %4355 = vmatprep.subr.mxu0 0.0
        %4356 = vmatpush1.msra.mxu0 0.0
        %4357 = vmatprep.subr.mxu0 0.0
        %4358 = vmatpush1.msra.mxu0 0.0
        %4359 = vmatprep.subr.mxu0 0.0
        %4360 = vmatpush1.msra.mxu0 0.0
        %4361 = vmatprep.subr.mxu0 0.0
        %4362 = vmatpush1.msra.mxu0 0.0
        %4363 = vmatprep.subr.mxu0 0.0
        %4364 = vmatpush1.msra.mxu0 0.0
        %4365 = vmatprep.subr.mxu0 0.0
        %4366 = vmatpush1.msra.mxu0 0.0
        %4367 = vmatprep.subr.mxu0 0.0
        %4368 = vmatpush1.msra.mxu0 0.0
        %4369 = vmatprep.subr.mxu0 0.0
        %4370 = vmatpush1.msra.mxu0 0.0
        %4371 = vmatprep.subr.mxu0 0.0
        %4372 = vmatpush1.msra.mxu0 0.0
        %4373 = vmatprep.subr.mxu0 0.0
        %4374 = vmatpush1.msra.mxu0 0.0
        %4375 = vmatprep.subr.mxu0 0.0
        %4376 = vmatpush1.msra.mxu0 0.0
        %4377 = vmatprep.subr.mxu0 0.0
        %4378 = vmatpush1.msra.mxu0 0.0
        %4379 = vmatprep.mubr.f32.mxu0 0.0
        %4380 = vmatmul.mubr.f32.gmra.mrb[0].mxu0 %v4307
        %v4381 = vpop.f32.mrb[0].mxu0
        %v4382 = vadd.f32 %v4293, %v4381
        %v4383 = vpop.f32.mrb[0].mxu0
        %4384 = vmatprep.mubr.f32.mxu0 0.0
        %4385 = vmatmul.mubr.f32.gmra.mrb[0].mxu0 %v4310
        %v4386 = vpop.f32.mrb[0].mxu0
        %v4387 = vadd.f32 %v4298, %v4386
        %v4388 = vpop.f32.mrb[0].mxu0
        %4389 = vmatprep.mubr.f32.mxu0 0.0
        %4390 = vmatmul.mubr.f32.gmra.mrb[0].mxu0 %v4313
        %v4391 = vpop.f32.mrb[0].mxu0
        %v4392 = vadd.f32 %v4303, %v4391
        %v4393 = vpop.f32.mrb[0].mxu0
        %4394 = vdwg.mxu0
        %v4395 = vld [vmem:[#allocation3 + $0x2] sm:$0xff]
        %v4396 = vld [vmem:[#allocation3 + $0xa] sm:$0xff]
        %v4397 = vld [vmem:[#allocation3 + $0x12] sm:$0xff]
        %s4398 = scalar_lea.vmem %s5, 128
        %v4399 = vld [vmem:[%s4398] sm:$0xff]
        %v4400 = vld [vmem:[%s4398 + $0x8] sm:$0xff]
        %v4401 = vld [vmem:[%s4398 + $0x10] sm:$0xff]
        %v4402 = vld [vmem:[%s4398 + $0x18] sm:$0xff]
        %v4403 = vld [vmem:[%s4398 + $0x20] sm:$0xff]
        %v4404 = vld [vmem:[%s4398 + $0x28] sm:$0xff]
        %v4405 = vld [vmem:[%s4398 + $0x30] sm:$0xff]
        %v4406 = vld [vmem:[%s4398 + $0x38] sm:$0xff]
        %v4408 = vsel %vm410, %v4395, 0
        %v4411 = vsel %vm410, %v4396, 0
        %v4414 = vsel %vm410, %v4397, 0
        %4416 = vmatprep.subr.mxu0 0.0
        %4417 = vmatpush1.msra.mxu0 %v4399
        %4418 = vmatprep.subr.mxu0 0.0
        %4419 = vmatpush1.msra.mxu0 %v4400
        %4420 = vmatprep.subr.mxu0 0.0
        %4421 = vmatpush1.msra.mxu0 %v4401
        %4422 = vmatprep.subr.mxu0 0.0
        %4423 = vmatpush1.msra.mxu0 %v4402
        %4424 = vmatprep.subr.mxu0 0.0
        %4425 = vmatpush1.msra.mxu0 %v4403
        %4426 = vmatprep.subr.mxu0 0.0
        %4427 = vmatpush1.msra.mxu0 %v4404
        %4428 = vmatprep.subr.mxu0 0.0
        %4429 = vmatpush1.msra.mxu0 %v4405
        %4430 = vmatprep.subr.mxu0 0.0
        %4431 = vmatpush1.msra.mxu0 %v4406
        %4432 = vmatprep.subr.mxu0 0.0
        %4433 = vmatpush1.msra.mxu0 0.0
        %4434 = vmatprep.subr.mxu0 0.0
        %4435 = vmatpush1.msra.mxu0 0.0
        %4436 = vmatprep.subr.mxu0 0.0
        %4437 = vmatpush1.msra.mxu0 0.0
        %4438 = vmatprep.subr.mxu0 0.0
        %4439 = vmatpush1.msra.mxu0 0.0
        %4440 = vmatprep.subr.mxu0 0.0
        %4441 = vmatpush1.msra.mxu0 0.0
        %4442 = vmatprep.subr.mxu0 0.0
        %4443 = vmatpush1.msra.mxu0 0.0
        %4444 = vmatprep.subr.mxu0 0.0
        %4445 = vmatpush1.msra.mxu0 0.0
        %4446 = vmatprep.subr.mxu0 0.0
        %4447 = vmatpush1.msra.mxu0 0.0
        %4448 = vmatprep.subr.mxu0 0.0
        %4449 = vmatpush1.msra.mxu0 0.0
        %4450 = vmatprep.subr.mxu0 0.0
        %4451 = vmatpush1.msra.mxu0 0.0
        %4452 = vmatprep.subr.mxu0 0.0
        %4453 = vmatpush1.msra.mxu0 0.0
        %4454 = vmatprep.subr.mxu0 0.0
        %4455 = vmatpush1.msra.mxu0 0.0
        %4456 = vmatprep.subr.mxu0 0.0
        %4457 = vmatpush1.msra.mxu0 0.0
        %4458 = vmatprep.subr.mxu0 0.0
        %4459 = vmatpush1.msra.mxu0 0.0
        %4460 = vmatprep.subr.mxu0 0.0
        %4461 = vmatpush1.msra.mxu0 0.0
        %4462 = vmatprep.subr.mxu0 0.0
        %4463 = vmatpush1.msra.mxu0 0.0
        %4464 = vmatprep.subr.mxu0 0.0
        %4465 = vmatpush1.msra.mxu0 0.0
        %4466 = vmatprep.subr.mxu0 0.0
        %4467 = vmatpush1.msra.mxu0 0.0
        %4468 = vmatprep.subr.mxu0 0.0
        %4469 = vmatpush1.msra.mxu0 0.0
        %4470 = vmatprep.subr.mxu0 0.0
        %4471 = vmatpush1.msra.mxu0 0.0
        %4472 = vmatprep.subr.mxu0 0.0
        %4473 = vmatpush1.msra.mxu0 0.0
        %4474 = vmatprep.subr.mxu0 0.0
        %4475 = vmatpush1.msra.mxu0 0.0
        %4476 = vmatprep.subr.mxu0 0.0
        %4477 = vmatpush1.msra.mxu0 0.0
        %4478 = vmatprep.subr.mxu0 0.0
        %4479 = vmatpush1.msra.mxu0 0.0
        %4480 = vmatprep.mubr.f32.mxu0 0.0
        %4481 = vmatmul.mubr.f32.gmra.mrb[0].mxu0 %v4408
        %v4482 = vpop.f32.mrb[0].mxu0
        %v4483 = vadd.f32 0.0, %v4482
        %v4484 = vpop.f32.mrb[0].mxu0
        %4485 = vmatprep.mubr.f32.mxu0 0.0
        %4486 = vmatmul.mubr.f32.gmra.mrb[0].mxu0 %v4411
        %v4487 = vpop.f32.mrb[0].mxu0
        %v4488 = vadd.f32 0.0, %v4487
        %v4489 = vpop.f32.mrb[0].mxu0
        %4490 = vmatprep.mubr.f32.mxu0 0.0
        %4491 = vmatmul.mubr.f32.gmra.mrb[0].mxu0 %v4414
        %v4492 = vpop.f32.mrb[0].mxu0
        %v4493 = vadd.f32 0.0, %v4492
        %v4494 = vpop.f32.mrb[0].mxu0
        %4495 = vdwg.mxu0
        %v4496 = vadd.f32 %v4382, %v4483
        %v4497 = vadd.f32 %v4387, %v4488
        %v4498 = vadd.f32 %v4392, %v4493
        %v4499 = vld [vmem:[#allocation3 + $0x8] sm:$0xff]
        %v4500 = vld [vmem:[#allocation3 + $0x10] sm:$0xff]
        %v4501 = vld [vmem:[#allocation3 + $0x18] sm:$0xff]
        %s4502 = scalar_lea.vmem %s5, 192
        %v4503 = vld [vmem:[%s4502] sm:$0xff]
        %v4504 = vld [vmem:[%s4502 + $0x8] sm:$0xff]
        %v4505 = vld [vmem:[%s4502 + $0x10] sm:$0xff]
        %v4506 = vld [vmem:[%s4502 + $0x18] sm:$0xff]
        %v4507 = vld [vmem:[%s4502 + $0x20] sm:$0xff]
        %v4508 = vld [vmem:[%s4502 + $0x28] sm:$0xff]
        %v4509 = vld [vmem:[%s4502 + $0x30] sm:$0xff]
        %v4510 = vld [vmem:[%s4502 + $0x38] sm:$0xff]
        %v4512 = vsel %vm410, %v4499, 0
        %v4515 = vsel %vm410, %v4500, 0
        %v4518 = vsel %vm410, %v4501, 0
        %4520 = vmatprep.subr.mxu0 0.0
        %4521 = vmatpush1.msra.mxu0 %v4503
        %4522 = vmatprep.subr.mxu0 0.0
        %4523 = vmatpush1.msra.mxu0 %v4504
        %4524 = vmatprep.subr.mxu0 0.0
        %4525 = vmatpush1.msra.mxu0 %v4505
        %4526 = vmatprep.subr.mxu0 0.0
        %4527 = vmatpush1.msra.mxu0 %v4506
        %4528 = vmatprep.subr.mxu0 0.0
        %4529 = vmatpush1.msra.mxu0 %v4507
        %4530 = vmatprep.subr.mxu0 0.0
        %4531 = vmatpush1.msra.mxu0 %v4508
        %4532 = vmatprep.subr.mxu0 0.0
        %4533 = vmatpush1.msra.mxu0 %v4509
        %4534 = vmatprep.subr.mxu0 0.0
        %4535 = vmatpush1.msra.mxu0 %v4510
        %4536 = vmatprep.subr.mxu0 0.0
        %4537 = vmatpush1.msra.mxu0 0.0
        %4538 = vmatprep.subr.mxu0 0.0
        %4539 = vmatpush1.msra.mxu0 0.0
        %4540 = vmatprep.subr.mxu0 0.0
        %4541 = vmatpush1.msra.mxu0 0.0
        %4542 = vmatprep.subr.mxu0 0.0
        %4543 = vmatpush1.msra.mxu0 0.0
        %4544 = vmatprep.subr.mxu0 0.0
        %4545 = vmatpush1.msra.mxu0 0.0
        %4546 = vmatprep.subr.mxu0 0.0
        %4547 = vmatpush1.msra.mxu0 0.0
        %4548 = vmatprep.subr.mxu0 0.0
        %4549 = vmatpush1.msra.mxu0 0.0
        %4550 = vmatprep.subr.mxu0 0.0
        %4551 = vmatpush1.msra.mxu0 0.0
        %4552 = vmatprep.subr.mxu0 0.0
        %4553 = vmatpush1.msra.mxu0 0.0
        %4554 = vmatprep.subr.mxu0 0.0
        %4555 = vmatpush1.msra.mxu0 0.0
        %4556 = vmatprep.subr.mxu0 0.0
        %4557 = vmatpush1.msra.mxu0 0.0
        %4558 = vmatprep.subr.mxu0 0.0
        %4559 = vmatpush1.msra.mxu0 0.0
        %4560 = vmatprep.subr.mxu0 0.0
        %4561 = vmatpush1.msra.mxu0 0.0
        %4562 = vmatprep.subr.mxu0 0.0
        %4563 = vmatpush1.msra.mxu0 0.0
        %4564 = vmatprep.subr.mxu0 0.0
        %4565 = vmatpush1.msra.mxu0 0.0
        %4566 = vmatprep.subr.mxu0 0.0
        %4567 = vmatpush1.msra.mxu0 0.0
        %4568 = vmatprep.subr.mxu0 0.0
        %4569 = vmatpush1.msra.mxu0 0.0
        %4570 = vmatprep.subr.mxu0 0.0
        %4571 = vmatpush1.msra.mxu0 0.0
        %4572 = vmatprep.subr.mxu0 0.0
        %4573 = vmatpush1.msra.mxu0 0.0
        %4574 = vmatprep.subr.mxu0 0.0
        %4575 = vmatpush1.msra.mxu0 0.0
        %4576 = vmatprep.subr.mxu0 0.0
        %4577 = vmatpush1.msra.mxu0 0.0
        %4578 = vmatprep.subr.mxu0 0.0
        %4579 = vmatpush1.msra.mxu0 0.0
        %4580 = vmatprep.subr.mxu0 0.0
        %4581 = vmatpush1.msra.mxu0 0.0
        %4582 = vmatprep.subr.mxu0 0.0
        %4583 = vmatpush1.msra.mxu0 0.0
        %4584 = vmatprep.mubr.f32.mxu0 0.0
        %4585 = vmatmul.mubr.f32.gmra.mrb[0].mxu0 %v4512
        %v4586 = vpop.f32.mrb[0].mxu0
        %v4587 = vadd.f32 0.0, %v4586
        %v4588 = vpop.f32.mrb[0].mxu0
        %4589 = vmatprep.mubr.f32.mxu0 0.0
        %4590 = vmatmul.mubr.f32.gmra.mrb[0].mxu0 %v4515
        %v4591 = vpop.f32.mrb[0].mxu0
        %v4592 = vadd.f32 0.0, %v4591
        %v4593 = vpop.f32.mrb[0].mxu0
        %4594 = vmatprep.mubr.f32.mxu0 0.0
        %4595 = vmatmul.mubr.f32.gmra.mrb[0].mxu0 %v4518
        %v4596 = vpop.f32.mrb[0].mxu0
        %v4597 = vadd.f32 0.0, %v4596
        %v4598 = vpop.f32.mrb[0].mxu0
        %4599 = vdwg.mxu0
        %v4600 = vadd.f32 %v4496, %v4587
        %v4601 = vadd.f32 %v4497, %v4592
        %v4602 = vadd.f32 %v4498, %v4597
        %v4603 = vld [vmem:[#allocation3 + $0x9] sm:$0xff]
        %v4604 = vld [vmem:[#allocation3 + $0x11] sm:$0xff]
        %v4605 = vld [vmem:[#allocation3 + $0x19] sm:$0xff]
        %s4606 = scalar_lea.vmem %s5, 256
        %v4607 = vld [vmem:[%s4606] sm:$0xff]
        %v4608 = vld [vmem:[%s4606 + $0x8] sm:$0xff]
        %v4609 = vld [vmem:[%s4606 + $0x10] sm:$0xff]
        %v4610 = vld [vmem:[%s4606 + $0x18] sm:$0xff]
        %v4611 = vld [vmem:[%s4606 + $0x20] sm:$0xff]
        %v4612 = vld [vmem:[%s4606 + $0x28] sm:$0xff]
        %v4613 = vld [vmem:[%s4606 + $0x30] sm:$0xff]
        %v4614 = vld [vmem:[%s4606 + $0x38] sm:$0xff]
        %v4616 = vsel %vm410, %v4603, 0
        %v4619 = vsel %vm410, %v4604, 0
        %v4622 = vsel %vm410, %v4605, 0
        %4624 = vmatprep.subr.mxu0 0.0
        %4625 = vmatpush1.msra.mxu0 %v4607
        %4626 = vmatprep.subr.mxu0 0.0
        %4627 = vmatpush1.msra.mxu0 %v4608
        %4628 = vmatprep.subr.mxu0 0.0
        %4629 = vmatpush1.msra.mxu0 %v4609
        %4630 = vmatprep.subr.mxu0 0.0
        %4631 = vmatpush1.msra.mxu0 %v4610
        %4632 = vmatprep.subr.mxu0 0.0
        %4633 = vmatpush1.msra.mxu0 %v4611
        %4634 = vmatprep.subr.mxu0 0.0
        %4635 = vmatpush1.msra.mxu0 %v4612
        %4636 = vmatprep.subr.mxu0 0.0
        %4637 = vmatpush1.msra.mxu0 %v4613
        %4638 = vmatprep.subr.mxu0 0.0
        %4639 = vmatpush1.msra.mxu0 %v4614
        %4640 = vmatprep.subr.mxu0 0.0
        %4641 = vmatpush1.msra.mxu0 0.0
        %4642 = vmatprep.subr.mxu0 0.0
        %4643 = vmatpush1.msra.mxu0 0.0
        %4644 = vmatprep.subr.mxu0 0.0
        %4645 = vmatpush1.msra.mxu0 0.0
        %4646 = vmatprep.subr.mxu0 0.0
        %4647 = vmatpush1.msra.mxu0 0.0
        %4648 = vmatprep.subr.mxu0 0.0
        %4649 = vmatpush1.msra.mxu0 0.0
        %4650 = vmatprep.subr.mxu0 0.0
        %4651 = vmatpush1.msra.mxu0 0.0
        %4652 = vmatprep.subr.mxu0 0.0
        %4653 = vmatpush1.msra.mxu0 0.0
        %4654 = vmatprep.subr.mxu0 0.0
        %4655 = vmatpush1.msra.mxu0 0.0
        %4656 = vmatprep.subr.mxu0 0.0
        %4657 = vmatpush1.msra.mxu0 0.0
        %4658 = vmatprep.subr.mxu0 0.0
        %4659 = vmatpush1.msra.mxu0 0.0
        %4660 = vmatprep.subr.mxu0 0.0
        %4661 = vmatpush1.msra.mxu0 0.0
        %4662 = vmatprep.subr.mxu0 0.0
        %4663 = vmatpush1.msra.mxu0 0.0
        %4664 = vmatprep.subr.mxu0 0.0
        %4665 = vmatpush1.msra.mxu0 0.0
        %4666 = vmatprep.subr.mxu0 0.0
        %4667 = vmatpush1.msra.mxu0 0.0
        %4668 = vmatprep.subr.mxu0 0.0
        %4669 = vmatpush1.msra.mxu0 0.0
        %4670 = vmatprep.subr.mxu0 0.0
        %4671 = vmatpush1.msra.mxu0 0.0
        %4672 = vmatprep.subr.mxu0 0.0
        %4673 = vmatpush1.msra.mxu0 0.0
        %4674 = vmatprep.subr.mxu0 0.0
        %4675 = vmatpush1.msra.mxu0 0.0
        %4676 = vmatprep.subr.mxu0 0.0
        %4677 = vmatpush1.msra.mxu0 0.0
        %4678 = vmatprep.subr.mxu0 0.0
        %4679 = vmatpush1.msra.mxu0 0.0
        %4680 = vmatprep.subr.mxu0 0.0
        %4681 = vmatpush1.msra.mxu0 0.0
        %4682 = vmatprep.subr.mxu0 0.0
        %4683 = vmatpush1.msra.mxu0 0.0
        %4684 = vmatprep.subr.mxu0 0.0
        %4685 = vmatpush1.msra.mxu0 0.0
        %4686 = vmatprep.subr.mxu0 0.0
        %4687 = vmatpush1.msra.mxu0 0.0
        %4688 = vmatprep.mubr.f32.mxu0 0.0
        %4689 = vmatmul.mubr.f32.gmra.mrb[0].mxu0 %v4616
        %v4690 = vpop.f32.mrb[0].mxu0
        %v4691 = vadd.f32 0.0, %v4690
        %v4692 = vpop.f32.mrb[0].mxu0
        %4693 = vmatprep.mubr.f32.mxu0 0.0
        %4694 = vmatmul.mubr.f32.gmra.mrb[0].mxu0 %v4619
        %v4695 = vpop.f32.mrb[0].mxu0
        %v4696 = vadd.f32 0.0, %v4695
        %v4697 = vpop.f32.mrb[0].mxu0
        %4698 = vmatprep.mubr.f32.mxu0 0.0
        %4699 = vmatmul.mubr.f32.gmra.mrb[0].mxu0 %v4622
        %v4700 = vpop.f32.mrb[0].mxu0
        %v4701 = vadd.f32 0.0, %v4700
        %v4702 = vpop.f32.mrb[0].mxu0
        %4703 = vdwg.mxu0
        %v4704 = vadd.f32 %v4600, %v4691
        %v4705 = vadd.f32 %v4601, %v4696
        %v4706 = vadd.f32 %v4602, %v4701
        %v4707 = vld [vmem:[#allocation3 + $0xa] sm:$0xff]
        %v4708 = vld [vmem:[#allocation3 + $0x12] sm:$0xff]
        %v4709 = vld [vmem:[#allocation3 + $0x1a] sm:$0xff]
        %s4710 = scalar_lea.vmem %s5, 320
        %v4711 = vld [vmem:[%s4710] sm:$0xff]
        %v4712 = vld [vmem:[%s4710 + $0x8] sm:$0xff]
        %v4713 = vld [vmem:[%s4710 + $0x10] sm:$0xff]
        %v4714 = vld [vmem:[%s4710 + $0x18] sm:$0xff]
        %v4715 = vld [vmem:[%s4710 + $0x20] sm:$0xff]
        %v4716 = vld [vmem:[%s4710 + $0x28] sm:$0xff]
        %v4717 = vld [vmem:[%s4710 + $0x30] sm:$0xff]
        %v4718 = vld [vmem:[%s4710 + $0x38] sm:$0xff]
        %v4720 = vsel %vm410, %v4707, 0
        %v4723 = vsel %vm410, %v4708, 0
        %v4726 = vsel %vm410, %v4709, 0
        %4728 = vmatprep.subr.mxu0 0.0
        %4729 = vmatpush1.msra.mxu0 %v4711
        %4730 = vmatprep.subr.mxu0 0.0
        %4731 = vmatpush1.msra.mxu0 %v4712
        %4732 = vmatprep.subr.mxu0 0.0
        %4733 = vmatpush1.msra.mxu0 %v4713
        %4734 = vmatprep.subr.mxu0 0.0
        %4735 = vmatpush1.msra.mxu0 %v4714
        %4736 = vmatprep.subr.mxu0 0.0
        %4737 = vmatpush1.msra.mxu0 %v4715
        %4738 = vmatprep.subr.mxu0 0.0
        %4739 = vmatpush1.msra.mxu0 %v4716
        %4740 = vmatprep.subr.mxu0 0.0
        %4741 = vmatpush1.msra.mxu0 %v4717
        %4742 = vmatprep.subr.mxu0 0.0
        %4743 = vmatpush1.msra.mxu0 %v4718
        %4744 = vmatprep.subr.mxu0 0.0
        %4745 = vmatpush1.msra.mxu0 0.0
        %4746 = vmatprep.subr.mxu0 0.0
        %4747 = vmatpush1.msra.mxu0 0.0
        %4748 = vmatprep.subr.mxu0 0.0
        %4749 = vmatpush1.msra.mxu0 0.0
        %4750 = vmatprep.subr.mxu0 0.0
        %4751 = vmatpush1.msra.mxu0 0.0
        %4752 = vmatprep.subr.mxu0 0.0
        %4753 = vmatpush1.msra.mxu0 0.0
        %4754 = vmatprep.subr.mxu0 0.0
        %4755 = vmatpush1.msra.mxu0 0.0
        %4756 = vmatprep.subr.mxu0 0.0
        %4757 = vmatpush1.msra.mxu0 0.0
        %4758 = vmatprep.subr.mxu0 0.0
        %4759 = vmatpush1.msra.mxu0 0.0
        %4760 = vmatprep.subr.mxu0 0.0
        %4761 = vmatpush1.msra.mxu0 0.0
        %4762 = vmatprep.subr.mxu0 0.0
        %4763 = vmatpush1.msra.mxu0 0.0
        %4764 = vmatprep.subr.mxu0 0.0
        %4765 = vmatpush1.msra.mxu0 0.0
        %4766 = vmatprep.subr.mxu0 0.0
        %4767 = vmatpush1.msra.mxu0 0.0
        %4768 = vmatprep.subr.mxu0 0.0
        %4769 = vmatpush1.msra.mxu0 0.0
        %4770 = vmatprep.subr.mxu0 0.0
        %4771 = vmatpush1.msra.mxu0 0.0
        %4772 = vmatprep.subr.mxu0 0.0
        %4773 = vmatpush1.msra.mxu0 0.0
        %4774 = vmatprep.subr.mxu0 0.0
        %4775 = vmatpush1.msra.mxu0 0.0
        %4776 = vmatprep.subr.mxu0 0.0
        %4777 = vmatpush1.msra.mxu0 0.0
        %4778 = vmatprep.subr.mxu0 0.0
        %4779 = vmatpush1.msra.mxu0 0.0
        %4780 = vmatprep.subr.mxu0 0.0
        %4781 = vmatpush1.msra.mxu0 0.0
        %4782 = vmatprep.subr.mxu0 0.0
        %4783 = vmatpush1.msra.mxu0 0.0
        %4784 = vmatprep.subr.mxu0 0.0
        %4785 = vmatpush1.msra.mxu0 0.0
        %4786 = vmatprep.subr.mxu0 0.0
        %4787 = vmatpush1.msra.mxu0 0.0
        %4788 = vmatprep.subr.mxu0 0.0
        %4789 = vmatpush1.msra.mxu0 0.0
        %4790 = vmatprep.subr.mxu0 0.0
        %4791 = vmatpush1.msra.mxu0 0.0
        %4792 = vmatprep.mubr.f32.mxu0 0.0
        %4793 = vmatmul.mubr.f32.gmra.mrb[0].mxu0 %v4720
        %v4794 = vpop.f32.mrb[0].mxu0
        %v4795 = vadd.f32 0.0, %v4794
        %v4796 = vpop.f32.mrb[0].mxu0
        %4797 = vmatprep.mubr.f32.mxu0 0.0
        %4798 = vmatmul.mubr.f32.gmra.mrb[0].mxu0 %v4723
        %v4799 = vpop.f32.mrb[0].mxu0
        %v4800 = vadd.f32 0.0, %v4799
        %v4801 = vpop.f32.mrb[0].mxu0
        %4802 = vmatprep.mubr.f32.mxu0 0.0
        %4803 = vmatmul.mubr.f32.gmra.mrb[0].mxu0 %v4726
        %v4804 = vpop.f32.mrb[0].mxu0
        %v4805 = vadd.f32 0.0, %v4804
        %v4806 = vpop.f32.mrb[0].mxu0
        %4807 = vdwg.mxu0
        %v4808 = vadd.f32 %v4704, %v4795
        %v4809 = vadd.f32 %v4705, %v4800
        %v4810 = vadd.f32 %v4706, %v4805
        %v4811 = vld [vmem:[#allocation3 + $0x10] sm:$0xff]
        %v4812 = vld [vmem:[#allocation3 + $0x18] sm:$0xff]
        %v4813 = vld [vmem:[#allocation3 + $0x20] sm:$0xff]
        %s4814 = scalar_lea.vmem %s5, 384
        %v4815 = vld [vmem:[%s4814] sm:$0xff]
        %v4816 = vld [vmem:[%s4814 + $0x8] sm:$0xff]
        %v4817 = vld [vmem:[%s4814 + $0x10] sm:$0xff]
        %v4818 = vld [vmem:[%s4814 + $0x18] sm:$0xff]
        %v4819 = vld [vmem:[%s4814 + $0x20] sm:$0xff]
        %v4820 = vld [vmem:[%s4814 + $0x28] sm:$0xff]
        %v4821 = vld [vmem:[%s4814 + $0x30] sm:$0xff]
        %v4822 = vld [vmem:[%s4814 + $0x38] sm:$0xff]
        %v4824 = vsel %vm410, %v4811, 0
        %v4827 = vsel %vm410, %v4812, 0
        %v4830 = vsel %vm410, %v4813, 0
        %4832 = vmatprep.subr.mxu0 0.0
        %4833 = vmatpush1.msra.mxu0 %v4815
        %4834 = vmatprep.subr.mxu0 0.0
        %4835 = vmatpush1.msra.mxu0 %v4816
        %4836 = vmatprep.subr.mxu0 0.0
        %4837 = vmatpush1.msra.mxu0 %v4817
        %4838 = vmatprep.subr.mxu0 0.0
        %4839 = vmatpush1.msra.mxu0 %v4818
        %4840 = vmatprep.subr.mxu0 0.0
        %4841 = vmatpush1.msra.mxu0 %v4819
        %4842 = vmatprep.subr.mxu0 0.0
        %4843 = vmatpush1.msra.mxu0 %v4820
        %4844 = vmatprep.subr.mxu0 0.0
        %4845 = vmatpush1.msra.mxu0 %v4821
        %4846 = vmatprep.subr.mxu0 0.0
        %4847 = vmatpush1.msra.mxu0 %v4822
        %4848 = vmatprep.subr.mxu0 0.0
        %4849 = vmatpush1.msra.mxu0 0.0
        %4850 = vmatprep.subr.mxu0 0.0
        %4851 = vmatpush1.msra.mxu0 0.0
        %4852 = vmatprep.subr.mxu0 0.0
        %4853 = vmatpush1.msra.mxu0 0.0
        %4854 = vmatprep.subr.mxu0 0.0
        %4855 = vmatpush1.msra.mxu0 0.0
        %4856 = vmatprep.subr.mxu0 0.0
        %4857 = vmatpush1.msra.mxu0 0.0
        %4858 = vmatprep.subr.mxu0 0.0
        %4859 = vmatpush1.msra.mxu0 0.0
        %4860 = vmatprep.subr.mxu0 0.0
        %4861 = vmatpush1.msra.mxu0 0.0
        %4862 = vmatprep.subr.mxu0 0.0
        %4863 = vmatpush1.msra.mxu0 0.0
        %4864 = vmatprep.subr.mxu0 0.0
        %4865 = vmatpush1.msra.mxu0 0.0
        %4866 = vmatprep.subr.mxu0 0.0
        %4867 = vmatpush1.msra.mxu0 0.0
        %4868 = vmatprep.subr.mxu0 0.0
        %4869 = vmatpush1.msra.mxu0 0.0
        %4870 = vmatprep.subr.mxu0 0.0
        %4871 = vmatpush1.msra.mxu0 0.0
        %4872 = vmatprep.subr.mxu0 0.0
        %4873 = vmatpush1.msra.mxu0 0.0
        %4874 = vmatprep.subr.mxu0 0.0
        %4875 = vmatpush1.msra.mxu0 0.0
        %4876 = vmatprep.subr.mxu0 0.0
        %4877 = vmatpush1.msra.mxu0 0.0
        %4878 = vmatprep.subr.mxu0 0.0
        %4879 = vmatpush1.msra.mxu0 0.0
        %4880 = vmatprep.subr.mxu0 0.0
        %4881 = vmatpush1.msra.mxu0 0.0
        %4882 = vmatprep.subr.mxu0 0.0
        %4883 = vmatpush1.msra.mxu0 0.0
        %4884 = vmatprep.subr.mxu0 0.0
        %4885 = vmatpush1.msra.mxu0 0.0
        %4886 = vmatprep.subr.mxu0 0.0
        %4887 = vmatpush1.msra.mxu0 0.0
        %4888 = vmatprep.subr.mxu0 0.0
        %4889 = vmatpush1.msra.mxu0 0.0
        %4890 = vmatprep.subr.mxu0 0.0
        %4891 = vmatpush1.msra.mxu0 0.0
        %4892 = vmatprep.subr.mxu0 0.0
        %4893 = vmatpush1.msra.mxu0 0.0
        %4894 = vmatprep.subr.mxu0 0.0
        %4895 = vmatpush1.msra.mxu0 0.0
        %4896 = vmatprep.mubr.f32.mxu0 0.0
        %4897 = vmatmul.mubr.f32.gmra.mrb[0].mxu0 %v4824
        %v4898 = vpop.f32.mrb[0].mxu0
        %v4899 = vadd.f32 0.0, %v4898
        %v4900 = vpop.f32.mrb[0].mxu0
        %4901 = vmatprep.mubr.f32.mxu0 0.0
        %4902 = vmatmul.mubr.f32.gmra.mrb[0].mxu0 %v4827
        %v4903 = vpop.f32.mrb[0].mxu0
        %v4904 = vadd.f32 0.0, %v4903
        %v4905 = vpop.f32.mrb[0].mxu0
        %4906 = vmatprep.mubr.f32.mxu0 0.0
        %4907 = vmatmul.mubr.f32.gmra.mrb[0].mxu0 %v4830
        %v4908 = vpop.f32.mrb[0].mxu0
        %v4909 = vadd.f32 0.0, %v4908
        %v4910 = vpop.f32.mrb[0].mxu0
        %4911 = vdwg.mxu0
        %v4912 = vadd.f32 %v4808, %v4899
        %v4913 = vadd.f32 %v4809, %v4904
        %v4914 = vadd.f32 %v4810, %v4909
        %v4915 = vld [vmem:[#allocation3 + $0x11] sm:$0xff]
        %v4916 = vld [vmem:[#allocation3 + $0x19] sm:$0xff]
        %v4917 = vld [vmem:[#allocation3 + $0x21] sm:$0xff]
        %s4918 = scalar_lea.vmem %s5, 448
        %v4919 = vld [vmem:[%s4918] sm:$0xff]
        %v4920 = vld [vmem:[%s4918 + $0x8] sm:$0xff]
        %v4921 = vld [vmem:[%s4918 + $0x10] sm:$0xff]
        %v4922 = vld [vmem:[%s4918 + $0x18] sm:$0xff]
        %v4923 = vld [vmem:[%s4918 + $0x20] sm:$0xff]
        %v4924 = vld [vmem:[%s4918 + $0x28] sm:$0xff]
        %v4925 = vld [vmem:[%s4918 + $0x30] sm:$0xff]
        %v4926 = vld [vmem:[%s4918 + $0x38] sm:$0xff]
        %v4928 = vsel %vm410, %v4915, 0
        %v4931 = vsel %vm410, %v4916, 0
        %v4934 = vsel %vm410, %v4917, 0
        %4936 = vmatprep.subr.mxu0 0.0
        %4937 = vmatpush1.msra.mxu0 %v4919
        %4938 = vmatprep.subr.mxu0 0.0
        %4939 = vmatpush1.msra.mxu0 %v4920
        %4940 = vmatprep.subr.mxu0 0.0
        %4941 = vmatpush1.msra.mxu0 %v4921
        %4942 = vmatprep.subr.mxu0 0.0
        %4943 = vmatpush1.msra.mxu0 %v4922
        %4944 = vmatprep.subr.mxu0 0.0
        %4945 = vmatpush1.msra.mxu0 %v4923
        %4946 = vmatprep.subr.mxu0 0.0
        %4947 = vmatpush1.msra.mxu0 %v4924
        %4948 = vmatprep.subr.mxu0 0.0
        %4949 = vmatpush1.msra.mxu0 %v4925
        %4950 = vmatprep.subr.mxu0 0.0
        %4951 = vmatpush1.msra.mxu0 %v4926
        %4952 = vmatprep.subr.mxu0 0.0
        %4953 = vmatpush1.msra.mxu0 0.0
        %4954 = vmatprep.subr.mxu0 0.0
        %4955 = vmatpush1.msra.mxu0 0.0
        %4956 = vmatprep.subr.mxu0 0.0
        %4957 = vmatpush1.msra.mxu0 0.0
        %4958 = vmatprep.subr.mxu0 0.0
        %4959 = vmatpush1.msra.mxu0 0.0
        %4960 = vmatprep.subr.mxu0 0.0
        %4961 = vmatpush1.msra.mxu0 0.0
        %4962 = vmatprep.subr.mxu0 0.0
        %4963 = vmatpush1.msra.mxu0 0.0
        %4964 = vmatprep.subr.mxu0 0.0
        %4965 = vmatpush1.msra.mxu0 0.0
        %4966 = vmatprep.subr.mxu0 0.0
        %4967 = vmatpush1.msra.mxu0 0.0
        %4968 = vmatprep.subr.mxu0 0.0
        %4969 = vmatpush1.msra.mxu0 0.0
        %4970 = vmatprep.subr.mxu0 0.0
        %4971 = vmatpush1.msra.mxu0 0.0
        %4972 = vmatprep.subr.mxu0 0.0
        %4973 = vmatpush1.msra.mxu0 0.0
        %4974 = vmatprep.subr.mxu0 0.0
        %4975 = vmatpush1.msra.mxu0 0.0
        %4976 = vmatprep.subr.mxu0 0.0
        %4977 = vmatpush1.msra.mxu0 0.0
        %4978 = vmatprep.subr.mxu0 0.0
        %4979 = vmatpush1.msra.mxu0 0.0
        %4980 = vmatprep.subr.mxu0 0.0
        %4981 = vmatpush1.msra.mxu0 0.0
        %4982 = vmatprep.subr.mxu0 0.0
        %4983 = vmatpush1.msra.mxu0 0.0
        %4984 = vmatprep.subr.mxu0 0.0
        %4985 = vmatpush1.msra.mxu0 0.0
        %4986 = vmatprep.subr.mxu0 0.0
        %4987 = vmatpush1.msra.mxu0 0.0
        %4988 = vmatprep.subr.mxu0 0.0
        %4989 = vmatpush1.msra.mxu0 0.0
        %4990 = vmatprep.subr.mxu0 0.0
        %4991 = vmatpush1.msra.mxu0 0.0
        %4992 = vmatprep.subr.mxu0 0.0
        %4993 = vmatpush1.msra.mxu0 0.0
        %4994 = vmatprep.subr.mxu0 0.0
        %4995 = vmatpush1.msra.mxu0 0.0
        %4996 = vmatprep.subr.mxu0 0.0
        %4997 = vmatpush1.msra.mxu0 0.0
        %4998 = vmatprep.subr.mxu0 0.0
        %4999 = vmatpush1.msra.mxu0 0.0
        %5000 = vmatprep.mubr.f32.mxu0 0.0
        %5001 = vmatmul.mubr.f32.gmra.mrb[0].mxu0 %v4928
        %v5002 = vpop.f32.mrb[0].mxu0
        %v5003 = vadd.f32 0.0, %v5002
        %v5004 = vpop.f32.mrb[0].mxu0
        %5005 = vmatprep.mubr.f32.mxu0 0.0
        %5006 = vmatmul.mubr.f32.gmra.mrb[0].mxu0 %v4931
        %v5007 = vpop.f32.mrb[0].mxu0
        %v5008 = vadd.f32 0.0, %v5007
        %v5009 = vpop.f32.mrb[0].mxu0
        %5010 = vmatprep.mubr.f32.mxu0 0.0
        %5011 = vmatmul.mubr.f32.gmra.mrb[0].mxu0 %v4934
        %v5012 = vpop.f32.mrb[0].mxu0
        %v5013 = vadd.f32 0.0, %v5012
        %v5014 = vpop.f32.mrb[0].mxu0
        %5015 = vdwg.mxu0
        %v5016 = vadd.f32 %v4912, %v5003
        %v5017 = vadd.f32 %v4913, %v5008
        %v5018 = vadd.f32 %v4914, %v5013
        %v5019 = vld [vmem:[#allocation3 + $0x12] sm:$0xff]
        %v5020 = vld [vmem:[#allocation3 + $0x1a] sm:$0xff]
        %v5021 = vld [vmem:[#allocation3 + $0x22] sm:$0xff]
        %s5022 = scalar_lea.vmem %s5, 512
        %v5023 = vld [vmem:[%s5022] sm:$0xff]
        %v5024 = vld [vmem:[%s5022 + $0x8] sm:$0xff]
        %v5025 = vld [vmem:[%s5022 + $0x10] sm:$0xff]
        %v5026 = vld [vmem:[%s5022 + $0x18] sm:$0xff]
        %v5027 = vld [vmem:[%s5022 + $0x20] sm:$0xff]
        %v5028 = vld [vmem:[%s5022 + $0x28] sm:$0xff]
        %v5029 = vld [vmem:[%s5022 + $0x30] sm:$0xff]
        %v5030 = vld [vmem:[%s5022 + $0x38] sm:$0xff]
        %v5032 = vsel %vm410, %v5019, 0
        %v5035 = vsel %vm410, %v5020, 0
        %v5038 = vsel %vm410, %v5021, 0
        %5040 = vmatprep.subr.mxu0 0.0
        %5041 = vmatpush1.msra.mxu0 %v5023
        %5042 = vmatprep.subr.mxu0 0.0
        %5043 = vmatpush1.msra.mxu0 %v5024
        %5044 = vmatprep.subr.mxu0 0.0
        %5045 = vmatpush1.msra.mxu0 %v5025
        %5046 = vmatprep.subr.mxu0 0.0
        %5047 = vmatpush1.msra.mxu0 %v5026
        %5048 = vmatprep.subr.mxu0 0.0
        %5049 = vmatpush1.msra.mxu0 %v5027
        %5050 = vmatprep.subr.mxu0 0.0
        %5051 = vmatpush1.msra.mxu0 %v5028
        %5052 = vmatprep.subr.mxu0 0.0
        %5053 = vmatpush1.msra.mxu0 %v5029
        %5054 = vmatprep.subr.mxu0 0.0
        %5055 = vmatpush1.msra.mxu0 %v5030
        %5056 = vmatprep.subr.mxu0 0.0
        %5057 = vmatpush1.msra.mxu0 0.0
        %5058 = vmatprep.subr.mxu0 0.0
        %5059 = vmatpush1.msra.mxu0 0.0
        %5060 = vmatprep.subr.mxu0 0.0
        %5061 = vmatpush1.msra.mxu0 0.0
        %5062 = vmatprep.subr.mxu0 0.0
        %5063 = vmatpush1.msra.mxu0 0.0
        %5064 = vmatprep.subr.mxu0 0.0
        %5065 = vmatpush1.msra.mxu0 0.0
        %5066 = vmatprep.subr.mxu0 0.0
        %5067 = vmatpush1.msra.mxu0 0.0
        %5068 = vmatprep.subr.mxu0 0.0
        %5069 = vmatpush1.msra.mxu0 0.0
        %5070 = vmatprep.subr.mxu0 0.0
        %5071 = vmatpush1.msra.mxu0 0.0
        %5072 = vmatprep.subr.mxu0 0.0
        %5073 = vmatpush1.msra.mxu0 0.0
        %5074 = vmatprep.subr.mxu0 0.0
        %5075 = vmatpush1.msra.mxu0 0.0
        %5076 = vmatprep.subr.mxu0 0.0
        %5077 = vmatpush1.msra.mxu0 0.0
        %5078 = vmatprep.subr.mxu0 0.0
        %5079 = vmatpush1.msra.mxu0 0.0
        %5080 = vmatprep.subr.mxu0 0.0
        %5081 = vmatpush1.msra.mxu0 0.0
        %5082 = vmatprep.subr.mxu0 0.0
        %5083 = vmatpush1.msra.mxu0 0.0
        %5084 = vmatprep.subr.mxu0 0.0
        %5085 = vmatpush1.msra.mxu0 0.0
        %5086 = vmatprep.subr.mxu0 0.0
        %5087 = vmatpush1.msra.mxu0 0.0
        %5088 = vmatprep.subr.mxu0 0.0
        %5089 = vmatpush1.msra.mxu0 0.0
        %5090 = vmatprep.subr.mxu0 0.0
        %5091 = vmatpush1.msra.mxu0 0.0
        %5092 = vmatprep.subr.mxu0 0.0
        %5093 = vmatpush1.msra.mxu0 0.0
        %5094 = vmatprep.subr.mxu0 0.0
        %5095 = vmatpush1.msra.mxu0 0.0
        %5096 = vmatprep.subr.mxu0 0.0
        %5097 = vmatpush1.msra.mxu0 0.0
        %5098 = vmatprep.subr.mxu0 0.0
        %5099 = vmatpush1.msra.mxu0 0.0
        %5100 = vmatprep.subr.mxu0 0.0
        %5101 = vmatpush1.msra.mxu0 0.0
        %5102 = vmatprep.subr.mxu0 0.0
        %5103 = vmatpush1.msra.mxu0 0.0
        %5104 = vmatprep.mubr.f32.mxu0 0.0
        %5105 = vmatmul.mubr.f32.gmra.mrb[0].mxu0 %v5032
        %v5106 = vpop.f32.mrb[0].mxu0
        %v5107 = vadd.f32 0.0, %v5106
        %v5108 = vpop.f32.mrb[0].mxu0
        %5109 = vmatprep.mubr.f32.mxu0 0.0
        %5110 = vmatmul.mubr.f32.gmra.mrb[0].mxu0 %v5035
        %v5111 = vpop.f32.mrb[0].mxu0
        %v5112 = vadd.f32 0.0, %v5111
        %v5113 = vpop.f32.mrb[0].mxu0
        %5114 = vmatprep.mubr.f32.mxu0 0.0
        %5115 = vmatmul.mubr.f32.gmra.mrb[0].mxu0 %v5038
        %v5116 = vpop.f32.mrb[0].mxu0
        %v5117 = vadd.f32 0.0, %v5116
        %v5118 = vpop.f32.mrb[0].mxu0
        %5119 = vdwg.mxu0
        %v5120 = vadd.f32 %v5016, %v5107
        %v5121 = vadd.f32 %v5017, %v5112
        %v5122 = vadd.f32 %v5018, %v5117
        %v5123 = vld [vmem:[%s6] sm:$0x1]
        %v5125 = vlaneseq
        %v5126 = vshrl.u32 %v5125, 7
        %v5127 = vsub.s32 0, %v5126
        %v5128 = vrot.slane %v5123, %v5127
        %v5130 = vadd.f32 %v5120, %v5128
        %v5131 = vadd.f32 %v5121, %v5128
        %v5132 = vadd.f32 %v5122, %v5128
        %v5133 = vmax.f32 %v5130, 0.0
        %v5134 = vmax.f32 %v5131, 0.0
        %v5135 = vmax.f32 %v5132, 0.0
        %v5136 = vrot.slane %v5133, 1
        %v5137 = vrot.slane %v5134, 1
        %v5138 = vrot.slane %v5135, 1
        %v5139 = vsel %vm1292, %v5137, %v5138
        %v5140 = vsel %vm1292, %v5136, %v5137
        %v5141 = vmax.f32 %v5133, %v5140
        %v5142 = vmax.f32 %v5134, %v5139
        %v5143 = vmax.f32 %v5141, %v5142
        %v5144 = vld [vmem:[%s7] sm:$0xff]
        %v5145 = vld [vmem:[%s7 + $0x8] sm:$0xff]
        %v5146 = vld [vmem:[%s7 + $0x10] sm:$0xff]
        %v5147 = vld [vmem:[%s7 + $0x18] sm:$0xff]
        %v5148 = vld [vmem:[%s7 + $0x20] sm:$0xff]
        %v5149 = vld [vmem:[%s7 + $0x28] sm:$0xff]
        %v5150 = vld [vmem:[%s7 + $0x30] sm:$0xff]
        %v5151 = vld [vmem:[%s7 + $0x38] sm:$0xff]
        %v5152 = vld [vmem:[%s7 + $0x40] sm:$0xff]
        %v5153 = vld [vmem:[%s7 + $0x48] sm:$0xff]
        %v5154 = vld [vmem:[%s7 + $0x50] sm:$0xff]
        %v5155 = vld [vmem:[%s7 + $0x58] sm:$0xff]
        %v5156 = vld [vmem:[%s7 + $0x60] sm:$0xff]
        %v5157 = vld [vmem:[%s7 + $0x68] sm:$0xff]
        %v5158 = vld [vmem:[%s7 + $0x70] sm:$0xff]
        %v5159 = vld [vmem:[%s7 + $0x78] sm:$0xff]
        %v5160 = vld [vmem:[%s7 + $0x80] sm:$0xff]
        %v5161 = vld [vmem:[%s7 + $0x88] sm:$0xff]
        %v5162 = vld [vmem:[%s7 + $0x90] sm:$0xff]
        %v5163 = vld [vmem:[%s7 + $0x98] sm:$0xff]
        %v5164 = vld [vmem:[%s7 + $0xa0] sm:$0xff]
        %v5165 = vld [vmem:[%s7 + $0xa8] sm:$0xff]
        %v5166 = vld [vmem:[%s7 + $0xb0] sm:$0xff]
        %v5167 = vld [vmem:[%s7 + $0xb8] sm:$0xff]
        %v5168 = vld [vmem:[%s7 + $0xc0] sm:$0xff]
        %v5169 = vld [vmem:[%s7 + $0xc8] sm:$0xff]
        %v5170 = vld [vmem:[%s7 + $0xd0] sm:$0xff]
        %v5171 = vld [vmem:[%s7 + $0xd8] sm:$0xff]
        %v5172 = vld [vmem:[%s7 + $0xe0] sm:$0xff]
        %v5173 = vld [vmem:[%s7 + $0xe8] sm:$0xff]
        %v5174 = vld [vmem:[%s7 + $0xf0] sm:$0xff]
        %v5175 = vld [vmem:[%s7 + $0xf8] sm:$0xff]
        %v5176 = vld [vmem:[%s7 + $0x100] sm:$0xff]
        %v5177 = vld [vmem:[%s7 + $0x108] sm:$0xff]
        %v5178 = vld [vmem:[%s7 + $0x110] sm:$0xff]
        %v5179 = vld [vmem:[%s7 + $0x118] sm:$0xff]
        %v5180 = vld [vmem:[%s7 + $0x120] sm:$0xff]
        %v5181 = vld [vmem:[%s7 + $0x128] sm:$0xff]
        %v5182 = vld [vmem:[%s7 + $0x130] sm:$0xff]
        %v5183 = vld [vmem:[%s7 + $0x138] sm:$0xff]
        %v5184 = vld [vmem:[%s7 + $0x140] sm:$0xff]
        %v5185 = vld [vmem:[%s7 + $0x148] sm:$0xff]
        %v5186 = vld [vmem:[%s7 + $0x150] sm:$0xff]
        %v5187 = vld [vmem:[%s7 + $0x158] sm:$0xff]
        %v5188 = vld [vmem:[%s7 + $0x160] sm:$0xff]
        %v5189 = vld [vmem:[%s7 + $0x168] sm:$0xff]
        %v5190 = vld [vmem:[%s7 + $0x170] sm:$0xff]
        %v5191 = vld [vmem:[%s7 + $0x178] sm:$0xff]
        %v5192 = vld [vmem:[%s7 + $0x180] sm:$0xff]
        %v5193 = vld [vmem:[%s7 + $0x188] sm:$0xff]
        %v5194 = vld [vmem:[%s7 + $0x190] sm:$0xff]
        %v5195 = vld [vmem:[%s7 + $0x198] sm:$0xff]
        %v5196 = vld [vmem:[%s7 + $0x1a0] sm:$0xff]
        %v5197 = vld [vmem:[%s7 + $0x1a8] sm:$0xff]
        %v5198 = vld [vmem:[%s7 + $0x1b0] sm:$0xff]
        %v5199 = vld [vmem:[%s7 + $0x1b8] sm:$0xff]
        %v5200 = vld [vmem:[%s7 + $0x1c0] sm:$0xff]
        %v5201 = vld [vmem:[%s7 + $0x1c8] sm:$0xff]
        %v5202 = vld [vmem:[%s7 + $0x1d0] sm:$0xff]
        %v5203 = vld [vmem:[%s7 + $0x1d8] sm:$0xff]
        %v5204 = vld [vmem:[%s7 + $0x1e0] sm:$0xff]
        %v5205 = vld [vmem:[%s7 + $0x1e8] sm:$0xff]
        %v5206 = vld [vmem:[%s7 + $0x1f0] sm:$0xff]
        %v5207 = vld [vmem:[%s7 + $0x1f8] sm:$0xff]
        %v5208 = vld [vmem:[%s8] sm:$0xf]
        %v5210 = vlaneseq
        %v5211 = vshrl.u32 %v5210, 7
        %v5212 = vsub.s32 0, %v5211
        %v5213 = vrot.slane %v5208, %v5212
        %v5214 = vlaneseq
        %v5215 = vshrl.u32 %v5214, 7
        %v5216 = vsub.s32 1, %v5215
        %v5217 = vrot.slane %v5208, %v5216
        %v5218 = vlaneseq
        %v5219 = vshrl.u32 %v5218, 7
        %v5220 = vsub.s32 2, %v5219
        %v5221 = vrot.slane %v5208, %v5220
        %v5222 = vlaneseq
        %v5223 = vshrl.u32 %v5222, 7
        %v5224 = vsub.s32 3, %v5223
        %v5225 = vrot.slane %v5208, %v5224
        %5230 = vmatprep.subr.mxu0 %v5145
        %5231 = vmatpush1.msra.mxu0 %v5144
        %5232 = vmatprep.subr.mxu0 %v5149
        %5233 = vmatpush1.msra.mxu0 %v5148
        %5234 = vmatprep.subr.mxu0 %v5153
        %5235 = vmatpush1.msra.mxu0 %v5152
        %5236 = vmatprep.subr.mxu0 %v5157
        %5237 = vmatpush1.msra.mxu0 %v5156
        %5238 = vmatprep.subr.mxu0 %v5161
        %5239 = vmatpush1.msra.mxu0 %v5160
        %5240 = vmatprep.subr.mxu0 %v5165
        %5241 = vmatpush1.msra.mxu0 %v5164
        %5242 = vmatprep.subr.mxu0 %v5169
        %5243 = vmatpush1.msra.mxu0 %v5168
        %5244 = vmatprep.subr.mxu0 %v5173
        %5245 = vmatpush1.msra.mxu0 %v5172
        %5246 = vmatprep.subr.mxu0 %v5177
        %5247 = vmatpush1.msra.mxu0 %v5176
        %5248 = vmatprep.subr.mxu0 %v5181
        %5249 = vmatpush1.msra.mxu0 %v5180
        %5250 = vmatprep.subr.mxu0 %v5185
        %5251 = vmatpush1.msra.mxu0 %v5184
        %5252 = vmatprep.subr.mxu0 %v5189
        %5253 = vmatpush1.msra.mxu0 %v5188
        %5254 = vmatprep.subr.mxu0 %v5193
        %5255 = vmatpush1.msra.mxu0 %v5192
        %5256 = vmatprep.subr.mxu0 %v5197
        %5257 = vmatpush1.msra.mxu0 %v5196
        %5258 = vmatprep.subr.mxu0 %v5201
        %5259 = vmatpush1.msra.mxu0 %v5200
        %5260 = vmatprep.subr.mxu0 %v5205
        %5261 = vmatpush1.msra.mxu0 %v5204
        %5262 = vmatprep.subr.mxu0 0.0
        %5263 = vmatpush1.msra.mxu0 0.0
        %5264 = vmatprep.subr.mxu0 0.0
        %5265 = vmatpush1.msra.mxu0 0.0
        %5266 = vmatprep.subr.mxu0 0.0
        %5267 = vmatpush1.msra.mxu0 0.0
        %5268 = vmatprep.subr.mxu0 0.0
        %5269 = vmatpush1.msra.mxu0 0.0
        %5270 = vmatprep.subr.mxu0 0.0
        %5271 = vmatpush1.msra.mxu0 0.0
        %5272 = vmatprep.subr.mxu0 0.0
        %5273 = vmatpush1.msra.mxu0 0.0
        %5274 = vmatprep.subr.mxu0 0.0
        %5275 = vmatpush1.msra.mxu0 0.0
        %5276 = vmatprep.subr.mxu0 0.0
        %5277 = vmatpush1.msra.mxu0 0.0
        %5278 = vmatprep.subr.mxu0 0.0
        %5279 = vmatpush1.msra.mxu0 0.0
        %5280 = vmatprep.subr.mxu0 0.0
        %5281 = vmatpush1.msra.mxu0 0.0
        %5282 = vmatprep.subr.mxu0 0.0
        %5283 = vmatpush1.msra.mxu0 0.0
        %5284 = vmatprep.subr.mxu0 0.0
        %5285 = vmatpush1.msra.mxu0 0.0
        %5286 = vmatprep.subr.mxu0 0.0
        %5287 = vmatpush1.msra.mxu0 0.0
        %5288 = vmatprep.subr.mxu0 0.0
        %5289 = vmatpush1.msra.mxu0 0.0
        %5290 = vmatprep.subr.mxu0 0.0
        %5291 = vmatpush1.msra.mxu0 0.0
        %5292 = vmatprep.subr.mxu0 0.0
        %5293 = vmatpush1.msra.mxu0 0.0
        %5294 = vmatprep.mubr.f32.mxu0 0.0
        %5295 = vmatmul.mubr.f32.gmra.mrb[0].mxu0 %v5143
        %v5296 = vpop.f32.mrb[0].mxu0
        %v5297 = vadd.f32 %v5213, %v5296
        %v5298 = vpop.f32.mrb[0].mxu0
        %v5299 = vadd.f32 %v5217, %v5298
        %5300 = vdwg.mxu0
        %5301 = vmatprep.subr.mxu0 %v5147
        %5302 = vmatpush1.msra.mxu0 %v5146
        %5303 = vmatprep.subr.mxu0 %v5151
        %5304 = vmatpush1.msra.mxu0 %v5150
        %5305 = vmatprep.subr.mxu0 %v5155
        %5306 = vmatpush1.msra.mxu0 %v5154
        %5307 = vmatprep.subr.mxu0 %v5159
        %5308 = vmatpush1.msra.mxu0 %v5158
        %5309 = vmatprep.subr.mxu0 %v5163
        %5310 = vmatpush1.msra.mxu0 %v5162
        %5311 = vmatprep.subr.mxu0 %v5167
        %5312 = vmatpush1.msra.mxu0 %v5166
        %5313 = vmatprep.subr.mxu0 %v5171
        %5314 = vmatpush1.msra.mxu0 %v5170
        %5315 = vmatprep.subr.mxu0 %v5175
        %5316 = vmatpush1.msra.mxu0 %v5174
        %5317 = vmatprep.subr.mxu0 %v5179
        %5318 = vmatpush1.msra.mxu0 %v5178
        %5319 = vmatprep.subr.mxu0 %v5183
        %5320 = vmatpush1.msra.mxu0 %v5182
        %5321 = vmatprep.subr.mxu0 %v5187
        %5322 = vmatpush1.msra.mxu0 %v5186
        %5323 = vmatprep.subr.mxu0 %v5191
        %5324 = vmatpush1.msra.mxu0 %v5190
        %5325 = vmatprep.subr.mxu0 %v5195
        %5326 = vmatpush1.msra.mxu0 %v5194
        %5327 = vmatprep.subr.mxu0 %v5199
        %5328 = vmatpush1.msra.mxu0 %v5198
        %5329 = vmatprep.subr.mxu0 %v5203
        %5330 = vmatpush1.msra.mxu0 %v5202
        %5331 = vmatprep.subr.mxu0 %v5207
        %5332 = vmatpush1.msra.mxu0 %v5206
        %5333 = vmatprep.subr.mxu0 0.0
        %5334 = vmatpush1.msra.mxu0 0.0
        %5335 = vmatprep.subr.mxu0 0.0
        %5336 = vmatpush1.msra.mxu0 0.0
        %5337 = vmatprep.subr.mxu0 0.0
        %5338 = vmatpush1.msra.mxu0 0.0
        %5339 = vmatprep.subr.mxu0 0.0
        %5340 = vmatpush1.msra.mxu0 0.0
        %5341 = vmatprep.subr.mxu0 0.0
        %5342 = vmatpush1.msra.mxu0 0.0
        %5343 = vmatprep.subr.mxu0 0.0
        %5344 = vmatpush1.msra.mxu0 0.0
        %5345 = vmatprep.subr.mxu0 0.0
        %5346 = vmatpush1.msra.mxu0 0.0
        %5347 = vmatprep.subr.mxu0 0.0
        %5348 = vmatpush1.msra.mxu0 0.0
        %5349 = vmatprep.subr.mxu0 0.0
        %5350 = vmatpush1.msra.mxu0 0.0
        %5351 = vmatprep.subr.mxu0 0.0
        %5352 = vmatpush1.msra.mxu0 0.0
        %5353 = vmatprep.subr.mxu0 0.0
        %5354 = vmatpush1.msra.mxu0 0.0
        %5355 = vmatprep.subr.mxu0 0.0
        %5356 = vmatpush1.msra.mxu0 0.0
        %5357 = vmatprep.subr.mxu0 0.0
        %5358 = vmatpush1.msra.mxu0 0.0
        %5359 = vmatprep.subr.mxu0 0.0
        %5360 = vmatpush1.msra.mxu0 0.0
        %5361 = vmatprep.subr.mxu0 0.0
        %5362 = vmatpush1.msra.mxu0 0.0
        %5363 = vmatprep.subr.mxu0 0.0
        %5364 = vmatpush1.msra.mxu0 0.0
        %5365 = vmatprep.mubr.f32.mxu0 0.0
        %5366 = vmatmul.mubr.f32.gmra.mrb[0].mxu0 %v5143
        %v5367 = vpop.f32.mrb[0].mxu0
        %v5368 = vadd.f32 %v5221, %v5367
        %v5369 = vpop.f32.mrb[0].mxu0
        %v5370 = vadd.f32 %v5225, %v5369
        %5371 = vdwg.mxu0
        %v5372 = vmax.f32 %v5297, 0.0
        %v5373 = vmax.f32 %v5299, 0.0
        %v5374 = vmax.f32 %v5368, 0.0
        %v5375 = vmax.f32 %v5370, 0.0
        %v5376 = vld [vmem:[%s9] sm:$0xff]
        %v5377 = vld [vmem:[%s9 + $0x8] sm:$0xff]
        %v5378 = vld [vmem:[%s9 + $0x10] sm:$0xff]
        %v5379 = vld [vmem:[%s9 + $0x18] sm:$0xff]
        %v5380 = vld [vmem:[%s9 + $0x20] sm:$0xff]
        %v5381 = vld [vmem:[%s9 + $0x28] sm:$0xff]
        %v5382 = vld [vmem:[%s9 + $0x30] sm:$0xff]
        %v5383 = vld [vmem:[%s9 + $0x38] sm:$0xff]
        %v5384 = vld [vmem:[%s9 + $0x40] sm:$0xff]
        %v5385 = vld [vmem:[%s9 + $0x48] sm:$0xff]
        %v5386 = vld [vmem:[%s9 + $0x50] sm:$0xff]
        %v5387 = vld [vmem:[%s9 + $0x58] sm:$0xff]
        %v5388 = vld [vmem:[%s9 + $0x60] sm:$0xff]
        %v5389 = vld [vmem:[%s9 + $0x68] sm:$0xff]
        %v5390 = vld [vmem:[%s9 + $0x70] sm:$0xff]
        %v5391 = vld [vmem:[%s9 + $0x78] sm:$0xff]
        %v5392 = vld [vmem:[%s9 + $0x80] sm:$0xff]
        %v5393 = vld [vmem:[%s9 + $0x88] sm:$0xff]
        %v5394 = vld [vmem:[%s9 + $0x90] sm:$0xff]
        %v5395 = vld [vmem:[%s9 + $0x98] sm:$0xff]
        %v5396 = vld [vmem:[%s9 + $0xa0] sm:$0xff]
        %v5397 = vld [vmem:[%s9 + $0xa8] sm:$0xff]
        %v5398 = vld [vmem:[%s9 + $0xb0] sm:$0xff]
        %v5399 = vld [vmem:[%s9 + $0xb8] sm:$0xff]
        %v5400 = vld [vmem:[%s9 + $0xc0] sm:$0xff]
        %v5401 = vld [vmem:[%s9 + $0xc8] sm:$0xff]
        %v5402 = vld [vmem:[%s9 + $0xd0] sm:$0xff]
        %v5403 = vld [vmem:[%s9 + $0xd8] sm:$0xff]
        %v5404 = vld [vmem:[%s9 + $0xe0] sm:$0xff]
        %v5405 = vld [vmem:[%s9 + $0xe8] sm:$0xff]
        %v5406 = vld [vmem:[%s9 + $0xf0] sm:$0xff]
        %v5407 = vld [vmem:[%s9 + $0xf8] sm:$0xff]
        %v5408 = vld [vmem:[%s9 + $0x100] sm:$0xff]
        %v5409 = vld [vmem:[%s9 + $0x108] sm:$0xff]
        %v5410 = vld [vmem:[%s9 + $0x110] sm:$0xff]
        %v5411 = vld [vmem:[%s9 + $0x118] sm:$0xff]
        %v5412 = vld [vmem:[%s9 + $0x120] sm:$0xff]
        %v5413 = vld [vmem:[%s9 + $0x128] sm:$0xff]
        %v5414 = vld [vmem:[%s9 + $0x130] sm:$0xff]
        %v5415 = vld [vmem:[%s9 + $0x138] sm:$0xff]
        %v5416 = vld [vmem:[%s9 + $0x140] sm:$0xff]
        %v5417 = vld [vmem:[%s9 + $0x148] sm:$0xff]
        %v5418 = vld [vmem:[%s9 + $0x150] sm:$0xff]
        %v5419 = vld [vmem:[%s9 + $0x158] sm:$0xff]
        %v5420 = vld [vmem:[%s9 + $0x160] sm:$0xff]
        %v5421 = vld [vmem:[%s9 + $0x168] sm:$0xff]
        %v5422 = vld [vmem:[%s9 + $0x170] sm:$0xff]
        %v5423 = vld [vmem:[%s9 + $0x178] sm:$0xff]
        %v5424 = vld [vmem:[%s9 + $0x180] sm:$0xff]
        %v5425 = vld [vmem:[%s9 + $0x188] sm:$0xff]
        %v5426 = vld [vmem:[%s9 + $0x190] sm:$0xff]
        %v5427 = vld [vmem:[%s9 + $0x198] sm:$0xff]
        %v5428 = vld [vmem:[%s9 + $0x1a0] sm:$0xff]
        %v5429 = vld [vmem:[%s9 + $0x1a8] sm:$0xff]
        %v5430 = vld [vmem:[%s9 + $0x1b0] sm:$0xff]
        %v5431 = vld [vmem:[%s9 + $0x1b8] sm:$0xff]
        %v5432 = vld [vmem:[%s9 + $0x1c0] sm:$0xff]
        %v5433 = vld [vmem:[%s9 + $0x1c8] sm:$0xff]
        %v5434 = vld [vmem:[%s9 + $0x1d0] sm:$0xff]
        %v5435 = vld [vmem:[%s9 + $0x1d8] sm:$0xff]
        %v5436 = vld [vmem:[%s9 + $0x1e0] sm:$0xff]
        %v5437 = vld [vmem:[%s9 + $0x1e8] sm:$0xff]
        %v5438 = vld [vmem:[%s9 + $0x1f0] sm:$0xff]
        %v5439 = vld [vmem:[%s9 + $0x1f8] sm:$0xff]
        %v5440 = vld [vmem:[%s10] sm:$0x1]
        %5441 = vmatprep.subr.mxu0 0.0
        %5442 = vmatpush1.msra.mxu0 %v5376
        %5443 = vmatprep.subr.mxu0 0.0
        %5444 = vmatpush1.msra.mxu0 %v5377
        %5445 = vmatprep.subr.mxu0 0.0
        %5446 = vmatpush1.msra.mxu0 %v5378
        %5447 = vmatprep.subr.mxu0 0.0
        %5448 = vmatpush1.msra.mxu0 %v5379
        %5449 = vmatprep.subr.mxu0 0.0
        %5450 = vmatpush1.msra.mxu0 %v5380
        %5451 = vmatprep.subr.mxu0 0.0
        %5452 = vmatpush1.msra.mxu0 %v5381
        %5453 = vmatprep.subr.mxu0 0.0
        %5454 = vmatpush1.msra.mxu0 %v5382
        %5455 = vmatprep.subr.mxu0 0.0
        %5456 = vmatpush1.msra.mxu0 %v5383
        %5457 = vmatprep.subr.mxu0 0.0
        %5458 = vmatpush1.msra.mxu0 %v5384
        %5459 = vmatprep.subr.mxu0 0.0
        %5460 = vmatpush1.msra.mxu0 %v5385
        %5461 = vmatprep.subr.mxu0 0.0
        %5462 = vmatpush1.msra.mxu0 %v5386
        %5463 = vmatprep.subr.mxu0 0.0
        %5464 = vmatpush1.msra.mxu0 %v5387
        %5465 = vmatprep.subr.mxu0 0.0
        %5466 = vmatpush1.msra.mxu0 %v5388
        %5467 = vmatprep.subr.mxu0 0.0
        %5468 = vmatpush1.msra.mxu0 %v5389
        %5469 = vmatprep.subr.mxu0 0.0
        %5470 = vmatpush1.msra.mxu0 %v5390
        %5471 = vmatprep.subr.mxu0 0.0
        %5472 = vmatpush1.msra.mxu0 %v5391
        %5473 = vmatprep.subr.mxu0 0.0
        %5474 = vmatpush1.msra.mxu0 %v5392
        %5475 = vmatprep.subr.mxu0 0.0
        %5476 = vmatpush1.msra.mxu0 %v5393
        %5477 = vmatprep.subr.mxu0 0.0
        %5478 = vmatpush1.msra.mxu0 %v5394
        %5479 = vmatprep.subr.mxu0 0.0
        %5480 = vmatpush1.msra.mxu0 %v5395
        %5481 = vmatprep.subr.mxu0 0.0
        %5482 = vmatpush1.msra.mxu0 %v5396
        %5483 = vmatprep.subr.mxu0 0.0
        %5484 = vmatpush1.msra.mxu0 %v5397
        %5485 = vmatprep.subr.mxu0 0.0
        %5486 = vmatpush1.msra.mxu0 %v5398
        %5487 = vmatprep.subr.mxu0 0.0
        %5488 = vmatpush1.msra.mxu0 %v5399
        %5489 = vmatprep.subr.mxu0 0.0
        %5490 = vmatpush1.msra.mxu0 %v5400
        %5491 = vmatprep.subr.mxu0 0.0
        %5492 = vmatpush1.msra.mxu0 %v5401
        %5493 = vmatprep.subr.mxu0 0.0
        %5494 = vmatpush1.msra.mxu0 %v5402
        %5495 = vmatprep.subr.mxu0 0.0
        %5496 = vmatpush1.msra.mxu0 %v5403
        %5497 = vmatprep.subr.mxu0 0.0
        %5498 = vmatpush1.msra.mxu0 %v5404
        %5499 = vmatprep.subr.mxu0 0.0
        %5500 = vmatpush1.msra.mxu0 %v5405
        %5501 = vmatprep.subr.mxu0 0.0
        %5502 = vmatpush1.msra.mxu0 %v5406
        %5503 = vmatprep.subr.mxu0 0.0
        %5504 = vmatpush1.msra.mxu0 %v5407
        %5505 = vmatprep.mubr.f32.mxu0 %v5373
        %5506 = vmatmul.mubr.f32.gmra.mrb[0].mxu0 %v5372
        %v5507 = vpop.f32.mrb[0].mxu0
        %v5508 = vadd.f32 %v5440, %v5507
        %v5509 = vpop.f32.mrb[0].mxu0
        %5510 = vdwg.mxu0
        %5511 = vmatprep.subr.mxu0 0.0
        %5512 = vmatpush1.msra.mxu0 %v5408
        %5513 = vmatprep.subr.mxu0 0.0
        %5514 = vmatpush1.msra.mxu0 %v5409
        %5515 = vmatprep.subr.mxu0 0.0
        %5516 = vmatpush1.msra.mxu0 %v5410
        %5517 = vmatprep.subr.mxu0 0.0
        %5518 = vmatpush1.msra.mxu0 %v5411
        %5519 = vmatprep.subr.mxu0 0.0
        %5520 = vmatpush1.msra.mxu0 %v5412
        %5521 = vmatprep.subr.mxu0 0.0
        %5522 = vmatpush1.msra.mxu0 %v5413
        %5523 = vmatprep.subr.mxu0 0.0
        %5524 = vmatpush1.msra.mxu0 %v5414
        %5525 = vmatprep.subr.mxu0 0.0
        %5526 = vmatpush1.msra.mxu0 %v5415
        %5527 = vmatprep.subr.mxu0 0.0
        %5528 = vmatpush1.msra.mxu0 %v5416
        %5529 = vmatprep.subr.mxu0 0.0
        %5530 = vmatpush1.msra.mxu0 %v5417
        %5531 = vmatprep.subr.mxu0 0.0
        %5532 = vmatpush1.msra.mxu0 %v5418
        %5533 = vmatprep.subr.mxu0 0.0
        %5534 = vmatpush1.msra.mxu0 %v5419
        %5535 = vmatprep.subr.mxu0 0.0
        %5536 = vmatpush1.msra.mxu0 %v5420
        %5537 = vmatprep.subr.mxu0 0.0
        %5538 = vmatpush1.msra.mxu0 %v5421
        %5539 = vmatprep.subr.mxu0 0.0
        %5540 = vmatpush1.msra.mxu0 %v5422
        %5541 = vmatprep.subr.mxu0 0.0
        %5542 = vmatpush1.msra.mxu0 %v5423
        %5543 = vmatprep.subr.mxu0 0.0
        %5544 = vmatpush1.msra.mxu0 %v5424
        %5545 = vmatprep.subr.mxu0 0.0
        %5546 = vmatpush1.msra.mxu0 %v5425
        %5547 = vmatprep.subr.mxu0 0.0
        %5548 = vmatpush1.msra.mxu0 %v5426
        %5549 = vmatprep.subr.mxu0 0.0
        %5550 = vmatpush1.msra.mxu0 %v5427
        %5551 = vmatprep.subr.mxu0 0.0
        %5552 = vmatpush1.msra.mxu0 %v5428
        %5553 = vmatprep.subr.mxu0 0.0
        %5554 = vmatpush1.msra.mxu0 %v5429
        %5555 = vmatprep.subr.mxu0 0.0
        %5556 = vmatpush1.msra.mxu0 %v5430
        %5557 = vmatprep.subr.mxu0 0.0
        %5558 = vmatpush1.msra.mxu0 %v5431
        %5559 = vmatprep.subr.mxu0 0.0
        %5560 = vmatpush1.msra.mxu0 %v5432
        %5561 = vmatprep.subr.mxu0 0.0
        %5562 = vmatpush1.msra.mxu0 %v5433
        %5563 = vmatprep.subr.mxu0 0.0
        %5564 = vmatpush1.msra.mxu0 %v5434
        %5565 = vmatprep.subr.mxu0 0.0
        %5566 = vmatpush1.msra.mxu0 %v5435
        %5567 = vmatprep.subr.mxu0 0.0
        %5568 = vmatpush1.msra.mxu0 %v5436
        %5569 = vmatprep.subr.mxu0 0.0
        %5570 = vmatpush1.msra.mxu0 %v5437
        %5571 = vmatprep.subr.mxu0 0.0
        %5572 = vmatpush1.msra.mxu0 %v5438
        %5573 = vmatprep.subr.mxu0 0.0
        %5574 = vmatpush1.msra.mxu0 %v5439
        %5575 = vmatprep.mubr.f32.mxu0 %v5375
        %5576 = vmatmul.mubr.f32.gmra.mrb[0].mxu0 %v5374
        %v5577 = vpop.f32.mrb[0].mxu0
        %v5578 = vadd.f32 %v5508, %v5577
        %v5579 = vpop.f32.mrb[0].mxu0
        %5580 = vdwg.mxu0
        %5581 = vst [vmem:[%s378] sm:$0x1] %v5578
        %s5582 = sand.u32 %s269, 1
        %s5583 = scalar_lea.sflag [#allocation7], %s5582
        %s5584 = sand.u32 %s269, 1
        %s5585 = scalar_lea.vmem [#allocation6], %s5584
        // Predicated region
        $region65: #{cnn3_forward.1} parent=63 // pred_check
          %p5586 = pneg %p279
        $region66: #{cnn3_forward.1} parent=63 // pred_check_branch
          %5588 = sbr.rel (%p5586) target = $region68
        $region67: #{cnn3_forward.1} parent=63 // pred_region
          %s5590 = ssub.s32 16, 16
          %5591 = vsyncadd %s5583, %s5590
          %s5592 = smul.addr %s25, 16
          %s5593 = scalar_lea.hbm %s11, %s5592
          %s5595 = sshll.u32 %s5585, 4
          %s5596 = int_to_ptr.vmem [resolvable:$true] %s5595
          %5598 = dma.vmem_to_hbm [thread:$0]  %s5596, 16, %s5593, %s5583
        $region68: #{cnn3_forward.1} parent=63 // pred_fallthru
          _
      $region64: #{cnn3_forward.1} parent=5 // pred_fallthru
        _
      %p5599 = scmp.le.s32.totalorder 2, %s20
      // Predicated region
      $region69: #{cnn3_forward.1} parent=5 // pred_check
        %p5600 = pneg %p5599
      $region70: #{cnn3_forward.1} parent=5 // pred_check_branch
        %5602 = sbr.rel (%p5600) target = $region72
      $region71: #{cnn3_forward.1} parent=5 // pred_region
        %s5603 = ssub.s32 %s20, 2
        // Predicated region
        $region73: #{cnn3_forward.1} parent=71 // pred_check
          %p5604 = pneg %p285
        $region74: #{cnn3_forward.1} parent=71 // pred_check_branch
          %5606 = sbr.rel (%p5604) target = $region76
        $region75: #{cnn3_forward.1} parent=71 // pred_region
          %s5607 = sand.u32 %s270, 1
          %s5608 = scalar_lea.sflag [#allocation7], %s5607
          %s5609 = sand.u32 %s270, 1
          %s5610 = scalar_lea.vmem [#allocation6], %s5609
          %5611 = dma.done %s5608, 16
        $region76: #{cnn3_forward.1} parent=71 // pred_fallthru
          _
      $region72: #{cnn3_forward.1} parent=5 // pred_fallthru
        _
    $region6: #{cnn3_forward.1} parent=1 // loop_footer
      %s24 = sadd.s32 1, %s20
    $region7: #{cnn3_forward.1} parent=1 // loop_footer_branch
      %19 = sbr.rel target = $region3
    $region8: #{cnn3_forward.1} parent=1 // loop_exit
      _
    %5612 = vsyncpa [#allocation7], 1
    %s5613 = scalar_lea.sflag [#allocation7], 1
    %5614 = vsyncpa %s5613, 1

</llo_original>
